<compile_context>
chip_gen: v7x
topology: tpu7x:2x2x1
jax: 0.10.0
libtpu: 0.0.40
codegen_flags: <defaults>
</compile_context>

<pallas_src>
import functools

import jax
import jax.numpy as jnp
from jax.experimental import pallas as pl
from jax.experimental.pallas import tpu as pltpu


def _dgp_kernel(feat_hbm, dep_hbm, out_ref,
                feat_buf, dep_buf, sem, *,
                tile_h, patch_h, patch_w, tau, eps, margin, threshold):
    # feat_hbm: (B, C, Hp, Wpl) HBM ref (padded, native dtype)
    # dep_hbm : (B, Hp, Wpl)    HBM ref (padded, f32, 0 == invalid depth)
    # out_ref : (1, 8, 128) VMEM block resident across the h axis (accumulator);
    #           sublanes 0-3 carry sum(loss*sel), sublanes 4-7 carry sum(sel).
    # feat_buf: (2, C, halo_h, Wpl) native-dtype VMEM double buffer
    # dep_buf : (2, halo_h, Wpl)    f32 VMEM double buffer
    C = feat_buf.shape[1]
    halo_h = feat_buf.shape[2]
    Wpl = feat_buf.shape[3]
    ph2, pw2 = patch_h // 2, patch_w // 2

    b = pl.program_id(0)
    h = pl.program_id(1)
    n_h = pl.num_programs(1)
    slot = h % 2

    def start_fetch(hh, s):
        row0 = hh * tile_h
        pltpu.make_async_copy(
            feat_hbm.at[b, :, pl.ds(row0, halo_h), :], feat_buf.at[s],
            sem.at[0, s]).start()
        pltpu.make_async_copy(
            dep_hbm.at[b, pl.ds(row0, halo_h), :], dep_buf.at[s],
            sem.at[1, s]).start()

    # Prime the pipeline on the first tile of each batch element.
    @pl.when(h == 0)
    def _():
        start_fetch(0, 0)

    # Wait for the current tile (started either by the prime or by the
    # previous grid step's prefetch).
    pltpu.make_async_copy(
        feat_hbm.at[b, :, pl.ds(0, halo_h), :], feat_buf.at[slot],
        sem.at[0, slot]).wait()
    pltpu.make_async_copy(
        dep_hbm.at[b, pl.ds(0, halo_h), :], dep_buf.at[slot],
        sem.at[1, slot]).wait()

    # Prefetch the next tile of the same batch element while computing.
    @pl.when(h + 1 < n_h)
    def _():
        start_fetch(h + 1, 1 - slot)

    # One-time f32 upcast of the whole halo'd tile (a no-op for f32 inputs);
    # the hot loop below never casts.
    feat = feat_buf[slot].astype(jnp.float32)          # (C, halo_h, Wpl)
    dep = dep_buf[slot]                                # (halo_h, Wpl)

    # Anchor window: rows [ph2, ph2+tile_h), FULL lane width.  The lane halo
    # and the 128-alignment pad columns carry depth 0 -> excluded from `sel`.
    d_a = dep[ph2:ph2 + tile_h, :]
    f_a = [feat[c, ph2:ph2 + tile_h, :] for c in range(C)]
    close_thr = d_a * (1.0 / tau) + eps                # hoisted out of the loop

    shape = (tile_h, Wpl)
    tot_sum = jnp.zeros(shape, jnp.float32)
    pos_sum = jnp.zeros(shape, jnp.float32)
    # Centre neighbour: always a valid positive with distance 0.
    # TODO(synk): centre-pixel convention unverified vs. original torch code.
    valid_cnt = jnp.ones(shape, jnp.float32)
    pos_cnt = jnp.ones(shape, jnp.float32)

    for dx in range(patch_w):
        # Lane shift hoisted out of the dy loop: one roll per (dx, array),
        # reused across all dy.  Wrapped lanes only appear under zero-depth
        # (excluded) anchors, so wraparound cannot affect the masked result,
        # and the summation over all dx is invariant to the roll direction.
        shift = (pw2 - dx) % Wpl
        if shift == 0:
            dep_dx = dep
            feat_dx = [feat[c] for c in range(C)]
        else:
            dep_dx = pltpu.roll(dep, shift, axis=1)
            feat_dx = [pltpu.roll(feat[c], shift, axis=1) for c in range(C)]

        for dy in range(patch_h):
            if dy == ph2 and dx == pw2:
                continue                               # centre handled above
            d_n = dep_dx[dy:dy + tile_h, :]
            dist2 = jnp.zeros(shape, jnp.float32)
            for c in range(C):                         # channel-incremental L2
                df = f_a[c] - feat_dx[c][dy:dy + tile_h, :]
                dist2 = dist2 + df * df
            dist = jnp.sqrt(dist2)

            valid = d_n > 0.0                          # missing / out-of-image
            vf = jnp.where(valid, 1.0, 0.0)
            dv = jnp.where(valid, dist, 0.0)
            same = jnp.abs(d_n - d_a) <= close_thr

            tot_sum = tot_sum + dv
            valid_cnt = valid_cnt + vf
            pos_sum = pos_sum + jnp.where(same, dv, 0.0)
            pos_cnt = pos_cnt + jnp.where(same, vf, 0.0)

    neg_cnt = valid_cnt - pos_cnt
    neg_sum = tot_sum - pos_sum
    # Divides run once per pixel (outside the hot loop); kept exact for bit
    # parity with the pure-JAX reference.
    d_pos = pos_sum / jnp.maximum(pos_cnt, 1.0)
    d_neg = neg_sum / jnp.maximum(neg_cnt, 1.0)
    loss = jnp.maximum(d_pos - d_neg + margin, 0.0)
    sel = jnp.logical_and(neg_cnt > float(threshold), d_a > 0.0)

    loss_sum = jnp.sum(jnp.where(sel, loss, 0.0), axis=-1, keepdims=True)
    loss_sum = jnp.sum(loss_sum, axis=-2, keepdims=True)       # (1, 1)
    cnt_sum = jnp.sum(jnp.where(sel, 1.0, 0.0), axis=-1, keepdims=True)
    cnt_sum = jnp.sum(cnt_sum, axis=-2, keepdims=True)         # (1, 1)

    # Pack both partial sums into a single aligned (8,128) block.
    sub = jax.lax.broadcasted_iota(jnp.int32, (8, 128), 0)
    packed = jnp.where(sub < 4,
                       jnp.broadcast_to(loss_sum, (8, 128)),
                       jnp.broadcast_to(cnt_sum, (8, 128)))

    @pl.when(h == 0)
    def _():
        out_ref[...] = jnp.zeros_like(out_ref)

    out_ref[...] = out_ref[...] + packed[None]


def dgp_loss(seg_feat, dep_true, *, eps=1e-5, tau=10, patch_size=5,
             margin=0.33, scale=1.0, tile_h=None):
    """Forward pass of DGPLoss.

    seg_feat: (B, C, H, W) float — segmentation feature map (NCHW)
    dep_true: (B, H, W) or (B, 1, H, W) float — ground-truth depth (0 = invalid)
    """
    if isinstance(patch_size, (tuple, list)):
        patch_w, patch_h = patch_size
    else:
        patch_h = patch_w = int(patch_size)
    threshold = min(patch_h, patch_w) // 2
    ph2, pw2 = patch_h // 2, patch_w // 2

    B, C, H, W = seg_feat.shape
    dep = dep_true
    if dep.ndim == 4:
        dep = dep[:, 0]
    dep = dep.astype(jnp.float32)
    feat = seg_feat                                    # keep native dtype for DMA

    # Lane-dense padded width (multiple of 128); extra right columns carry
    # depth 0 -> automatically excluded from the loss.
    Wpl = ((W + 2 * pw2 + 127) // 128) * 128
    feat_bytes = jnp.dtype(feat.dtype).itemsize

    if tile_h is None:
        # Working-set estimate per halo'd row: double-buffered native features,
        # double-buffered f32 depth, one-time f32 upcast, per-dx rolled copies,
        # anchors + accumulators + temporaries.  16 MiB budget keeps the total
        # (incl. compiler temporaries) well inside v7x's 64 MiB/TC.
        per_row = Wpl * (2 * C * feat_bytes + 2 * 4 + C * 4 + (C + 1) * 4 + 16 * 4)
        budget = 16 * 1024 * 1024
        tile_h = max(8, min(512, (budget // max(per_row, 1)) // 8 * 8))
    tile_h = int(max(1, min(tile_h, H)))
    if tile_h >= 8:
        tile_h = (tile_h // 8) * 8                     # keep a multiple of 8
    n_h = -(-H // tile_h)                              # cdiv
    H_pad = n_h * tile_h
    halo_h = tile_h + 2 * ph2

    # Pad spatially; extra rows/cols carry depth 0 -> excluded anchors/neighbours.
    feat_pad = jnp.pad(
        feat, ((0, 0), (0, 0), (ph2, ph2 + H_pad - H), (pw2, Wpl - W - pw2)))
    dep_pad = jnp.pad(
        dep, ((0, 0), (ph2, ph2 + H_pad - H), (pw2, Wpl - W - pw2)))

    kernel = functools.partial(
        _dgp_kernel,
        tile_h=tile_h, patch_h=patch_h, patch_w=patch_w,
        tau=float(tau), eps=float(eps), margin=float(margin),
        threshold=int(threshold))

    part = pl.pallas_call(
        kernel,
        out_shape=jax.ShapeDtypeStruct((B, 8, 128), jnp.float32),
        grid_spec=pltpu.PrefetchScalarGridSpec(
            num_scalar_prefetch=0,
            grid=(B, n_h),
            in_specs=[
                pl.BlockSpec(memory_space=pl.ANY),     # features stay in HBM
                pl.BlockSpec(memory_space=pl.ANY),     # depth stays in HBM
            ],
            out_specs=pl.BlockSpec((1, 8, 128), lambda b, h: (b, 0, 0)),
            scratch_shapes=[
                pltpu.VMEM((2, C, halo_h, Wpl), feat_pad.dtype),
                pltpu.VMEM((2, halo_h, Wpl), jnp.float32),
                pltpu.SemaphoreType.DMA((2, 2)),
            ],
        ),
        compiler_params=pltpu.CompilerParams(
            # h is the in-kernel prefetch/accumulation axis (kept sequential);
            # megacore (v7x) shards over the batch axis.
            dimension_semantics=("parallel", "arbitrary"),
            vmem_limit_bytes=48 * 1024 * 1024,
        ),
    )(feat_pad, dep_pad)

    num = jnp.sum(part[:, 0, 0])
    den = jnp.sum(part[:, 4, 0])
    # torch.masked_select(loss, mask).mean() * scale (NaN if mask empty, as torch)
    return (num / den) * scale


def _dgp_loss_ref(seg_feat, dep_true, *, eps, tau, patch_size, margin, scale):
    """Pure-JAX reference used only for the self-check in __main__."""
    patch_h = patch_w = int(patch_size)
    ph2, pw2 = patch_h // 2, patch_w // 2
    threshold = min(patch_h, patch_w) // 2
    B, C, H, W = seg_feat.shape
    f = jnp.pad(seg_feat.astype(jnp.float32),
                ((0, 0), (0, 0), (ph2, ph2), (pw2, pw2)))
    d = jnp.pad(dep_true.astype(jnp.float32), ((0, 0), (ph2, ph2), (pw2, pw2)))
    f_a = f[:, :, ph2:ph2 + H, pw2:pw2 + W]
    d_a = d[:, ph2:ph2 + H, pw2:pw2 + W]
    close_thr = d_a * (1.0 / tau) + eps
    tot = jnp.zeros((B, H, W), jnp.float32)
    pos_s = jnp.zeros((B, H, W), jnp.float32)
    vc = jnp.ones((B, H, W), jnp.float32)
    pc = jnp.ones((B, H, W), jnp.float32)
    for dy in range(patch_h):
        for dx in range(patch_w):
            if dy == ph2 and dx == pw2:
                continue
            f_n = f[:, :, dy:dy + H, dx:dx + W]
            d_n = d[:, dy:dy + H, dx:dx + W]
            dist = jnp.sqrt(jnp.sum((f_a - f_n) ** 2, axis=1))
            valid = d_n > 0.0
            same = jnp.abs(d_n - d_a) <= close_thr
            pos = valid & same
            tot = tot + jnp.where(valid, dist, 0.0)
            vc = vc + jnp.where(valid, 1.0, 0.0)
            pos_s = pos_s + jnp.where(pos, dist, 0.0)
            pc = pc + jnp.where(pos, 1.0, 0.0)
    neg_c = vc - pc
    neg_s = tot - pos_s
    loss = jnp.maximum(pos_s / jnp.maximum(pc, 1.0)
                       - neg_s / jnp.maximum(neg_c, 1.0) + margin, 0.0)
    sel = (neg_c > float(threshold)) & (d_a > 0.0)
    return (jnp.sum(jnp.where(sel, loss, 0.0)) / jnp.sum(sel)) * scale


if __name__ == "__main__":
    key = jax.random.PRNGKey(0)
    k_feat, k_dep = jax.random.split(key)

    B, C, H, W = 2, 4, 16, 16
    seg_feat = jax.random.normal(k_feat, (B, C, H, W), dtype=jnp.float32)

    # Synthetic depth: piecewise-constant planes (clear discontinuities between
    # 6x6 blocks) plus small within-plane jitter -> plenty of boundary pixels.
    yy = jnp.arange(H)[:, None] // 6
    xx = jnp.arange(W)[None, :] // 6
    base = 1.0 + 0.7 * (yy * 3 + xx).astype(jnp.float32)
    noise = 0.01 * jax.random.uniform(k_dep, (B, H, W), dtype=jnp.float32)
    dep_true = jnp.broadcast_to(base[None], (B, H, W)) + noise

    ref = _dgp_loss_ref(seg_feat, dep_true, eps=1e-5, tau=10, patch_size=5,
                        margin=0.33, scale=1.0)

    # Multi-tile path (n_h=2): exercises the halo DMA double buffering and the
    # cross-tile output accumulation.
    out = dgp_loss(seg_feat, dep_true, eps=1e-5, tau=10, patch_size=5,
                   margin=0.33, scale=1.0, tile_h=8)
    out = jax.block_until_ready(out)
    assert out.shape == ()
    assert bool(jnp.isfinite(out))
    assert abs(float(out) - float(ref)) <= 5e-3 * abs(float(ref)) + 1e-5

    # Single-tile path with bf16 features: exercises the one-time f32 upcast
    # (halved HBM traffic for the feature DMA).
    seg_bf16 = seg_feat.astype(jnp.bfloat16)
    out_bf16 = dgp_loss(seg_bf16, dep_true, eps=1e-5, tau=10, patch_size=5,
                        margin=0.33, scale=1.0)
    out_bf16 = jax.block_until_ready(out_bf16)
    ref_bf16 = _dgp_loss_ref(seg_bf16, dep_true, eps=1e-5, tau=10,
                             patch_size=5, margin=0.33, scale=1.0)
    assert bool(jnp.isfinite(out_bf16))
    assert abs(float(out_bf16) - float(ref_bf16)) <= 5e-3 * abs(float(ref_bf16)) + 1e-5

    print("KERNEL_OK")
</pallas_src>

<mosaic_0001>
module attributes {stable_mosaic.version = 11 : i64} {
  func.func @_dgp_kernel(%arg0: i32, %arg1: i32, %arg2: memref<2x4x20x128xf32, #tpu.memory_space<any>>, %arg3: memref<2x20x128xf32, #tpu.memory_space<any>>, %arg4: memref<1x8x128xf32, #tpu.memory_space<vmem>>, %arg5: memref<2x4x12x128xf32, #tpu.memory_space<vmem>>, %arg6: memref<2x12x128xf32, #tpu.memory_space<vmem>>, %arg7: memref<2x2x!tpu.dma_semaphore, #tpu.memory_space<semaphore_mem>>) attributes {dimension_semantics = [#tpu.dimension_semantics<parallel>, #tpu.dimension_semantics<arbitrary>], iteration_bounds = array<i64: 2, 2>, scalar_prefetch = 0 : i64, scratch_operands = 3 : i64, tpu.core_type = #tpu.core_type<tc>, window_params = [{}, {}, {transform_indices = @transform_2, window_bounds = array<i64: 1, 8, 128>}]} {
    %c2_i32 = arith.constant 2 : i32
    %c0_i32 = arith.constant 0 : i32
    %0 = arith.cmpi eq, %c2_i32, %c0_i32 : i32
    %c1_i32 = arith.constant 1 : i32
    %1 = arith.select %0, %c1_i32, %c2_i32 : i32
    %2 = arith.remsi %arg1, %1 : i32
    %c0_i32_0 = arith.constant 0 : i32
    %3 = arith.cmpi ne, %2, %c0_i32_0 : i32
    %c0_i32_1 = arith.constant 0 : i32
    %4 = arith.cmpi slt, %2, %c0_i32_1 : i32
    %c0_i32_2 = arith.constant 0 : i32
    %5 = arith.cmpi slt, %1, %c0_i32_2 : i32
    %6 = arith.xori %4, %5 : i1
    %7 = arith.andi %6, %3 : i1
    %8 = arith.addi %2, %1 : i32
    %9 = arith.select %7, %8, %2 : i32
    %c0_i32_3 = arith.constant 0 : i32
    %10 = arith.cmpi eq, %arg1, %c0_i32_3 : i32
    %11 = arith.extui %10 : i1 to i32
    %c0_i32_4 = arith.constant 0 : i32
    %12 = arith.cmpi ne, %11, %c0_i32_4 : i32
    scf.if %12 {
      %c0_i32_236 = arith.constant 0 : i32
      %c0_i32_237 = arith.constant 0 : i32
      %c0_i32_238 = arith.constant 0 : i32
      %c0_i32_239 = arith.constant 0 : i32
      %c0_i32_240 = arith.constant 0 : i32
      %c0_i32_241 = arith.constant 0 : i32
      %1046 = tpu.memref_slice %arg2[%arg0, %c0_i32_239, %c0_i32_240, %c0_i32_241] : memref<2x4x20x128xf32, #tpu.memory_space<any>> -> memref<1x4x12x128xf32, #tpu.memory_space<any>>
      %1047 = tpu.memref_squeeze %1046 : memref<1x4x12x128xf32, #tpu.memory_space<any>> -> memref<4x12x128xf32, #tpu.memory_space<any>>
      %c0_i32_242 = arith.constant 0 : i32
      %c0_i32_243 = arith.constant 0 : i32
      %c0_i32_244 = arith.constant 0 : i32
      %1048 = tpu.memref_slice %arg5[%c0_i32_236, %c0_i32_242, %c0_i32_243, %c0_i32_244] : memref<2x4x12x128xf32, #tpu.memory_space<vmem>> -> memref<1x4x12x128xf32, #tpu.memory_space<vmem>>
      %1049 = tpu.memref_squeeze %1048 : memref<1x4x12x128xf32, #tpu.memory_space<vmem>> -> memref<4x12x128xf32, #tpu.memory_space<vmem>>
      %1050 = tpu.memref_slice %arg7[%c0_i32_237, %c0_i32_238] : memref<2x2x!tpu.dma_semaphore, #tpu.memory_space<semaphore_mem>> -> memref<1x1x!tpu.dma_semaphore, #tpu.memory_space<semaphore_mem>>
      %1051 = tpu.memref_squeeze %1050 : memref<1x1x!tpu.dma_semaphore, #tpu.memory_space<semaphore_mem>> -> memref<!tpu.dma_semaphore, #tpu.memory_space<semaphore_mem>>
      tpu.enqueue_dma source(%1047 : memref<4x12x128xf32, #tpu.memory_space<any>>) target(%1049 : memref<4x12x128xf32, #tpu.memory_space<vmem>>) target_semaphore(%1051 : memref<!tpu.dma_semaphore, #tpu.memory_space<semaphore_mem>>)
      %c0_i32_245 = arith.constant 0 : i32
      %c1_i32_246 = arith.constant 1 : i32
      %c0_i32_247 = arith.constant 0 : i32
      %c0_i32_248 = arith.constant 0 : i32
      %c0_i32_249 = arith.constant 0 : i32
      %1052 = tpu.memref_slice %arg3[%arg0, %c0_i32_248, %c0_i32_249] : memref<2x20x128xf32, #tpu.memory_space<any>> -> memref<1x12x128xf32, #tpu.memory_space<any>>
      %1053 = tpu.memref_squeeze %1052 : memref<1x12x128xf32, #tpu.memory_space<any>> -> memref<12x128xf32, #tpu.memory_space<any>>
      %c0_i32_250 = arith.constant 0 : i32
      %c0_i32_251 = arith.constant 0 : i32
      %1054 = tpu.memref_slice %arg6[%c0_i32_245, %c0_i32_250, %c0_i32_251] : memref<2x12x128xf32, #tpu.memory_space<vmem>> -> memref<1x12x128xf32, #tpu.memory_space<vmem>>
      %1055 = tpu.memref_squeeze %1054 : memref<1x12x128xf32, #tpu.memory_space<vmem>> -> memref<12x128xf32, #tpu.memory_space<vmem>>
      %1056 = tpu.memref_slice %arg7[%c1_i32_246, %c0_i32_247] : memref<2x2x!tpu.dma_semaphore, #tpu.memory_space<semaphore_mem>> -> memref<1x1x!tpu.dma_semaphore, #tpu.memory_space<semaphore_mem>>
      %1057 = tpu.memref_squeeze %1056 : memref<1x1x!tpu.dma_semaphore, #tpu.memory_space<semaphore_mem>> -> memref<!tpu.dma_semaphore, #tpu.memory_space<semaphore_mem>>
      tpu.enqueue_dma source(%1053 : memref<12x128xf32, #tpu.memory_space<any>>) target(%1055 : memref<12x128xf32, #tpu.memory_space<vmem>>) target_semaphore(%1057 : memref<!tpu.dma_semaphore, #tpu.memory_space<semaphore_mem>>)
    } else {
    }
    %c0_i32_5 = arith.constant 0 : i32
    %c0_i32_6 = arith.constant 0 : i32
    %c0_i32_7 = arith.constant 0 : i32
    %c0_i32_8 = arith.constant 0 : i32
    %13 = tpu.memref_slice %arg2[%arg0, %c0_i32_6, %c0_i32_7, %c0_i32_8] : memref<2x4x20x128xf32, #tpu.memory_space<any>> -> memref<1x4x12x128xf32, #tpu.memory_space<any>>
    %14 = tpu.memref_squeeze %13 : memref<1x4x12x128xf32, #tpu.memory_space<any>> -> memref<4x12x128xf32, #tpu.memory_space<any>>
    %c0_i32_9 = arith.constant 0 : i32
    %c0_i32_10 = arith.constant 0 : i32
    %c0_i32_11 = arith.constant 0 : i32
    %15 = tpu.memref_slice %arg5[%9, %c0_i32_9, %c0_i32_10, %c0_i32_11] : memref<2x4x12x128xf32, #tpu.memory_space<vmem>> -> memref<1x4x12x128xf32, #tpu.memory_space<vmem>>
    %16 = tpu.memref_squeeze %15 : memref<1x4x12x128xf32, #tpu.memory_space<vmem>> -> memref<4x12x128xf32, #tpu.memory_space<vmem>>
    %17 = tpu.memref_slice %arg7[%c0_i32_5, %9] : memref<2x2x!tpu.dma_semaphore, #tpu.memory_space<semaphore_mem>> -> memref<1x1x!tpu.dma_semaphore, #tpu.memory_space<semaphore_mem>>
    %18 = tpu.memref_squeeze %17 : memref<1x1x!tpu.dma_semaphore, #tpu.memory_space<semaphore_mem>> -> memref<!tpu.dma_semaphore, #tpu.memory_space<semaphore_mem>>
    tpu.wait_dma2 semaphore(%18 : memref<!tpu.dma_semaphore, #tpu.memory_space<semaphore_mem>>) src(%14 : memref<4x12x128xf32, #tpu.memory_space<any>>) dst(%16 : memref<4x12x128xf32, #tpu.memory_space<vmem>>)
    %c1_i32_12 = arith.constant 1 : i32
    %c0_i32_13 = arith.constant 0 : i32
    %c0_i32_14 = arith.constant 0 : i32
    %19 = tpu.memref_slice %arg3[%arg0, %c0_i32_13, %c0_i32_14] : memref<2x20x128xf32, #tpu.memory_space<any>> -> memref<1x12x128xf32, #tpu.memory_space<any>>
    %20 = tpu.memref_squeeze %19 : memref<1x12x128xf32, #tpu.memory_space<any>> -> memref<12x128xf32, #tpu.memory_space<any>>
    %c0_i32_15 = arith.constant 0 : i32
    %c0_i32_16 = arith.constant 0 : i32
    %21 = tpu.memref_slice %arg6[%9, %c0_i32_15, %c0_i32_16] : memref<2x12x128xf32, #tpu.memory_space<vmem>> -> memref<1x12x128xf32, #tpu.memory_space<vmem>>
    %22 = tpu.memref_squeeze %21 : memref<1x12x128xf32, #tpu.memory_space<vmem>> -> memref<12x128xf32, #tpu.memory_space<vmem>>
    %23 = tpu.memref_slice %arg7[%c1_i32_12, %9] : memref<2x2x!tpu.dma_semaphore, #tpu.memory_space<semaphore_mem>> -> memref<1x1x!tpu.dma_semaphore, #tpu.memory_space<semaphore_mem>>
    %24 = tpu.memref_squeeze %23 : memref<1x1x!tpu.dma_semaphore, #tpu.memory_space<semaphore_mem>> -> memref<!tpu.dma_semaphore, #tpu.memory_space<semaphore_mem>>
    tpu.wait_dma2 semaphore(%24 : memref<!tpu.dma_semaphore, #tpu.memory_space<semaphore_mem>>) src(%20 : memref<12x128xf32, #tpu.memory_space<any>>) dst(%22 : memref<12x128xf32, #tpu.memory_space<vmem>>)
    %c1_i32_17 = arith.constant 1 : i32
    %25 = arith.addi %arg1, %c1_i32_17 : i32
    %c2_i32_18 = arith.constant 2 : i32
    %26 = arith.cmpi slt, %25, %c2_i32_18 : i32
    %27 = arith.extui %26 : i1 to i32
    %c0_i32_19 = arith.constant 0 : i32
    %28 = arith.cmpi ne, %27, %c0_i32_19 : i32
    scf.if %28 {
      %c1_i32_236 = arith.constant 1 : i32
      %1046 = arith.addi %arg1, %c1_i32_236 : i32
      %c1_i32_237 = arith.constant 1 : i32
      %1047 = arith.subi %c1_i32_237, %9 : i32
      %c8_i32 = arith.constant 8 : i32
      %1048 = arith.muli %1046, %c8_i32 : i32
      %c0_i32_238 = arith.constant 0 : i32
      %c0_i32_239 = arith.constant 0 : i32
      %c0_i32_240 = arith.constant 0 : i32
      %1049 = tpu.memref_slice %arg2[%arg0, %c0_i32_239, %1048, %c0_i32_240] : memref<2x4x20x128xf32, #tpu.memory_space<any>> -> memref<1x4x12x128xf32, #tpu.memory_space<any>>
      %1050 = tpu.memref_squeeze %1049 : memref<1x4x12x128xf32, #tpu.memory_space<any>> -> memref<4x12x128xf32, #tpu.memory_space<any>>
      %c0_i32_241 = arith.constant 0 : i32
      %c0_i32_242 = arith.constant 0 : i32
      %c0_i32_243 = arith.constant 0 : i32
      %1051 = tpu.memref_slice %arg5[%1047, %c0_i32_241, %c0_i32_242, %c0_i32_243] : memref<2x4x12x128xf32, #tpu.memory_space<vmem>> -> memref<1x4x12x128xf32, #tpu.memory_space<vmem>>
      %1052 = tpu.memref_squeeze %1051 : memref<1x4x12x128xf32, #tpu.memory_space<vmem>> -> memref<4x12x128xf32, #tpu.memory_space<vmem>>
      %1053 = tpu.memref_slice %arg7[%c0_i32_238, %1047] : memref<2x2x!tpu.dma_semaphore, #tpu.memory_space<semaphore_mem>> -> memref<1x1x!tpu.dma_semaphore, #tpu.memory_space<semaphore_mem>>
      %1054 = tpu.memref_squeeze %1053 : memref<1x1x!tpu.dma_semaphore, #tpu.memory_space<semaphore_mem>> -> memref<!tpu.dma_semaphore, #tpu.memory_space<semaphore_mem>>
      tpu.enqueue_dma source(%1050 : memref<4x12x128xf32, #tpu.memory_space<any>>) target(%1052 : memref<4x12x128xf32, #tpu.memory_space<vmem>>) target_semaphore(%1054 : memref<!tpu.dma_semaphore, #tpu.memory_space<semaphore_mem>>)
      %c1_i32_244 = arith.constant 1 : i32
      %c0_i32_245 = arith.constant 0 : i32
      %1055 = tpu.memref_slice %arg3[%arg0, %1048, %c0_i32_245] : memref<2x20x128xf32, #tpu.memory_space<any>> -> memref<1x12x128xf32, #tpu.memory_space<any>>
      %1056 = tpu.memref_squeeze %1055 : memref<1x12x128xf32, #tpu.memory_space<any>> -> memref<12x128xf32, #tpu.memory_space<any>>
      %c0_i32_246 = arith.constant 0 : i32
      %c0_i32_247 = arith.constant 0 : i32
      %1057 = tpu.memref_slice %arg6[%1047, %c0_i32_246, %c0_i32_247] : memref<2x12x128xf32, #tpu.memory_space<vmem>> -> memref<1x12x128xf32, #tpu.memory_space<vmem>>
      %1058 = tpu.memref_squeeze %1057 : memref<1x12x128xf32, #tpu.memory_space<vmem>> -> memref<12x128xf32, #tpu.memory_space<vmem>>
      %1059 = tpu.memref_slice %arg7[%c1_i32_244, %1047] : memref<2x2x!tpu.dma_semaphore, #tpu.memory_space<semaphore_mem>> -> memref<1x1x!tpu.dma_semaphore, #tpu.memory_space<semaphore_mem>>
      %1060 = tpu.memref_squeeze %1059 : memref<1x1x!tpu.dma_semaphore, #tpu.memory_space<semaphore_mem>> -> memref<!tpu.dma_semaphore, #tpu.memory_space<semaphore_mem>>
      tpu.enqueue_dma source(%1056 : memref<12x128xf32, #tpu.memory_space<any>>) target(%1058 : memref<12x128xf32, #tpu.memory_space<vmem>>) target_semaphore(%1060 : memref<!tpu.dma_semaphore, #tpu.memory_space<semaphore_mem>>)
    } else {
    }
    %29 = arith.index_cast %9 : i32 to index
    %c0 = arith.constant 0 : index
    %c0_20 = arith.constant 0 : index
    %c0_21 = arith.constant 0 : index
    %30 = vector.load %arg5[%29, %c0, %c0_20, %c0_21] : memref<2x4x12x128xf32, #tpu.memory_space<vmem>>, vector<1x4x12x128xf32>
    %31 = vector.shape_cast %30 : vector<1x4x12x128xf32> to vector<4x12x128xf32>
    %32 = arith.index_cast %9 : i32 to index
    %c0_22 = arith.constant 0 : index
    %c0_23 = arith.constant 0 : index
    %33 = vector.load %arg6[%32, %c0_22, %c0_23] : memref<2x12x128xf32, #tpu.memory_space<vmem>>, vector<1x12x128xf32>
    %34 = vector.shape_cast %33 : vector<1x12x128xf32> to vector<12x128xf32>
    %35 = vector.extract_strided_slice %34 {offsets = [2, 0], sizes = [8, 128], strides = [1, 1]} : vector<12x128xf32> to vector<8x128xf32>
    %36 = vector.extract_strided_slice %31 {offsets = [0, 2, 0], sizes = [1, 8, 128], strides = [1, 1, 1]} : vector<4x12x128xf32> to vector<1x8x128xf32>
    %37 = vector.shape_cast %36 : vector<1x8x128xf32> to vector<8x128xf32>
    %38 = vector.extract_strided_slice %31 {offsets = [1, 2, 0], sizes = [1, 8, 128], strides = [1, 1, 1]} : vector<4x12x128xf32> to vector<1x8x128xf32>
    %39 = vector.shape_cast %38 : vector<1x8x128xf32> to vector<8x128xf32>
    %40 = vector.extract_strided_slice %31 {offsets = [2, 2, 0], sizes = [1, 8, 128], strides = [1, 1, 1]} : vector<4x12x128xf32> to vector<1x8x128xf32>
    %41 = vector.shape_cast %40 : vector<1x8x128xf32> to vector<8x128xf32>
    %42 = vector.extract_strided_slice %31 {offsets = [3, 2, 0], sizes = [1, 8, 128], strides = [1, 1, 1]} : vector<4x12x128xf32> to vector<1x8x128xf32>
    %43 = vector.shape_cast %42 : vector<1x8x128xf32> to vector<8x128xf32>
    %cst = arith.constant 1.000000e-01 : f32
    %44 = vector.broadcast %cst : f32 to vector<8x128xf32>
    %45 = arith.mulf %35, %44 : vector<8x128xf32>
    %cst_24 = arith.constant 9.99999974E-6 : f32
    %46 = vector.broadcast %cst_24 : f32 to vector<8x128xf32>
    %47 = arith.addf %45, %46 : vector<8x128xf32>
    %cst_25 = arith.constant 0.000000e+00 : f32
    %48 = vector.broadcast %cst_25 : f32 to vector<8x128xf32>
    %cst_26 = arith.constant 0.000000e+00 : f32
    %49 = vector.broadcast %cst_26 : f32 to vector<8x128xf32>
    %cst_27 = arith.constant 1.000000e+00 : f32
    %50 = vector.broadcast %cst_27 : f32 to vector<8x128xf32>
    %cst_28 = arith.constant 1.000000e+00 : f32
    %51 = vector.broadcast %cst_28 : f32 to vector<8x128xf32>
    %c2_i32_29 = arith.constant 2 : i32
    %52 = tpu.dynamic_rotate %34 by %c2_i32_29 dim 1 : vector<12x128xf32>, i32 -> vector<12x128xf32>
    %53 = vector.extract_strided_slice %31 {offsets = [0, 0, 0], sizes = [1, 12, 128], strides = [1, 1, 1]} : vector<4x12x128xf32> to vector<1x12x128xf32>
    %54 = vector.shape_cast %53 : vector<1x12x128xf32> to vector<12x128xf32>
    %c2_i32_30 = arith.constant 2 : i32
    %55 = tpu.dynamic_rotate %54 by %c2_i32_30 dim 1 : vector<12x128xf32>, i32 -> vector<12x128xf32>
    %56 = vector.extract_strided_slice %31 {offsets = [1, 0, 0], sizes = [1, 12, 128], strides = [1, 1, 1]} : vector<4x12x128xf32> to vector<1x12x128xf32>
    %57 = vector.shape_cast %56 : vector<1x12x128xf32> to vector<12x128xf32>
    %c2_i32_31 = arith.constant 2 : i32
    %58 = tpu.dynamic_rotate %57 by %c2_i32_31 dim 1 : vector<12x128xf32>, i32 -> vector<12x128xf32>
    %59 = vector.extract_strided_slice %31 {offsets = [2, 0, 0], sizes = [1, 12, 128], strides = [1, 1, 1]} : vector<4x12x128xf32> to vector<1x12x128xf32>
    %60 = vector.shape_cast %59 : vector<1x12x128xf32> to vector<12x128xf32>
    %c2_i32_32 = arith.constant 2 : i32
    %61 = tpu.dynamic_rotate %60 by %c2_i32_32 dim 1 : vector<12x128xf32>, i32 -> vector<12x128xf32>
    %62 = vector.extract_strided_slice %31 {offsets = [3, 0, 0], sizes = [1, 12, 128], strides = [1, 1, 1]} : vector<4x12x128xf32> to vector<1x12x128xf32>
    %63 = vector.shape_cast %62 : vector<1x12x128xf32> to vector<12x128xf32>
    %c2_i32_33 = arith.constant 2 : i32
    %64 = tpu.dynamic_rotate %63 by %c2_i32_33 dim 1 : vector<12x128xf32>, i32 -> vector<12x128xf32>
    %65 = vector.extract_strided_slice %52 {offsets = [0, 0], sizes = [8, 128], strides = [1, 1]} : vector<12x128xf32> to vector<8x128xf32>
    %cst_34 = arith.constant 0.000000e+00 : f32
    %66 = vector.broadcast %cst_34 : f32 to vector<8x128xf32>
    %67 = vector.extract_strided_slice %55 {offsets = [0, 0], sizes = [8, 128], strides = [1, 1]} : vector<12x128xf32> to vector<8x128xf32>
    %68 = arith.subf %37, %67 : vector<8x128xf32>
    %69 = arith.mulf %68, %68 : vector<8x128xf32>
    %70 = arith.addf %66, %69 : vector<8x128xf32>
    %71 = vector.extract_strided_slice %58 {offsets = [0, 0], sizes = [8, 128], strides = [1, 1]} : vector<12x128xf32> to vector<8x128xf32>
    %72 = arith.subf %39, %71 : vector<8x128xf32>
    %73 = arith.mulf %72, %72 : vector<8x128xf32>
    %74 = arith.addf %70, %73 : vector<8x128xf32>
    %75 = vector.extract_strided_slice %61 {offsets = [0, 0], sizes = [8, 128], strides = [1, 1]} : vector<12x128xf32> to vector<8x128xf32>
    %76 = arith.subf %41, %75 : vector<8x128xf32>
    %77 = arith.mulf %76, %76 : vector<8x128xf32>
    %78 = arith.addf %74, %77 : vector<8x128xf32>
    %79 = vector.extract_strided_slice %64 {offsets = [0, 0], sizes = [8, 128], strides = [1, 1]} : vector<12x128xf32> to vector<8x128xf32>
    %80 = arith.subf %43, %79 : vector<8x128xf32>
    %81 = arith.mulf %80, %80 : vector<8x128xf32>
    %82 = arith.addf %78, %81 : vector<8x128xf32>
    %83 = math.sqrt %82 : vector<8x128xf32>
    %cst_35 = arith.constant 0.000000e+00 : f32
    %84 = vector.broadcast %cst_35 : f32 to vector<8x128xf32>
    %85 = arith.cmpf ogt, %65, %84 : vector<8x128xf32>
    %cst_36 = arith.constant 1.000000e+00 : f32
    %cst_37 = arith.constant 0.000000e+00 : f32
    %86 = vector.broadcast %cst_36 : f32 to vector<8x128xf32>
    %87 = vector.broadcast %cst_37 : f32 to vector<8x128xf32>
    %88 = arith.select %85, %86, %87 : vector<8x128xi1>, vector<8x128xf32>
    %cst_38 = arith.constant 0.000000e+00 : f32
    %89 = vector.broadcast %cst_38 : f32 to vector<8x128xf32>
    %90 = arith.select %85, %83, %89 : vector<8x128xi1>, vector<8x128xf32>
    %91 = arith.subf %65, %35 : vector<8x128xf32>
    %92 = math.absf %91 : vector<8x128xf32>
    %93 = arith.cmpf ole, %92, %47 : vector<8x128xf32>
    %94 = arith.addf %48, %90 : vector<8x128xf32>
    %95 = arith.addf %50, %88 : vector<8x128xf32>
    %cst_39 = arith.constant 0.000000e+00 : f32
    %96 = vector.broadcast %cst_39 : f32 to vector<8x128xf32>
    %97 = arith.select %93, %90, %96 : vector<8x128xi1>, vector<8x128xf32>
    %98 = arith.addf %49, %97 : vector<8x128xf32>
    %cst_40 = arith.constant 0.000000e+00 : f32
    %99 = vector.broadcast %cst_40 : f32 to vector<8x128xf32>
    %100 = arith.select %93, %88, %99 : vector<8x128xi1>, vector<8x128xf32>
    %101 = arith.addf %51, %100 : vector<8x128xf32>
    %102 = vector.extract_strided_slice %52 {offsets = [1, 0], sizes = [8, 128], strides = [1, 1]} : vector<12x128xf32> to vector<8x128xf32>
    %cst_41 = arith.constant 0.000000e+00 : f32
    %103 = vector.broadcast %cst_41 : f32 to vector<8x128xf32>
    %104 = vector.extract_strided_slice %55 {offsets = [1, 0], sizes = [8, 128], strides = [1, 1]} : vector<12x128xf32> to vector<8x128xf32>
    %105 = arith.subf %37, %104 : vector<8x128xf32>
    %106 = arith.mulf %105, %105 : vector<8x128xf32>
    %107 = arith.addf %103, %106 : vector<8x128xf32>
    %108 = vector.extract_strided_slice %58 {offsets = [1, 0], sizes = [8, 128], strides = [1, 1]} : vector<12x128xf32> to vector<8x128xf32>
    %109 = arith.subf %39, %108 : vector<8x128xf32>
    %110 = arith.mulf %109, %109 : vector<8x128xf32>
    %111 = arith.addf %107, %110 : vector<8x128xf32>
    %112 = vector.extract_strided_slice %61 {offsets = [1, 0], sizes = [8, 128], strides = [1, 1]} : vector<12x128xf32> to vector<8x128xf32>
    %113 = arith.subf %41, %112 : vector<8x128xf32>
    %114 = arith.mulf %113, %113 : vector<8x128xf32>
    %115 = arith.addf %111, %114 : vector<8x128xf32>
    %116 = vector.extract_strided_slice %64 {offsets = [1, 0], sizes = [8, 128], strides = [1, 1]} : vector<12x128xf32> to vector<8x128xf32>
    %117 = arith.subf %43, %116 : vector<8x128xf32>
    %118 = arith.mulf %117, %117 : vector<8x128xf32>
    %119 = arith.addf %115, %118 : vector<8x128xf32>
    %120 = math.sqrt %119 : vector<8x128xf32>
    %cst_42 = arith.constant 0.000000e+00 : f32
    %121 = vector.broadcast %cst_42 : f32 to vector<8x128xf32>
    %122 = arith.cmpf ogt, %102, %121 : vector<8x128xf32>
    %cst_43 = arith.constant 1.000000e+00 : f32
    %cst_44 = arith.constant 0.000000e+00 : f32
    %123 = vector.broadcast %cst_43 : f32 to vector<8x128xf32>
    %124 = vector.broadcast %cst_44 : f32 to vector<8x128xf32>
    %125 = arith.select %122, %123, %124 : vector<8x128xi1>, vector<8x128xf32>
    %cst_45 = arith.constant 0.000000e+00 : f32
    %126 = vector.broadcast %cst_45 : f32 to vector<8x128xf32>
    %127 = arith.select %122, %120, %126 : vector<8x128xi1>, vector<8x128xf32>
    %128 = arith.subf %102, %35 : vector<8x128xf32>
    %129 = math.absf %128 : vector<8x128xf32>
    %130 = arith.cmpf ole, %129, %47 : vector<8x128xf32>
    %131 = arith.addf %94, %127 : vector<8x128xf32>
    %132 = arith.addf %95, %125 : vector<8x128xf32>
    %cst_46 = arith.constant 0.000000e+00 : f32
    %133 = vector.broadcast %cst_46 : f32 to vector<8x128xf32>
    %134 = arith.select %130, %127, %133 : vector<8x128xi1>, vector<8x128xf32>
    %135 = arith.addf %98, %134 : vector<8x128xf32>
    %cst_47 = arith.constant 0.000000e+00 : f32
    %136 = vector.broadcast %cst_47 : f32 to vector<8x128xf32>
    %137 = arith.select %130, %125, %136 : vector<8x128xi1>, vector<8x128xf32>
    %138 = arith.addf %101, %137 : vector<8x128xf32>
    %139 = vector.extract_strided_slice %52 {offsets = [2, 0], sizes = [8, 128], strides = [1, 1]} : vector<12x128xf32> to vector<8x128xf32>
    %cst_48 = arith.constant 0.000000e+00 : f32
    %140 = vector.broadcast %cst_48 : f32 to vector<8x128xf32>
    %141 = vector.extract_strided_slice %55 {offsets = [2, 0], sizes = [8, 128], strides = [1, 1]} : vector<12x128xf32> to vector<8x128xf32>
    %142 = arith.subf %37, %141 : vector<8x128xf32>
    %143 = arith.mulf %142, %142 : vector<8x128xf32>
    %144 = arith.addf %140, %143 : vector<8x128xf32>
    %145 = vector.extract_strided_slice %58 {offsets = [2, 0], sizes = [8, 128], strides = [1, 1]} : vector<12x128xf32> to vector<8x128xf32>
    %146 = arith.subf %39, %145 : vector<8x128xf32>
    %147 = arith.mulf %146, %146 : vector<8x128xf32>
    %148 = arith.addf %144, %147 : vector<8x128xf32>
    %149 = vector.extract_strided_slice %61 {offsets = [2, 0], sizes = [8, 128], strides = [1, 1]} : vector<12x128xf32> to vector<8x128xf32>
    %150 = arith.subf %41, %149 : vector<8x128xf32>
    %151 = arith.mulf %150, %150 : vector<8x128xf32>
    %152 = arith.addf %148, %151 : vector<8x128xf32>
    %153 = vector.extract_strided_slice %64 {offsets = [2, 0], sizes = [8, 128], strides = [1, 1]} : vector<12x128xf32> to vector<8x128xf32>
    %154 = arith.subf %43, %153 : vector<8x128xf32>
    %155 = arith.mulf %154, %154 : vector<8x128xf32>
    %156 = arith.addf %152, %155 : vector<8x128xf32>
    %157 = math.sqrt %156 : vector<8x128xf32>
    %cst_49 = arith.constant 0.000000e+00 : f32
    %158 = vector.broadcast %cst_49 : f32 to vector<8x128xf32>
    %159 = arith.cmpf ogt, %139, %158 : vector<8x128xf32>
    %cst_50 = arith.constant 1.000000e+00 : f32
    %cst_51 = arith.constant 0.000000e+00 : f32
    %160 = vector.broadcast %cst_50 : f32 to vector<8x128xf32>
    %161 = vector.broadcast %cst_51 : f32 to vector<8x128xf32>
    %162 = arith.select %159, %160, %161 : vector<8x128xi1>, vector<8x128xf32>
    %cst_52 = arith.constant 0.000000e+00 : f32
    %163 = vector.broadcast %cst_52 : f32 to vector<8x128xf32>
    %164 = arith.select %159, %157, %163 : vector<8x128xi1>, vector<8x128xf32>
    %165 = arith.subf %139, %35 : vector<8x128xf32>
    %166 = math.absf %165 : vector<8x128xf32>
    %167 = arith.cmpf ole, %166, %47 : vector<8x128xf32>
    %168 = arith.addf %131, %164 : vector<8x128xf32>
    %169 = arith.addf %132, %162 : vector<8x128xf32>
    %cst_53 = arith.constant 0.000000e+00 : f32
    %170 = vector.broadcast %cst_53 : f32 to vector<8x128xf32>
    %171 = arith.select %167, %164, %170 : vector<8x128xi1>, vector<8x128xf32>
    %172 = arith.addf %135, %171 : vector<8x128xf32>
    %cst_54 = arith.constant 0.000000e+00 : f32
    %173 = vector.broadcast %cst_54 : f32 to vector<8x128xf32>
    %174 = arith.select %167, %162, %173 : vector<8x128xi1>, vector<8x128xf32>
    %175 = arith.addf %138, %174 : vector<8x128xf32>
    %176 = vector.extract_strided_slice %52 {offsets = [3, 0], sizes = [8, 128], strides = [1, 1]} : vector<12x128xf32> to vector<8x128xf32>
    %cst_55 = arith.constant 0.000000e+00 : f32
    %177 = vector.broadcast %cst_55 : f32 to vector<8x128xf32>
    %178 = vector.extract_strided_slice %55 {offsets = [3, 0], sizes = [8, 128], strides = [1, 1]} : vector<12x128xf32> to vector<8x128xf32>
    %179 = arith.subf %37, %178 : vector<8x128xf32>
    %180 = arith.mulf %179, %179 : vector<8x128xf32>
    %181 = arith.addf %177, %180 : vector<8x128xf32>
    %182 = vector.extract_strided_slice %58 {offsets = [3, 0], sizes = [8, 128], strides = [1, 1]} : vector<12x128xf32> to vector<8x128xf32>
    %183 = arith.subf %39, %182 : vector<8x128xf32>
    %184 = arith.mulf %183, %183 : vector<8x128xf32>
    %185 = arith.addf %181, %184 : vector<8x128xf32>
    %186 = vector.extract_strided_slice %61 {offsets = [3, 0], sizes = [8, 128], strides = [1, 1]} : vector<12x128xf32> to vector<8x128xf32>
    %187 = arith.subf %41, %186 : vector<8x128xf32>
    %188 = arith.mulf %187, %187 : vector<8x128xf32>
    %189 = arith.addf %185, %188 : vector<8x128xf32>
    %190 = vector.extract_strided_slice %64 {offsets = [3, 0], sizes = [8, 128], strides = [1, 1]} : vector<12x128xf32> to vector<8x128xf32>
    %191 = arith.subf %43, %190 : vector<8x128xf32>
    %192 = arith.mulf %191, %191 : vector<8x128xf32>
    %193 = arith.addf %189, %192 : vector<8x128xf32>
    %194 = math.sqrt %193 : vector<8x128xf32>
    %cst_56 = arith.constant 0.000000e+00 : f32
    %195 = vector.broadcast %cst_56 : f32 to vector<8x128xf32>
    %196 = arith.cmpf ogt, %176, %195 : vector<8x128xf32>
    %cst_57 = arith.constant 1.000000e+00 : f32
    %cst_58 = arith.constant 0.000000e+00 : f32
    %197 = vector.broadcast %cst_57 : f32 to vector<8x128xf32>
    %198 = vector.broadcast %cst_58 : f32 to vector<8x128xf32>
    %199 = arith.select %196, %197, %198 : vector<8x128xi1>, vector<8x128xf32>
    %cst_59 = arith.constant 0.000000e+00 : f32
    %200 = vector.broadcast %cst_59 : f32 to vector<8x128xf32>
    %201 = arith.select %196, %194, %200 : vector<8x128xi1>, vector<8x128xf32>
    %202 = arith.subf %176, %35 : vector<8x128xf32>
    %203 = math.absf %202 : vector<8x128xf32>
    %204 = arith.cmpf ole, %203, %47 : vector<8x128xf32>
    %205 = arith.addf %168, %201 : vector<8x128xf32>
    %206 = arith.addf %169, %199 : vector<8x128xf32>
    %cst_60 = arith.constant 0.000000e+00 : f32
    %207 = vector.broadcast %cst_60 : f32 to vector<8x128xf32>
    %208 = arith.select %204, %201, %207 : vector<8x128xi1>, vector<8x128xf32>
    %209 = arith.addf %172, %208 : vector<8x128xf32>
    %cst_61 = arith.constant 0.000000e+00 : f32
    %210 = vector.broadcast %cst_61 : f32 to vector<8x128xf32>
    %211 = arith.select %204, %199, %210 : vector<8x128xi1>, vector<8x128xf32>
    %212 = arith.addf %175, %211 : vector<8x128xf32>
    %213 = vector.extract_strided_slice %52 {offsets = [4, 0], sizes = [8, 128], strides = [1, 1]} : vector<12x128xf32> to vector<8x128xf32>
    %cst_62 = arith.constant 0.000000e+00 : f32
    %214 = vector.broadcast %cst_62 : f32 to vector<8x128xf32>
    %215 = vector.extract_strided_slice %55 {offsets = [4, 0], sizes = [8, 128], strides = [1, 1]} : vector<12x128xf32> to vector<8x128xf32>
    %216 = arith.subf %37, %215 : vector<8x128xf32>
    %217 = arith.mulf %216, %216 : vector<8x128xf32>
    %218 = arith.addf %214, %217 : vector<8x128xf32>
    %219 = vector.extract_strided_slice %58 {offsets = [4, 0], sizes = [8, 128], strides = [1, 1]} : vector<12x128xf32> to vector<8x128xf32>
    %220 = arith.subf %39, %219 : vector<8x128xf32>
    %221 = arith.mulf %220, %220 : vector<8x128xf32>
    %222 = arith.addf %218, %221 : vector<8x128xf32>
    %223 = vector.extract_strided_slice %61 {offsets = [4, 0], sizes = [8, 128], strides = [1, 1]} : vector<12x128xf32> to vector<8x128xf32>
    %224 = arith.subf %41, %223 : vector<8x128xf32>
    %225 = arith.mulf %224, %224 : vector<8x128xf32>
    %226 = arith.addf %222, %225 : vector<8x128xf32>
    %227 = vector.extract_strided_slice %64 {offsets = [4, 0], sizes = [8, 128], strides = [1, 1]} : vector<12x128xf32> to vector<8x128xf32>
    %228 = arith.subf %43, %227 : vector<8x128xf32>
    %229 = arith.mulf %228, %228 : vector<8x128xf32>
    %230 = arith.addf %226, %229 : vector<8x128xf32>
    %231 = math.sqrt %230 : vector<8x128xf32>
    %cst_63 = arith.constant 0.000000e+00 : f32
    %232 = vector.broadcast %cst_63 : f32 to vector<8x128xf32>
    %233 = arith.cmpf ogt, %213, %232 : vector<8x128xf32>
    %cst_64 = arith.constant 1.000000e+00 : f32
    %cst_65 = arith.constant 0.000000e+00 : f32
    %234 = vector.broadcast %cst_64 : f32 to vector<8x128xf32>
    %235 = vector.broadcast %cst_65 : f32 to vector<8x128xf32>
    %236 = arith.select %233, %234, %235 : vector<8x128xi1>, vector<8x128xf32>
    %cst_66 = arith.constant 0.000000e+00 : f32
    %237 = vector.broadcast %cst_66 : f32 to vector<8x128xf32>
    %238 = arith.select %233, %231, %237 : vector<8x128xi1>, vector<8x128xf32>
    %239 = arith.subf %213, %35 : vector<8x128xf32>
    %240 = math.absf %239 : vector<8x128xf32>
    %241 = arith.cmpf ole, %240, %47 : vector<8x128xf32>
    %242 = arith.addf %205, %238 : vector<8x128xf32>
    %243 = arith.addf %206, %236 : vector<8x128xf32>
    %cst_67 = arith.constant 0.000000e+00 : f32
    %244 = vector.broadcast %cst_67 : f32 to vector<8x128xf32>
    %245 = arith.select %241, %238, %244 : vector<8x128xi1>, vector<8x128xf32>
    %246 = arith.addf %209, %245 : vector<8x128xf32>
    %cst_68 = arith.constant 0.000000e+00 : f32
    %247 = vector.broadcast %cst_68 : f32 to vector<8x128xf32>
    %248 = arith.select %241, %236, %247 : vector<8x128xi1>, vector<8x128xf32>
    %249 = arith.addf %212, %248 : vector<8x128xf32>
    %c1_i32_69 = arith.constant 1 : i32
    %250 = tpu.dynamic_rotate %34 by %c1_i32_69 dim 1 : vector<12x128xf32>, i32 -> vector<12x128xf32>
    %251 = vector.extract_strided_slice %31 {offsets = [0, 0, 0], sizes = [1, 12, 128], strides = [1, 1, 1]} : vector<4x12x128xf32> to vector<1x12x128xf32>
    %252 = vector.shape_cast %251 : vector<1x12x128xf32> to vector<12x128xf32>
    %c1_i32_70 = arith.constant 1 : i32
    %253 = tpu.dynamic_rotate %252 by %c1_i32_70 dim 1 : vector<12x128xf32>, i32 -> vector<12x128xf32>
    %254 = vector.extract_strided_slice %31 {offsets = [1, 0, 0], sizes = [1, 12, 128], strides = [1, 1, 1]} : vector<4x12x128xf32> to vector<1x12x128xf32>
    %255 = vector.shape_cast %254 : vector<1x12x128xf32> to vector<12x128xf32>
    %c1_i32_71 = arith.constant 1 : i32
    %256 = tpu.dynamic_rotate %255 by %c1_i32_71 dim 1 : vector<12x128xf32>, i32 -> vector<12x128xf32>
    %257 = vector.extract_strided_slice %31 {offsets = [2, 0, 0], sizes = [1, 12, 128], strides = [1, 1, 1]} : vector<4x12x128xf32> to vector<1x12x128xf32>
    %258 = vector.shape_cast %257 : vector<1x12x128xf32> to vector<12x128xf32>
    %c1_i32_72 = arith.constant 1 : i32
    %259 = tpu.dynamic_rotate %258 by %c1_i32_72 dim 1 : vector<12x128xf32>, i32 -> vector<12x128xf32>
    %260 = vector.extract_strided_slice %31 {offsets = [3, 0, 0], sizes = [1, 12, 128], strides = [1, 1, 1]} : vector<4x12x128xf32> to vector<1x12x128xf32>
    %261 = vector.shape_cast %260 : vector<1x12x128xf32> to vector<12x128xf32>
    %c1_i32_73 = arith.constant 1 : i32
    %262 = tpu.dynamic_rotate %261 by %c1_i32_73 dim 1 : vector<12x128xf32>, i32 -> vector<12x128xf32>
    %263 = vector.extract_strided_slice %250 {offsets = [0, 0], sizes = [8, 128], strides = [1, 1]} : vector<12x128xf32> to vector<8x128xf32>
    %cst_74 = arith.constant 0.000000e+00 : f32
    %264 = vector.broadcast %cst_74 : f32 to vector<8x128xf32>
    %265 = vector.extract_strided_slice %253 {offsets = [0, 0], sizes = [8, 128], strides = [1, 1]} : vector<12x128xf32> to vector<8x128xf32>
    %266 = arith.subf %37, %265 : vector<8x128xf32>
    %267 = arith.mulf %266, %266 : vector<8x128xf32>
    %268 = arith.addf %264, %267 : vector<8x128xf32>
    %269 = vector.extract_strided_slice %256 {offsets = [0, 0], sizes = [8, 128], strides = [1, 1]} : vector<12x128xf32> to vector<8x128xf32>
    %270 = arith.subf %39, %269 : vector<8x128xf32>
    %271 = arith.mulf %270, %270 : vector<8x128xf32>
    %272 = arith.addf %268, %271 : vector<8x128xf32>
    %273 = vector.extract_strided_slice %259 {offsets = [0, 0], sizes = [8, 128], strides = [1, 1]} : vector<12x128xf32> to vector<8x128xf32>
    %274 = arith.subf %41, %273 : vector<8x128xf32>
    %275 = arith.mulf %274, %274 : vector<8x128xf32>
    %276 = arith.addf %272, %275 : vector<8x128xf32>
    %277 = vector.extract_strided_slice %262 {offsets = [0, 0], sizes = [8, 128], strides = [1, 1]} : vector<12x128xf32> to vector<8x128xf32>
    %278 = arith.subf %43, %277 : vector<8x128xf32>
    %279 = arith.mulf %278, %278 : vector<8x128xf32>
    %280 = arith.addf %276, %279 : vector<8x128xf32>
    %281 = math.sqrt %280 : vector<8x128xf32>
    %cst_75 = arith.constant 0.000000e+00 : f32
    %282 = vector.broadcast %cst_75 : f32 to vector<8x128xf32>
    %283 = arith.cmpf ogt, %263, %282 : vector<8x128xf32>
    %cst_76 = arith.constant 1.000000e+00 : f32
    %cst_77 = arith.constant 0.000000e+00 : f32
    %284 = vector.broadcast %cst_76 : f32 to vector<8x128xf32>
    %285 = vector.broadcast %cst_77 : f32 to vector<8x128xf32>
    %286 = arith.select %283, %284, %285 : vector<8x128xi1>, vector<8x128xf32>
    %cst_78 = arith.constant 0.000000e+00 : f32
    %287 = vector.broadcast %cst_78 : f32 to vector<8x128xf32>
    %288 = arith.select %283, %281, %287 : vector<8x128xi1>, vector<8x128xf32>
    %289 = arith.subf %263, %35 : vector<8x128xf32>
    %290 = math.absf %289 : vector<8x128xf32>
    %291 = arith.cmpf ole, %290, %47 : vector<8x128xf32>
    %292 = arith.addf %242, %288 : vector<8x128xf32>
    %293 = arith.addf %243, %286 : vector<8x128xf32>
    %cst_79 = arith.constant 0.000000e+00 : f32
    %294 = vector.broadcast %cst_79 : f32 to vector<8x128xf32>
    %295 = arith.select %291, %288, %294 : vector<8x128xi1>, vector<8x128xf32>
    %296 = arith.addf %246, %295 : vector<8x128xf32>
    %cst_80 = arith.constant 0.000000e+00 : f32
    %297 = vector.broadcast %cst_80 : f32 to vector<8x128xf32>
    %298 = arith.select %291, %286, %297 : vector<8x128xi1>, vector<8x128xf32>
    %299 = arith.addf %249, %298 : vector<8x128xf32>
    %300 = vector.extract_strided_slice %250 {offsets = [1, 0], sizes = [8, 128], strides = [1, 1]} : vector<12x128xf32> to vector<8x128xf32>
    %cst_81 = arith.constant 0.000000e+00 : f32
    %301 = vector.broadcast %cst_81 : f32 to vector<8x128xf32>
    %302 = vector.extract_strided_slice %253 {offsets = [1, 0], sizes = [8, 128], strides = [1, 1]} : vector<12x128xf32> to vector<8x128xf32>
    %303 = arith.subf %37, %302 : vector<8x128xf32>
    %304 = arith.mulf %303, %303 : vector<8x128xf32>
    %305 = arith.addf %301, %304 : vector<8x128xf32>
    %306 = vector.extract_strided_slice %256 {offsets = [1, 0], sizes = [8, 128], strides = [1, 1]} : vector<12x128xf32> to vector<8x128xf32>
    %307 = arith.subf %39, %306 : vector<8x128xf32>
    %308 = arith.mulf %307, %307 : vector<8x128xf32>
    %309 = arith.addf %305, %308 : vector<8x128xf32>
    %310 = vector.extract_strided_slice %259 {offsets = [1, 0], sizes = [8, 128], strides = [1, 1]} : vector<12x128xf32> to vector<8x128xf32>
    %311 = arith.subf %41, %310 : vector<8x128xf32>
    %312 = arith.mulf %311, %311 : vector<8x128xf32>
    %313 = arith.addf %309, %312 : vector<8x128xf32>
    %314 = vector.extract_strided_slice %262 {offsets = [1, 0], sizes = [8, 128], strides = [1, 1]} : vector<12x128xf32> to vector<8x128xf32>
    %315 = arith.subf %43, %314 : vector<8x128xf32>
    %316 = arith.mulf %315, %315 : vector<8x128xf32>
    %317 = arith.addf %313, %316 : vector<8x128xf32>
    %318 = math.sqrt %317 : vector<8x128xf32>
    %cst_82 = arith.constant 0.000000e+00 : f32
    %319 = vector.broadcast %cst_82 : f32 to vector<8x128xf32>
    %320 = arith.cmpf ogt, %300, %319 : vector<8x128xf32>
    %cst_83 = arith.constant 1.000000e+00 : f32
    %cst_84 = arith.constant 0.000000e+00 : f32
    %321 = vector.broadcast %cst_83 : f32 to vector<8x128xf32>
    %322 = vector.broadcast %cst_84 : f32 to vector<8x128xf32>
    %323 = arith.select %320, %321, %322 : vector<8x128xi1>, vector<8x128xf32>
    %cst_85 = arith.constant 0.000000e+00 : f32
    %324 = vector.broadcast %cst_85 : f32 to vector<8x128xf32>
    %325 = arith.select %320, %318, %324 : vector<8x128xi1>, vector<8x128xf32>
    %326 = arith.subf %300, %35 : vector<8x128xf32>
    %327 = math.absf %326 : vector<8x128xf32>
    %328 = arith.cmpf ole, %327, %47 : vector<8x128xf32>
    %329 = arith.addf %292, %325 : vector<8x128xf32>
    %330 = arith.addf %293, %323 : vector<8x128xf32>
    %cst_86 = arith.constant 0.000000e+00 : f32
    %331 = vector.broadcast %cst_86 : f32 to vector<8x128xf32>
    %332 = arith.select %328, %325, %331 : vector<8x128xi1>, vector<8x128xf32>
    %333 = arith.addf %296, %332 : vector<8x128xf32>
    %cst_87 = arith.constant 0.000000e+00 : f32
    %334 = vector.broadcast %cst_87 : f32 to vector<8x128xf32>
    %335 = arith.select %328, %323, %334 : vector<8x128xi1>, vector<8x128xf32>
    %336 = arith.addf %299, %335 : vector<8x128xf32>
    %337 = vector.extract_strided_slice %250 {offsets = [2, 0], sizes = [8, 128], strides = [1, 1]} : vector<12x128xf32> to vector<8x128xf32>
    %cst_88 = arith.constant 0.000000e+00 : f32
    %338 = vector.broadcast %cst_88 : f32 to vector<8x128xf32>
    %339 = vector.extract_strided_slice %253 {offsets = [2, 0], sizes = [8, 128], strides = [1, 1]} : vector<12x128xf32> to vector<8x128xf32>
    %340 = arith.subf %37, %339 : vector<8x128xf32>
    %341 = arith.mulf %340, %340 : vector<8x128xf32>
    %342 = arith.addf %338, %341 : vector<8x128xf32>
    %343 = vector.extract_strided_slice %256 {offsets = [2, 0], sizes = [8, 128], strides = [1, 1]} : vector<12x128xf32> to vector<8x128xf32>
    %344 = arith.subf %39, %343 : vector<8x128xf32>
    %345 = arith.mulf %344, %344 : vector<8x128xf32>
    %346 = arith.addf %342, %345 : vector<8x128xf32>
    %347 = vector.extract_strided_slice %259 {offsets = [2, 0], sizes = [8, 128], strides = [1, 1]} : vector<12x128xf32> to vector<8x128xf32>
    %348 = arith.subf %41, %347 : vector<8x128xf32>
    %349 = arith.mulf %348, %348 : vector<8x128xf32>
    %350 = arith.addf %346, %349 : vector<8x128xf32>
    %351 = vector.extract_strided_slice %262 {offsets = [2, 0], sizes = [8, 128], strides = [1, 1]} : vector<12x128xf32> to vector<8x128xf32>
    %352 = arith.subf %43, %351 : vector<8x128xf32>
    %353 = arith.mulf %352, %352 : vector<8x128xf32>
    %354 = arith.addf %350, %353 : vector<8x128xf32>
    %355 = math.sqrt %354 : vector<8x128xf32>
    %cst_89 = arith.constant 0.000000e+00 : f32
    %356 = vector.broadcast %cst_89 : f32 to vector<8x128xf32>
    %357 = arith.cmpf ogt, %337, %356 : vector<8x128xf32>
    %cst_90 = arith.constant 1.000000e+00 : f32
    %cst_91 = arith.constant 0.000000e+00 : f32
    %358 = vector.broadcast %cst_90 : f32 to vector<8x128xf32>
    %359 = vector.broadcast %cst_91 : f32 to vector<8x128xf32>
    %360 = arith.select %357, %358, %359 : vector<8x128xi1>, vector<8x128xf32>
    %cst_92 = arith.constant 0.000000e+00 : f32
    %361 = vector.broadcast %cst_92 : f32 to vector<8x128xf32>
    %362 = arith.select %357, %355, %361 : vector<8x128xi1>, vector<8x128xf32>
    %363 = arith.subf %337, %35 : vector<8x128xf32>
    %364 = math.absf %363 : vector<8x128xf32>
    %365 = arith.cmpf ole, %364, %47 : vector<8x128xf32>
    %366 = arith.addf %329, %362 : vector<8x128xf32>
    %367 = arith.addf %330, %360 : vector<8x128xf32>
    %cst_93 = arith.constant 0.000000e+00 : f32
    %368 = vector.broadcast %cst_93 : f32 to vector<8x128xf32>
    %369 = arith.select %365, %362, %368 : vector<8x128xi1>, vector<8x128xf32>
    %370 = arith.addf %333, %369 : vector<8x128xf32>
    %cst_94 = arith.constant 0.000000e+00 : f32
    %371 = vector.broadcast %cst_94 : f32 to vector<8x128xf32>
    %372 = arith.select %365, %360, %371 : vector<8x128xi1>, vector<8x128xf32>
    %373 = arith.addf %336, %372 : vector<8x128xf32>
    %374 = vector.extract_strided_slice %250 {offsets = [3, 0], sizes = [8, 128], strides = [1, 1]} : vector<12x128xf32> to vector<8x128xf32>
    %cst_95 = arith.constant 0.000000e+00 : f32
    %375 = vector.broadcast %cst_95 : f32 to vector<8x128xf32>
    %376 = vector.extract_strided_slice %253 {offsets = [3, 0], sizes = [8, 128], strides = [1, 1]} : vector<12x128xf32> to vector<8x128xf32>
    %377 = arith.subf %37, %376 : vector<8x128xf32>
    %378 = arith.mulf %377, %377 : vector<8x128xf32>
    %379 = arith.addf %375, %378 : vector<8x128xf32>
    %380 = vector.extract_strided_slice %256 {offsets = [3, 0], sizes = [8, 128], strides = [1, 1]} : vector<12x128xf32> to vector<8x128xf32>
    %381 = arith.subf %39, %380 : vector<8x128xf32>
    %382 = arith.mulf %381, %381 : vector<8x128xf32>
    %383 = arith.addf %379, %382 : vector<8x128xf32>
    %384 = vector.extract_strided_slice %259 {offsets = [3, 0], sizes = [8, 128], strides = [1, 1]} : vector<12x128xf32> to vector<8x128xf32>
    %385 = arith.subf %41, %384 : vector<8x128xf32>
    %386 = arith.mulf %385, %385 : vector<8x128xf32>
    %387 = arith.addf %383, %386 : vector<8x128xf32>
    %388 = vector.extract_strided_slice %262 {offsets = [3, 0], sizes = [8, 128], strides = [1, 1]} : vector<12x128xf32> to vector<8x128xf32>
    %389 = arith.subf %43, %388 : vector<8x128xf32>
    %390 = arith.mulf %389, %389 : vector<8x128xf32>
    %391 = arith.addf %387, %390 : vector<8x128xf32>
    %392 = math.sqrt %391 : vector<8x128xf32>
    %cst_96 = arith.constant 0.000000e+00 : f32
    %393 = vector.broadcast %cst_96 : f32 to vector<8x128xf32>
    %394 = arith.cmpf ogt, %374, %393 : vector<8x128xf32>
    %cst_97 = arith.constant 1.000000e+00 : f32
    %cst_98 = arith.constant 0.000000e+00 : f32
    %395 = vector.broadcast %cst_97 : f32 to vector<8x128xf32>
    %396 = vector.broadcast %cst_98 : f32 to vector<8x128xf32>
    %397 = arith.select %394, %395, %396 : vector<8x128xi1>, vector<8x128xf32>
    %cst_99 = arith.constant 0.000000e+00 : f32
    %398 = vector.broadcast %cst_99 : f32 to vector<8x128xf32>
    %399 = arith.select %394, %392, %398 : vector<8x128xi1>, vector<8x128xf32>
    %400 = arith.subf %374, %35 : vector<8x128xf32>
    %401 = math.absf %400 : vector<8x128xf32>
    %402 = arith.cmpf ole, %401, %47 : vector<8x128xf32>
    %403 = arith.addf %366, %399 : vector<8x128xf32>
    %404 = arith.addf %367, %397 : vector<8x128xf32>
    %cst_100 = arith.constant 0.000000e+00 : f32
    %405 = vector.broadcast %cst_100 : f32 to vector<8x128xf32>
    %406 = arith.select %402, %399, %405 : vector<8x128xi1>, vector<8x128xf32>
    %407 = arith.addf %370, %406 : vector<8x128xf32>
    %cst_101 = arith.constant 0.000000e+00 : f32
    %408 = vector.broadcast %cst_101 : f32 to vector<8x128xf32>
    %409 = arith.select %402, %397, %408 : vector<8x128xi1>, vector<8x128xf32>
    %410 = arith.addf %373, %409 : vector<8x128xf32>
    %411 = vector.extract_strided_slice %250 {offsets = [4, 0], sizes = [8, 128], strides = [1, 1]} : vector<12x128xf32> to vector<8x128xf32>
    %cst_102 = arith.constant 0.000000e+00 : f32
    %412 = vector.broadcast %cst_102 : f32 to vector<8x128xf32>
    %413 = vector.extract_strided_slice %253 {offsets = [4, 0], sizes = [8, 128], strides = [1, 1]} : vector<12x128xf32> to vector<8x128xf32>
    %414 = arith.subf %37, %413 : vector<8x128xf32>
    %415 = arith.mulf %414, %414 : vector<8x128xf32>
    %416 = arith.addf %412, %415 : vector<8x128xf32>
    %417 = vector.extract_strided_slice %256 {offsets = [4, 0], sizes = [8, 128], strides = [1, 1]} : vector<12x128xf32> to vector<8x128xf32>
    %418 = arith.subf %39, %417 : vector<8x128xf32>
    %419 = arith.mulf %418, %418 : vector<8x128xf32>
    %420 = arith.addf %416, %419 : vector<8x128xf32>
    %421 = vector.extract_strided_slice %259 {offsets = [4, 0], sizes = [8, 128], strides = [1, 1]} : vector<12x128xf32> to vector<8x128xf32>
    %422 = arith.subf %41, %421 : vector<8x128xf32>
    %423 = arith.mulf %422, %422 : vector<8x128xf32>
    %424 = arith.addf %420, %423 : vector<8x128xf32>
    %425 = vector.extract_strided_slice %262 {offsets = [4, 0], sizes = [8, 128], strides = [1, 1]} : vector<12x128xf32> to vector<8x128xf32>
    %426 = arith.subf %43, %425 : vector<8x128xf32>
    %427 = arith.mulf %426, %426 : vector<8x128xf32>
    %428 = arith.addf %424, %427 : vector<8x128xf32>
    %429 = math.sqrt %428 : vector<8x128xf32>
    %cst_103 = arith.constant 0.000000e+00 : f32
    %430 = vector.broadcast %cst_103 : f32 to vector<8x128xf32>
    %431 = arith.cmpf ogt, %411, %430 : vector<8x128xf32>
    %cst_104 = arith.constant 1.000000e+00 : f32
    %cst_105 = arith.constant 0.000000e+00 : f32
    %432 = vector.broadcast %cst_104 : f32 to vector<8x128xf32>
    %433 = vector.broadcast %cst_105 : f32 to vector<8x128xf32>
    %434 = arith.select %431, %432, %433 : vector<8x128xi1>, vector<8x128xf32>
    %cst_106 = arith.constant 0.000000e+00 : f32
    %435 = vector.broadcast %cst_106 : f32 to vector<8x128xf32>
    %436 = arith.select %431, %429, %435 : vector<8x128xi1>, vector<8x128xf32>
    %437 = arith.subf %411, %35 : vector<8x128xf32>
    %438 = math.absf %437 : vector<8x128xf32>
    %439 = arith.cmpf ole, %438, %47 : vector<8x128xf32>
    %440 = arith.addf %403, %436 : vector<8x128xf32>
    %441 = arith.addf %404, %434 : vector<8x128xf32>
    %cst_107 = arith.constant 0.000000e+00 : f32
    %442 = vector.broadcast %cst_107 : f32 to vector<8x128xf32>
    %443 = arith.select %439, %436, %442 : vector<8x128xi1>, vector<8x128xf32>
    %444 = arith.addf %407, %443 : vector<8x128xf32>
    %cst_108 = arith.constant 0.000000e+00 : f32
    %445 = vector.broadcast %cst_108 : f32 to vector<8x128xf32>
    %446 = arith.select %439, %434, %445 : vector<8x128xi1>, vector<8x128xf32>
    %447 = arith.addf %410, %446 : vector<8x128xf32>
    %448 = vector.extract_strided_slice %31 {offsets = [0, 0, 0], sizes = [1, 12, 128], strides = [1, 1, 1]} : vector<4x12x128xf32> to vector<1x12x128xf32>
    %449 = vector.shape_cast %448 : vector<1x12x128xf32> to vector<12x128xf32>
    %450 = vector.extract_strided_slice %31 {offsets = [1, 0, 0], sizes = [1, 12, 128], strides = [1, 1, 1]} : vector<4x12x128xf32> to vector<1x12x128xf32>
    %451 = vector.shape_cast %450 : vector<1x12x128xf32> to vector<12x128xf32>
    %452 = vector.extract_strided_slice %31 {offsets = [2, 0, 0], sizes = [1, 12, 128], strides = [1, 1, 1]} : vector<4x12x128xf32> to vector<1x12x128xf32>
    %453 = vector.shape_cast %452 : vector<1x12x128xf32> to vector<12x128xf32>
    %454 = vector.extract_strided_slice %31 {offsets = [3, 0, 0], sizes = [1, 12, 128], strides = [1, 1, 1]} : vector<4x12x128xf32> to vector<1x12x128xf32>
    %455 = vector.shape_cast %454 : vector<1x12x128xf32> to vector<12x128xf32>
    %456 = vector.extract_strided_slice %34 {offsets = [0, 0], sizes = [8, 128], strides = [1, 1]} : vector<12x128xf32> to vector<8x128xf32>
    %cst_109 = arith.constant 0.000000e+00 : f32
    %457 = vector.broadcast %cst_109 : f32 to vector<8x128xf32>
    %458 = vector.extract_strided_slice %449 {offsets = [0, 0], sizes = [8, 128], strides = [1, 1]} : vector<12x128xf32> to vector<8x128xf32>
    %459 = arith.subf %37, %458 : vector<8x128xf32>
    %460 = arith.mulf %459, %459 : vector<8x128xf32>
    %461 = arith.addf %457, %460 : vector<8x128xf32>
    %462 = vector.extract_strided_slice %451 {offsets = [0, 0], sizes = [8, 128], strides = [1, 1]} : vector<12x128xf32> to vector<8x128xf32>
    %463 = arith.subf %39, %462 : vector<8x128xf32>
    %464 = arith.mulf %463, %463 : vector<8x128xf32>
    %465 = arith.addf %461, %464 : vector<8x128xf32>
    %466 = vector.extract_strided_slice %453 {offsets = [0, 0], sizes = [8, 128], strides = [1, 1]} : vector<12x128xf32> to vector<8x128xf32>
    %467 = arith.subf %41, %466 : vector<8x128xf32>
    %468 = arith.mulf %467, %467 : vector<8x128xf32>
    %469 = arith.addf %465, %468 : vector<8x128xf32>
    %470 = vector.extract_strided_slice %455 {offsets = [0, 0], sizes = [8, 128], strides = [1, 1]} : vector<12x128xf32> to vector<8x128xf32>
    %471 = arith.subf %43, %470 : vector<8x128xf32>
    %472 = arith.mulf %471, %471 : vector<8x128xf32>
    %473 = arith.addf %469, %472 : vector<8x128xf32>
    %474 = math.sqrt %473 : vector<8x128xf32>
    %cst_110 = arith.constant 0.000000e+00 : f32
    %475 = vector.broadcast %cst_110 : f32 to vector<8x128xf32>
    %476 = arith.cmpf ogt, %456, %475 : vector<8x128xf32>
    %cst_111 = arith.constant 1.000000e+00 : f32
    %cst_112 = arith.constant 0.000000e+00 : f32
    %477 = vector.broadcast %cst_111 : f32 to vector<8x128xf32>
    %478 = vector.broadcast %cst_112 : f32 to vector<8x128xf32>
    %479 = arith.select %476, %477, %478 : vector<8x128xi1>, vector<8x128xf32>
    %cst_113 = arith.constant 0.000000e+00 : f32
    %480 = vector.broadcast %cst_113 : f32 to vector<8x128xf32>
    %481 = arith.select %476, %474, %480 : vector<8x128xi1>, vector<8x128xf32>
    %482 = arith.subf %456, %35 : vector<8x128xf32>
    %483 = math.absf %482 : vector<8x128xf32>
    %484 = arith.cmpf ole, %483, %47 : vector<8x128xf32>
    %485 = arith.addf %440, %481 : vector<8x128xf32>
    %486 = arith.addf %441, %479 : vector<8x128xf32>
    %cst_114 = arith.constant 0.000000e+00 : f32
    %487 = vector.broadcast %cst_114 : f32 to vector<8x128xf32>
    %488 = arith.select %484, %481, %487 : vector<8x128xi1>, vector<8x128xf32>
    %489 = arith.addf %444, %488 : vector<8x128xf32>
    %cst_115 = arith.constant 0.000000e+00 : f32
    %490 = vector.broadcast %cst_115 : f32 to vector<8x128xf32>
    %491 = arith.select %484, %479, %490 : vector<8x128xi1>, vector<8x128xf32>
    %492 = arith.addf %447, %491 : vector<8x128xf32>
    %493 = vector.extract_strided_slice %34 {offsets = [1, 0], sizes = [8, 128], strides = [1, 1]} : vector<12x128xf32> to vector<8x128xf32>
    %cst_116 = arith.constant 0.000000e+00 : f32
    %494 = vector.broadcast %cst_116 : f32 to vector<8x128xf32>
    %495 = vector.extract_strided_slice %449 {offsets = [1, 0], sizes = [8, 128], strides = [1, 1]} : vector<12x128xf32> to vector<8x128xf32>
    %496 = arith.subf %37, %495 : vector<8x128xf32>
    %497 = arith.mulf %496, %496 : vector<8x128xf32>
    %498 = arith.addf %494, %497 : vector<8x128xf32>
    %499 = vector.extract_strided_slice %451 {offsets = [1, 0], sizes = [8, 128], strides = [1, 1]} : vector<12x128xf32> to vector<8x128xf32>
    %500 = arith.subf %39, %499 : vector<8x128xf32>
    %501 = arith.mulf %500, %500 : vector<8x128xf32>
    %502 = arith.addf %498, %501 : vector<8x128xf32>
    %503 = vector.extract_strided_slice %453 {offsets = [1, 0], sizes = [8, 128], strides = [1, 1]} : vector<12x128xf32> to vector<8x128xf32>
    %504 = arith.subf %41, %503 : vector<8x128xf32>
    %505 = arith.mulf %504, %504 : vector<8x128xf32>
    %506 = arith.addf %502, %505 : vector<8x128xf32>
    %507 = vector.extract_strided_slice %455 {offsets = [1, 0], sizes = [8, 128], strides = [1, 1]} : vector<12x128xf32> to vector<8x128xf32>
    %508 = arith.subf %43, %507 : vector<8x128xf32>
    %509 = arith.mulf %508, %508 : vector<8x128xf32>
    %510 = arith.addf %506, %509 : vector<8x128xf32>
    %511 = math.sqrt %510 : vector<8x128xf32>
    %cst_117 = arith.constant 0.000000e+00 : f32
    %512 = vector.broadcast %cst_117 : f32 to vector<8x128xf32>
    %513 = arith.cmpf ogt, %493, %512 : vector<8x128xf32>
    %cst_118 = arith.constant 1.000000e+00 : f32
    %cst_119 = arith.constant 0.000000e+00 : f32
    %514 = vector.broadcast %cst_118 : f32 to vector<8x128xf32>
    %515 = vector.broadcast %cst_119 : f32 to vector<8x128xf32>
    %516 = arith.select %513, %514, %515 : vector<8x128xi1>, vector<8x128xf32>
    %cst_120 = arith.constant 0.000000e+00 : f32
    %517 = vector.broadcast %cst_120 : f32 to vector<8x128xf32>
    %518 = arith.select %513, %511, %517 : vector<8x128xi1>, vector<8x128xf32>
    %519 = arith.subf %493, %35 : vector<8x128xf32>
    %520 = math.absf %519 : vector<8x128xf32>
    %521 = arith.cmpf ole, %520, %47 : vector<8x128xf32>
    %522 = arith.addf %485, %518 : vector<8x128xf32>
    %523 = arith.addf %486, %516 : vector<8x128xf32>
    %cst_121 = arith.constant 0.000000e+00 : f32
    %524 = vector.broadcast %cst_121 : f32 to vector<8x128xf32>
    %525 = arith.select %521, %518, %524 : vector<8x128xi1>, vector<8x128xf32>
    %526 = arith.addf %489, %525 : vector<8x128xf32>
    %cst_122 = arith.constant 0.000000e+00 : f32
    %527 = vector.broadcast %cst_122 : f32 to vector<8x128xf32>
    %528 = arith.select %521, %516, %527 : vector<8x128xi1>, vector<8x128xf32>
    %529 = arith.addf %492, %528 : vector<8x128xf32>
    %530 = vector.extract_strided_slice %34 {offsets = [3, 0], sizes = [8, 128], strides = [1, 1]} : vector<12x128xf32> to vector<8x128xf32>
    %cst_123 = arith.constant 0.000000e+00 : f32
    %531 = vector.broadcast %cst_123 : f32 to vector<8x128xf32>
    %532 = vector.extract_strided_slice %449 {offsets = [3, 0], sizes = [8, 128], strides = [1, 1]} : vector<12x128xf32> to vector<8x128xf32>
    %533 = arith.subf %37, %532 : vector<8x128xf32>
    %534 = arith.mulf %533, %533 : vector<8x128xf32>
    %535 = arith.addf %531, %534 : vector<8x128xf32>
    %536 = vector.extract_strided_slice %451 {offsets = [3, 0], sizes = [8, 128], strides = [1, 1]} : vector<12x128xf32> to vector<8x128xf32>
    %537 = arith.subf %39, %536 : vector<8x128xf32>
    %538 = arith.mulf %537, %537 : vector<8x128xf32>
    %539 = arith.addf %535, %538 : vector<8x128xf32>
    %540 = vector.extract_strided_slice %453 {offsets = [3, 0], sizes = [8, 128], strides = [1, 1]} : vector<12x128xf32> to vector<8x128xf32>
    %541 = arith.subf %41, %540 : vector<8x128xf32>
    %542 = arith.mulf %541, %541 : vector<8x128xf32>
    %543 = arith.addf %539, %542 : vector<8x128xf32>
    %544 = vector.extract_strided_slice %455 {offsets = [3, 0], sizes = [8, 128], strides = [1, 1]} : vector<12x128xf32> to vector<8x128xf32>
    %545 = arith.subf %43, %544 : vector<8x128xf32>
    %546 = arith.mulf %545, %545 : vector<8x128xf32>
    %547 = arith.addf %543, %546 : vector<8x128xf32>
    %548 = math.sqrt %547 : vector<8x128xf32>
    %cst_124 = arith.constant 0.000000e+00 : f32
    %549 = vector.broadcast %cst_124 : f32 to vector<8x128xf32>
    %550 = arith.cmpf ogt, %530, %549 : vector<8x128xf32>
    %cst_125 = arith.constant 1.000000e+00 : f32
    %cst_126 = arith.constant 0.000000e+00 : f32
    %551 = vector.broadcast %cst_125 : f32 to vector<8x128xf32>
    %552 = vector.broadcast %cst_126 : f32 to vector<8x128xf32>
    %553 = arith.select %550, %551, %552 : vector<8x128xi1>, vector<8x128xf32>
    %cst_127 = arith.constant 0.000000e+00 : f32
    %554 = vector.broadcast %cst_127 : f32 to vector<8x128xf32>
    %555 = arith.select %550, %548, %554 : vector<8x128xi1>, vector<8x128xf32>
    %556 = arith.subf %530, %35 : vector<8x128xf32>
    %557 = math.absf %556 : vector<8x128xf32>
    %558 = arith.cmpf ole, %557, %47 : vector<8x128xf32>
    %559 = arith.addf %522, %555 : vector<8x128xf32>
    %560 = arith.addf %523, %553 : vector<8x128xf32>
    %cst_128 = arith.constant 0.000000e+00 : f32
    %561 = vector.broadcast %cst_128 : f32 to vector<8x128xf32>
    %562 = arith.select %558, %555, %561 : vector<8x128xi1>, vector<8x128xf32>
    %563 = arith.addf %526, %562 : vector<8x128xf32>
    %cst_129 = arith.constant 0.000000e+00 : f32
    %564 = vector.broadcast %cst_129 : f32 to vector<8x128xf32>
    %565 = arith.select %558, %553, %564 : vector<8x128xi1>, vector<8x128xf32>
    %566 = arith.addf %529, %565 : vector<8x128xf32>
    %567 = vector.extract_strided_slice %34 {offsets = [4, 0], sizes = [8, 128], strides = [1, 1]} : vector<12x128xf32> to vector<8x128xf32>
    %cst_130 = arith.constant 0.000000e+00 : f32
    %568 = vector.broadcast %cst_130 : f32 to vector<8x128xf32>
    %569 = vector.extract_strided_slice %449 {offsets = [4, 0], sizes = [8, 128], strides = [1, 1]} : vector<12x128xf32> to vector<8x128xf32>
    %570 = arith.subf %37, %569 : vector<8x128xf32>
    %571 = arith.mulf %570, %570 : vector<8x128xf32>
    %572 = arith.addf %568, %571 : vector<8x128xf32>
    %573 = vector.extract_strided_slice %451 {offsets = [4, 0], sizes = [8, 128], strides = [1, 1]} : vector<12x128xf32> to vector<8x128xf32>
    %574 = arith.subf %39, %573 : vector<8x128xf32>
    %575 = arith.mulf %574, %574 : vector<8x128xf32>
    %576 = arith.addf %572, %575 : vector<8x128xf32>
    %577 = vector.extract_strided_slice %453 {offsets = [4, 0], sizes = [8, 128], strides = [1, 1]} : vector<12x128xf32> to vector<8x128xf32>
    %578 = arith.subf %41, %577 : vector<8x128xf32>
    %579 = arith.mulf %578, %578 : vector<8x128xf32>
    %580 = arith.addf %576, %579 : vector<8x128xf32>
    %581 = vector.extract_strided_slice %455 {offsets = [4, 0], sizes = [8, 128], strides = [1, 1]} : vector<12x128xf32> to vector<8x128xf32>
    %582 = arith.subf %43, %581 : vector<8x128xf32>
    %583 = arith.mulf %582, %582 : vector<8x128xf32>
    %584 = arith.addf %580, %583 : vector<8x128xf32>
    %585 = math.sqrt %584 : vector<8x128xf32>
    %cst_131 = arith.constant 0.000000e+00 : f32
    %586 = vector.broadcast %cst_131 : f32 to vector<8x128xf32>
    %587 = arith.cmpf ogt, %567, %586 : vector<8x128xf32>
    %cst_132 = arith.constant 1.000000e+00 : f32
    %cst_133 = arith.constant 0.000000e+00 : f32
    %588 = vector.broadcast %cst_132 : f32 to vector<8x128xf32>
    %589 = vector.broadcast %cst_133 : f32 to vector<8x128xf32>
    %590 = arith.select %587, %588, %589 : vector<8x128xi1>, vector<8x128xf32>
    %cst_134 = arith.constant 0.000000e+00 : f32
    %591 = vector.broadcast %cst_134 : f32 to vector<8x128xf32>
    %592 = arith.select %587, %585, %591 : vector<8x128xi1>, vector<8x128xf32>
    %593 = arith.subf %567, %35 : vector<8x128xf32>
    %594 = math.absf %593 : vector<8x128xf32>
    %595 = arith.cmpf ole, %594, %47 : vector<8x128xf32>
    %596 = arith.addf %559, %592 : vector<8x128xf32>
    %597 = arith.addf %560, %590 : vector<8x128xf32>
    %cst_135 = arith.constant 0.000000e+00 : f32
    %598 = vector.broadcast %cst_135 : f32 to vector<8x128xf32>
    %599 = arith.select %595, %592, %598 : vector<8x128xi1>, vector<8x128xf32>
    %600 = arith.addf %563, %599 : vector<8x128xf32>
    %cst_136 = arith.constant 0.000000e+00 : f32
    %601 = vector.broadcast %cst_136 : f32 to vector<8x128xf32>
    %602 = arith.select %595, %590, %601 : vector<8x128xi1>, vector<8x128xf32>
    %603 = arith.addf %566, %602 : vector<8x128xf32>
    %c127_i32 = arith.constant 127 : i32
    %604 = tpu.dynamic_rotate %34 by %c127_i32 dim 1 : vector<12x128xf32>, i32 -> vector<12x128xf32>
    %605 = vector.extract_strided_slice %31 {offsets = [0, 0, 0], sizes = [1, 12, 128], strides = [1, 1, 1]} : vector<4x12x128xf32> to vector<1x12x128xf32>
    %606 = vector.shape_cast %605 : vector<1x12x128xf32> to vector<12x128xf32>
    %c127_i32_137 = arith.constant 127 : i32
    %607 = tpu.dynamic_rotate %606 by %c127_i32_137 dim 1 : vector<12x128xf32>, i32 -> vector<12x128xf32>
    %608 = vector.extract_strided_slice %31 {offsets = [1, 0, 0], sizes = [1, 12, 128], strides = [1, 1, 1]} : vector<4x12x128xf32> to vector<1x12x128xf32>
    %609 = vector.shape_cast %608 : vector<1x12x128xf32> to vector<12x128xf32>
    %c127_i32_138 = arith.constant 127 : i32
    %610 = tpu.dynamic_rotate %609 by %c127_i32_138 dim 1 : vector<12x128xf32>, i32 -> vector<12x128xf32>
    %611 = vector.extract_strided_slice %31 {offsets = [2, 0, 0], sizes = [1, 12, 128], strides = [1, 1, 1]} : vector<4x12x128xf32> to vector<1x12x128xf32>
    %612 = vector.shape_cast %611 : vector<1x12x128xf32> to vector<12x128xf32>
    %c127_i32_139 = arith.constant 127 : i32
    %613 = tpu.dynamic_rotate %612 by %c127_i32_139 dim 1 : vector<12x128xf32>, i32 -> vector<12x128xf32>
    %614 = vector.extract_strided_slice %31 {offsets = [3, 0, 0], sizes = [1, 12, 128], strides = [1, 1, 1]} : vector<4x12x128xf32> to vector<1x12x128xf32>
    %615 = vector.shape_cast %614 : vector<1x12x128xf32> to vector<12x128xf32>
    %c127_i32_140 = arith.constant 127 : i32
    %616 = tpu.dynamic_rotate %615 by %c127_i32_140 dim 1 : vector<12x128xf32>, i32 -> vector<12x128xf32>
    %617 = vector.extract_strided_slice %604 {offsets = [0, 0], sizes = [8, 128], strides = [1, 1]} : vector<12x128xf32> to vector<8x128xf32>
    %cst_141 = arith.constant 0.000000e+00 : f32
    %618 = vector.broadcast %cst_141 : f32 to vector<8x128xf32>
    %619 = vector.extract_strided_slice %607 {offsets = [0, 0], sizes = [8, 128], strides = [1, 1]} : vector<12x128xf32> to vector<8x128xf32>
    %620 = arith.subf %37, %619 : vector<8x128xf32>
    %621 = arith.mulf %620, %620 : vector<8x128xf32>
    %622 = arith.addf %618, %621 : vector<8x128xf32>
    %623 = vector.extract_strided_slice %610 {offsets = [0, 0], sizes = [8, 128], strides = [1, 1]} : vector<12x128xf32> to vector<8x128xf32>
    %624 = arith.subf %39, %623 : vector<8x128xf32>
    %625 = arith.mulf %624, %624 : vector<8x128xf32>
    %626 = arith.addf %622, %625 : vector<8x128xf32>
    %627 = vector.extract_strided_slice %613 {offsets = [0, 0], sizes = [8, 128], strides = [1, 1]} : vector<12x128xf32> to vector<8x128xf32>
    %628 = arith.subf %41, %627 : vector<8x128xf32>
    %629 = arith.mulf %628, %628 : vector<8x128xf32>
    %630 = arith.addf %626, %629 : vector<8x128xf32>
    %631 = vector.extract_strided_slice %616 {offsets = [0, 0], sizes = [8, 128], strides = [1, 1]} : vector<12x128xf32> to vector<8x128xf32>
    %632 = arith.subf %43, %631 : vector<8x128xf32>
    %633 = arith.mulf %632, %632 : vector<8x128xf32>
    %634 = arith.addf %630, %633 : vector<8x128xf32>
    %635 = math.sqrt %634 : vector<8x128xf32>
    %cst_142 = arith.constant 0.000000e+00 : f32
    %636 = vector.broadcast %cst_142 : f32 to vector<8x128xf32>
    %637 = arith.cmpf ogt, %617, %636 : vector<8x128xf32>
    %cst_143 = arith.constant 1.000000e+00 : f32
    %cst_144 = arith.constant 0.000000e+00 : f32
    %638 = vector.broadcast %cst_143 : f32 to vector<8x128xf32>
    %639 = vector.broadcast %cst_144 : f32 to vector<8x128xf32>
    %640 = arith.select %637, %638, %639 : vector<8x128xi1>, vector<8x128xf32>
    %cst_145 = arith.constant 0.000000e+00 : f32
    %641 = vector.broadcast %cst_145 : f32 to vector<8x128xf32>
    %642 = arith.select %637, %635, %641 : vector<8x128xi1>, vector<8x128xf32>
    %643 = arith.subf %617, %35 : vector<8x128xf32>
    %644 = math.absf %643 : vector<8x128xf32>
    %645 = arith.cmpf ole, %644, %47 : vector<8x128xf32>
    %646 = arith.addf %596, %642 : vector<8x128xf32>
    %647 = arith.addf %597, %640 : vector<8x128xf32>
    %cst_146 = arith.constant 0.000000e+00 : f32
    %648 = vector.broadcast %cst_146 : f32 to vector<8x128xf32>
    %649 = arith.select %645, %642, %648 : vector<8x128xi1>, vector<8x128xf32>
    %650 = arith.addf %600, %649 : vector<8x128xf32>
    %cst_147 = arith.constant 0.000000e+00 : f32
    %651 = vector.broadcast %cst_147 : f32 to vector<8x128xf32>
    %652 = arith.select %645, %640, %651 : vector<8x128xi1>, vector<8x128xf32>
    %653 = arith.addf %603, %652 : vector<8x128xf32>
    %654 = vector.extract_strided_slice %604 {offsets = [1, 0], sizes = [8, 128], strides = [1, 1]} : vector<12x128xf32> to vector<8x128xf32>
    %cst_148 = arith.constant 0.000000e+00 : f32
    %655 = vector.broadcast %cst_148 : f32 to vector<8x128xf32>
    %656 = vector.extract_strided_slice %607 {offsets = [1, 0], sizes = [8, 128], strides = [1, 1]} : vector<12x128xf32> to vector<8x128xf32>
    %657 = arith.subf %37, %656 : vector<8x128xf32>
    %658 = arith.mulf %657, %657 : vector<8x128xf32>
    %659 = arith.addf %655, %658 : vector<8x128xf32>
    %660 = vector.extract_strided_slice %610 {offsets = [1, 0], sizes = [8, 128], strides = [1, 1]} : vector<12x128xf32> to vector<8x128xf32>
    %661 = arith.subf %39, %660 : vector<8x128xf32>
    %662 = arith.mulf %661, %661 : vector<8x128xf32>
    %663 = arith.addf %659, %662 : vector<8x128xf32>
    %664 = vector.extract_strided_slice %613 {offsets = [1, 0], sizes = [8, 128], strides = [1, 1]} : vector<12x128xf32> to vector<8x128xf32>
    %665 = arith.subf %41, %664 : vector<8x128xf32>
    %666 = arith.mulf %665, %665 : vector<8x128xf32>
    %667 = arith.addf %663, %666 : vector<8x128xf32>
    %668 = vector.extract_strided_slice %616 {offsets = [1, 0], sizes = [8, 128], strides = [1, 1]} : vector<12x128xf32> to vector<8x128xf32>
    %669 = arith.subf %43, %668 : vector<8x128xf32>
    %670 = arith.mulf %669, %669 : vector<8x128xf32>
    %671 = arith.addf %667, %670 : vector<8x128xf32>
    %672 = math.sqrt %671 : vector<8x128xf32>
    %cst_149 = arith.constant 0.000000e+00 : f32
    %673 = vector.broadcast %cst_149 : f32 to vector<8x128xf32>
    %674 = arith.cmpf ogt, %654, %673 : vector<8x128xf32>
    %cst_150 = arith.constant 1.000000e+00 : f32
    %cst_151 = arith.constant 0.000000e+00 : f32
    %675 = vector.broadcast %cst_150 : f32 to vector<8x128xf32>
    %676 = vector.broadcast %cst_151 : f32 to vector<8x128xf32>
    %677 = arith.select %674, %675, %676 : vector<8x128xi1>, vector<8x128xf32>
    %cst_152 = arith.constant 0.000000e+00 : f32
    %678 = vector.broadcast %cst_152 : f32 to vector<8x128xf32>
    %679 = arith.select %674, %672, %678 : vector<8x128xi1>, vector<8x128xf32>
    %680 = arith.subf %654, %35 : vector<8x128xf32>
    %681 = math.absf %680 : vector<8x128xf32>
    %682 = arith.cmpf ole, %681, %47 : vector<8x128xf32>
    %683 = arith.addf %646, %679 : vector<8x128xf32>
    %684 = arith.addf %647, %677 : vector<8x128xf32>
    %cst_153 = arith.constant 0.000000e+00 : f32
    %685 = vector.broadcast %cst_153 : f32 to vector<8x128xf32>
    %686 = arith.select %682, %679, %685 : vector<8x128xi1>, vector<8x128xf32>
    %687 = arith.addf %650, %686 : vector<8x128xf32>
    %cst_154 = arith.constant 0.000000e+00 : f32
    %688 = vector.broadcast %cst_154 : f32 to vector<8x128xf32>
    %689 = arith.select %682, %677, %688 : vector<8x128xi1>, vector<8x128xf32>
    %690 = arith.addf %653, %689 : vector<8x128xf32>
    %691 = vector.extract_strided_slice %604 {offsets = [2, 0], sizes = [8, 128], strides = [1, 1]} : vector<12x128xf32> to vector<8x128xf32>
    %cst_155 = arith.constant 0.000000e+00 : f32
    %692 = vector.broadcast %cst_155 : f32 to vector<8x128xf32>
    %693 = vector.extract_strided_slice %607 {offsets = [2, 0], sizes = [8, 128], strides = [1, 1]} : vector<12x128xf32> to vector<8x128xf32>
    %694 = arith.subf %37, %693 : vector<8x128xf32>
    %695 = arith.mulf %694, %694 : vector<8x128xf32>
    %696 = arith.addf %692, %695 : vector<8x128xf32>
    %697 = vector.extract_strided_slice %610 {offsets = [2, 0], sizes = [8, 128], strides = [1, 1]} : vector<12x128xf32> to vector<8x128xf32>
    %698 = arith.subf %39, %697 : vector<8x128xf32>
    %699 = arith.mulf %698, %698 : vector<8x128xf32>
    %700 = arith.addf %696, %699 : vector<8x128xf32>
    %701 = vector.extract_strided_slice %613 {offsets = [2, 0], sizes = [8, 128], strides = [1, 1]} : vector<12x128xf32> to vector<8x128xf32>
    %702 = arith.subf %41, %701 : vector<8x128xf32>
    %703 = arith.mulf %702, %702 : vector<8x128xf32>
    %704 = arith.addf %700, %703 : vector<8x128xf32>
    %705 = vector.extract_strided_slice %616 {offsets = [2, 0], sizes = [8, 128], strides = [1, 1]} : vector<12x128xf32> to vector<8x128xf32>
    %706 = arith.subf %43, %705 : vector<8x128xf32>
    %707 = arith.mulf %706, %706 : vector<8x128xf32>
    %708 = arith.addf %704, %707 : vector<8x128xf32>
    %709 = math.sqrt %708 : vector<8x128xf32>
    %cst_156 = arith.constant 0.000000e+00 : f32
    %710 = vector.broadcast %cst_156 : f32 to vector<8x128xf32>
    %711 = arith.cmpf ogt, %691, %710 : vector<8x128xf32>
    %cst_157 = arith.constant 1.000000e+00 : f32
    %cst_158 = arith.constant 0.000000e+00 : f32
    %712 = vector.broadcast %cst_157 : f32 to vector<8x128xf32>
    %713 = vector.broadcast %cst_158 : f32 to vector<8x128xf32>
    %714 = arith.select %711, %712, %713 : vector<8x128xi1>, vector<8x128xf32>
    %cst_159 = arith.constant 0.000000e+00 : f32
    %715 = vector.broadcast %cst_159 : f32 to vector<8x128xf32>
    %716 = arith.select %711, %709, %715 : vector<8x128xi1>, vector<8x128xf32>
    %717 = arith.subf %691, %35 : vector<8x128xf32>
    %718 = math.absf %717 : vector<8x128xf32>
    %719 = arith.cmpf ole, %718, %47 : vector<8x128xf32>
    %720 = arith.addf %683, %716 : vector<8x128xf32>
    %721 = arith.addf %684, %714 : vector<8x128xf32>
    %cst_160 = arith.constant 0.000000e+00 : f32
    %722 = vector.broadcast %cst_160 : f32 to vector<8x128xf32>
    %723 = arith.select %719, %716, %722 : vector<8x128xi1>, vector<8x128xf32>
    %724 = arith.addf %687, %723 : vector<8x128xf32>
    %cst_161 = arith.constant 0.000000e+00 : f32
    %725 = vector.broadcast %cst_161 : f32 to vector<8x128xf32>
    %726 = arith.select %719, %714, %725 : vector<8x128xi1>, vector<8x128xf32>
    %727 = arith.addf %690, %726 : vector<8x128xf32>
    %728 = vector.extract_strided_slice %604 {offsets = [3, 0], sizes = [8, 128], strides = [1, 1]} : vector<12x128xf32> to vector<8x128xf32>
    %cst_162 = arith.constant 0.000000e+00 : f32
    %729 = vector.broadcast %cst_162 : f32 to vector<8x128xf32>
    %730 = vector.extract_strided_slice %607 {offsets = [3, 0], sizes = [8, 128], strides = [1, 1]} : vector<12x128xf32> to vector<8x128xf32>
    %731 = arith.subf %37, %730 : vector<8x128xf32>
    %732 = arith.mulf %731, %731 : vector<8x128xf32>
    %733 = arith.addf %729, %732 : vector<8x128xf32>
    %734 = vector.extract_strided_slice %610 {offsets = [3, 0], sizes = [8, 128], strides = [1, 1]} : vector<12x128xf32> to vector<8x128xf32>
    %735 = arith.subf %39, %734 : vector<8x128xf32>
    %736 = arith.mulf %735, %735 : vector<8x128xf32>
    %737 = arith.addf %733, %736 : vector<8x128xf32>
    %738 = vector.extract_strided_slice %613 {offsets = [3, 0], sizes = [8, 128], strides = [1, 1]} : vector<12x128xf32> to vector<8x128xf32>
    %739 = arith.subf %41, %738 : vector<8x128xf32>
    %740 = arith.mulf %739, %739 : vector<8x128xf32>
    %741 = arith.addf %737, %740 : vector<8x128xf32>
    %742 = vector.extract_strided_slice %616 {offsets = [3, 0], sizes = [8, 128], strides = [1, 1]} : vector<12x128xf32> to vector<8x128xf32>
    %743 = arith.subf %43, %742 : vector<8x128xf32>
    %744 = arith.mulf %743, %743 : vector<8x128xf32>
    %745 = arith.addf %741, %744 : vector<8x128xf32>
    %746 = math.sqrt %745 : vector<8x128xf32>
    %cst_163 = arith.constant 0.000000e+00 : f32
    %747 = vector.broadcast %cst_163 : f32 to vector<8x128xf32>
    %748 = arith.cmpf ogt, %728, %747 : vector<8x128xf32>
    %cst_164 = arith.constant 1.000000e+00 : f32
    %cst_165 = arith.constant 0.000000e+00 : f32
    %749 = vector.broadcast %cst_164 : f32 to vector<8x128xf32>
    %750 = vector.broadcast %cst_165 : f32 to vector<8x128xf32>
    %751 = arith.select %748, %749, %750 : vector<8x128xi1>, vector<8x128xf32>
    %cst_166 = arith.constant 0.000000e+00 : f32
    %752 = vector.broadcast %cst_166 : f32 to vector<8x128xf32>
    %753 = arith.select %748, %746, %752 : vector<8x128xi1>, vector<8x128xf32>
    %754 = arith.subf %728, %35 : vector<8x128xf32>
    %755 = math.absf %754 : vector<8x128xf32>
    %756 = arith.cmpf ole, %755, %47 : vector<8x128xf32>
    %757 = arith.addf %720, %753 : vector<8x128xf32>
    %758 = arith.addf %721, %751 : vector<8x128xf32>
    %cst_167 = arith.constant 0.000000e+00 : f32
    %759 = vector.broadcast %cst_167 : f32 to vector<8x128xf32>
    %760 = arith.select %756, %753, %759 : vector<8x128xi1>, vector<8x128xf32>
    %761 = arith.addf %724, %760 : vector<8x128xf32>
    %cst_168 = arith.constant 0.000000e+00 : f32
    %762 = vector.broadcast %cst_168 : f32 to vector<8x128xf32>
    %763 = arith.select %756, %751, %762 : vector<8x128xi1>, vector<8x128xf32>
    %764 = arith.addf %727, %763 : vector<8x128xf32>
    %765 = vector.extract_strided_slice %604 {offsets = [4, 0], sizes = [8, 128], strides = [1, 1]} : vector<12x128xf32> to vector<8x128xf32>
    %cst_169 = arith.constant 0.000000e+00 : f32
    %766 = vector.broadcast %cst_169 : f32 to vector<8x128xf32>
    %767 = vector.extract_strided_slice %607 {offsets = [4, 0], sizes = [8, 128], strides = [1, 1]} : vector<12x128xf32> to vector<8x128xf32>
    %768 = arith.subf %37, %767 : vector<8x128xf32>
    %769 = arith.mulf %768, %768 : vector<8x128xf32>
    %770 = arith.addf %766, %769 : vector<8x128xf32>
    %771 = vector.extract_strided_slice %610 {offsets = [4, 0], sizes = [8, 128], strides = [1, 1]} : vector<12x128xf32> to vector<8x128xf32>
    %772 = arith.subf %39, %771 : vector<8x128xf32>
    %773 = arith.mulf %772, %772 : vector<8x128xf32>
    %774 = arith.addf %770, %773 : vector<8x128xf32>
    %775 = vector.extract_strided_slice %613 {offsets = [4, 0], sizes = [8, 128], strides = [1, 1]} : vector<12x128xf32> to vector<8x128xf32>
    %776 = arith.subf %41, %775 : vector<8x128xf32>
    %777 = arith.mulf %776, %776 : vector<8x128xf32>
    %778 = arith.addf %774, %777 : vector<8x128xf32>
    %779 = vector.extract_strided_slice %616 {offsets = [4, 0], sizes = [8, 128], strides = [1, 1]} : vector<12x128xf32> to vector<8x128xf32>
    %780 = arith.subf %43, %779 : vector<8x128xf32>
    %781 = arith.mulf %780, %780 : vector<8x128xf32>
    %782 = arith.addf %778, %781 : vector<8x128xf32>
    %783 = math.sqrt %782 : vector<8x128xf32>
    %cst_170 = arith.constant 0.000000e+00 : f32
    %784 = vector.broadcast %cst_170 : f32 to vector<8x128xf32>
    %785 = arith.cmpf ogt, %765, %784 : vector<8x128xf32>
    %cst_171 = arith.constant 1.000000e+00 : f32
    %cst_172 = arith.constant 0.000000e+00 : f32
    %786 = vector.broadcast %cst_171 : f32 to vector<8x128xf32>
    %787 = vector.broadcast %cst_172 : f32 to vector<8x128xf32>
    %788 = arith.select %785, %786, %787 : vector<8x128xi1>, vector<8x128xf32>
    %cst_173 = arith.constant 0.000000e+00 : f32
    %789 = vector.broadcast %cst_173 : f32 to vector<8x128xf32>
    %790 = arith.select %785, %783, %789 : vector<8x128xi1>, vector<8x128xf32>
    %791 = arith.subf %765, %35 : vector<8x128xf32>
    %792 = math.absf %791 : vector<8x128xf32>
    %793 = arith.cmpf ole, %792, %47 : vector<8x128xf32>
    %794 = arith.addf %757, %790 : vector<8x128xf32>
    %795 = arith.addf %758, %788 : vector<8x128xf32>
    %cst_174 = arith.constant 0.000000e+00 : f32
    %796 = vector.broadcast %cst_174 : f32 to vector<8x128xf32>
    %797 = arith.select %793, %790, %796 : vector<8x128xi1>, vector<8x128xf32>
    %798 = arith.addf %761, %797 : vector<8x128xf32>
    %cst_175 = arith.constant 0.000000e+00 : f32
    %799 = vector.broadcast %cst_175 : f32 to vector<8x128xf32>
    %800 = arith.select %793, %788, %799 : vector<8x128xi1>, vector<8x128xf32>
    %801 = arith.addf %764, %800 : vector<8x128xf32>
    %c126_i32 = arith.constant 126 : i32
    %802 = tpu.dynamic_rotate %34 by %c126_i32 dim 1 : vector<12x128xf32>, i32 -> vector<12x128xf32>
    %803 = vector.extract_strided_slice %31 {offsets = [0, 0, 0], sizes = [1, 12, 128], strides = [1, 1, 1]} : vector<4x12x128xf32> to vector<1x12x128xf32>
    %804 = vector.shape_cast %803 : vector<1x12x128xf32> to vector<12x128xf32>
    %c126_i32_176 = arith.constant 126 : i32
    %805 = tpu.dynamic_rotate %804 by %c126_i32_176 dim 1 : vector<12x128xf32>, i32 -> vector<12x128xf32>
    %806 = vector.extract_strided_slice %31 {offsets = [1, 0, 0], sizes = [1, 12, 128], strides = [1, 1, 1]} : vector<4x12x128xf32> to vector<1x12x128xf32>
    %807 = vector.shape_cast %806 : vector<1x12x128xf32> to vector<12x128xf32>
    %c126_i32_177 = arith.constant 126 : i32
    %808 = tpu.dynamic_rotate %807 by %c126_i32_177 dim 1 : vector<12x128xf32>, i32 -> vector<12x128xf32>
    %809 = vector.extract_strided_slice %31 {offsets = [2, 0, 0], sizes = [1, 12, 128], strides = [1, 1, 1]} : vector<4x12x128xf32> to vector<1x12x128xf32>
    %810 = vector.shape_cast %809 : vector<1x12x128xf32> to vector<12x128xf32>
    %c126_i32_178 = arith.constant 126 : i32
    %811 = tpu.dynamic_rotate %810 by %c126_i32_178 dim 1 : vector<12x128xf32>, i32 -> vector<12x128xf32>
    %812 = vector.extract_strided_slice %31 {offsets = [3, 0, 0], sizes = [1, 12, 128], strides = [1, 1, 1]} : vector<4x12x128xf32> to vector<1x12x128xf32>
    %813 = vector.shape_cast %812 : vector<1x12x128xf32> to vector<12x128xf32>
    %c126_i32_179 = arith.constant 126 : i32
    %814 = tpu.dynamic_rotate %813 by %c126_i32_179 dim 1 : vector<12x128xf32>, i32 -> vector<12x128xf32>
    %815 = vector.extract_strided_slice %802 {offsets = [0, 0], sizes = [8, 128], strides = [1, 1]} : vector<12x128xf32> to vector<8x128xf32>
    %cst_180 = arith.constant 0.000000e+00 : f32
    %816 = vector.broadcast %cst_180 : f32 to vector<8x128xf32>
    %817 = vector.extract_strided_slice %805 {offsets = [0, 0], sizes = [8, 128], strides = [1, 1]} : vector<12x128xf32> to vector<8x128xf32>
    %818 = arith.subf %37, %817 : vector<8x128xf32>
    %819 = arith.mulf %818, %818 : vector<8x128xf32>
    %820 = arith.addf %816, %819 : vector<8x128xf32>
    %821 = vector.extract_strided_slice %808 {offsets = [0, 0], sizes = [8, 128], strides = [1, 1]} : vector<12x128xf32> to vector<8x128xf32>
    %822 = arith.subf %39, %821 : vector<8x128xf32>
    %823 = arith.mulf %822, %822 : vector<8x128xf32>
    %824 = arith.addf %820, %823 : vector<8x128xf32>
    %825 = vector.extract_strided_slice %811 {offsets = [0, 0], sizes = [8, 128], strides = [1, 1]} : vector<12x128xf32> to vector<8x128xf32>
    %826 = arith.subf %41, %825 : vector<8x128xf32>
    %827 = arith.mulf %826, %826 : vector<8x128xf32>
    %828 = arith.addf %824, %827 : vector<8x128xf32>
    %829 = vector.extract_strided_slice %814 {offsets = [0, 0], sizes = [8, 128], strides = [1, 1]} : vector<12x128xf32> to vector<8x128xf32>
    %830 = arith.subf %43, %829 : vector<8x128xf32>
    %831 = arith.mulf %830, %830 : vector<8x128xf32>
    %832 = arith.addf %828, %831 : vector<8x128xf32>
    %833 = math.sqrt %832 : vector<8x128xf32>
    %cst_181 = arith.constant 0.000000e+00 : f32
    %834 = vector.broadcast %cst_181 : f32 to vector<8x128xf32>
    %835 = arith.cmpf ogt, %815, %834 : vector<8x128xf32>
    %cst_182 = arith.constant 1.000000e+00 : f32
    %cst_183 = arith.constant 0.000000e+00 : f32
    %836 = vector.broadcast %cst_182 : f32 to vector<8x128xf32>
    %837 = vector.broadcast %cst_183 : f32 to vector<8x128xf32>
    %838 = arith.select %835, %836, %837 : vector<8x128xi1>, vector<8x128xf32>
    %cst_184 = arith.constant 0.000000e+00 : f32
    %839 = vector.broadcast %cst_184 : f32 to vector<8x128xf32>
    %840 = arith.select %835, %833, %839 : vector<8x128xi1>, vector<8x128xf32>
    %841 = arith.subf %815, %35 : vector<8x128xf32>
    %842 = math.absf %841 : vector<8x128xf32>
    %843 = arith.cmpf ole, %842, %47 : vector<8x128xf32>
    %844 = arith.addf %794, %840 : vector<8x128xf32>
    %845 = arith.addf %795, %838 : vector<8x128xf32>
    %cst_185 = arith.constant 0.000000e+00 : f32
    %846 = vector.broadcast %cst_185 : f32 to vector<8x128xf32>
    %847 = arith.select %843, %840, %846 : vector<8x128xi1>, vector<8x128xf32>
    %848 = arith.addf %798, %847 : vector<8x128xf32>
    %cst_186 = arith.constant 0.000000e+00 : f32
    %849 = vector.broadcast %cst_186 : f32 to vector<8x128xf32>
    %850 = arith.select %843, %838, %849 : vector<8x128xi1>, vector<8x128xf32>
    %851 = arith.addf %801, %850 : vector<8x128xf32>
    %852 = vector.extract_strided_slice %802 {offsets = [1, 0], sizes = [8, 128], strides = [1, 1]} : vector<12x128xf32> to vector<8x128xf32>
    %cst_187 = arith.constant 0.000000e+00 : f32
    %853 = vector.broadcast %cst_187 : f32 to vector<8x128xf32>
    %854 = vector.extract_strided_slice %805 {offsets = [1, 0], sizes = [8, 128], strides = [1, 1]} : vector<12x128xf32> to vector<8x128xf32>
    %855 = arith.subf %37, %854 : vector<8x128xf32>
    %856 = arith.mulf %855, %855 : vector<8x128xf32>
    %857 = arith.addf %853, %856 : vector<8x128xf32>
    %858 = vector.extract_strided_slice %808 {offsets = [1, 0], sizes = [8, 128], strides = [1, 1]} : vector<12x128xf32> to vector<8x128xf32>
    %859 = arith.subf %39, %858 : vector<8x128xf32>
    %860 = arith.mulf %859, %859 : vector<8x128xf32>
    %861 = arith.addf %857, %860 : vector<8x128xf32>
    %862 = vector.extract_strided_slice %811 {offsets = [1, 0], sizes = [8, 128], strides = [1, 1]} : vector<12x128xf32> to vector<8x128xf32>
    %863 = arith.subf %41, %862 : vector<8x128xf32>
    %864 = arith.mulf %863, %863 : vector<8x128xf32>
    %865 = arith.addf %861, %864 : vector<8x128xf32>
    %866 = vector.extract_strided_slice %814 {offsets = [1, 0], sizes = [8, 128], strides = [1, 1]} : vector<12x128xf32> to vector<8x128xf32>
    %867 = arith.subf %43, %866 : vector<8x128xf32>
    %868 = arith.mulf %867, %867 : vector<8x128xf32>
    %869 = arith.addf %865, %868 : vector<8x128xf32>
    %870 = math.sqrt %869 : vector<8x128xf32>
    %cst_188 = arith.constant 0.000000e+00 : f32
    %871 = vector.broadcast %cst_188 : f32 to vector<8x128xf32>
    %872 = arith.cmpf ogt, %852, %871 : vector<8x128xf32>
    %cst_189 = arith.constant 1.000000e+00 : f32
    %cst_190 = arith.constant 0.000000e+00 : f32
    %873 = vector.broadcast %cst_189 : f32 to vector<8x128xf32>
    %874 = vector.broadcast %cst_190 : f32 to vector<8x128xf32>
    %875 = arith.select %872, %873, %874 : vector<8x128xi1>, vector<8x128xf32>
    %cst_191 = arith.constant 0.000000e+00 : f32
    %876 = vector.broadcast %cst_191 : f32 to vector<8x128xf32>
    %877 = arith.select %872, %870, %876 : vector<8x128xi1>, vector<8x128xf32>
    %878 = arith.subf %852, %35 : vector<8x128xf32>
    %879 = math.absf %878 : vector<8x128xf32>
    %880 = arith.cmpf ole, %879, %47 : vector<8x128xf32>
    %881 = arith.addf %844, %877 : vector<8x128xf32>
    %882 = arith.addf %845, %875 : vector<8x128xf32>
    %cst_192 = arith.constant 0.000000e+00 : f32
    %883 = vector.broadcast %cst_192 : f32 to vector<8x128xf32>
    %884 = arith.select %880, %877, %883 : vector<8x128xi1>, vector<8x128xf32>
    %885 = arith.addf %848, %884 : vector<8x128xf32>
    %cst_193 = arith.constant 0.000000e+00 : f32
    %886 = vector.broadcast %cst_193 : f32 to vector<8x128xf32>
    %887 = arith.select %880, %875, %886 : vector<8x128xi1>, vector<8x128xf32>
    %888 = arith.addf %851, %887 : vector<8x128xf32>
    %889 = vector.extract_strided_slice %802 {offsets = [2, 0], sizes = [8, 128], strides = [1, 1]} : vector<12x128xf32> to vector<8x128xf32>
    %cst_194 = arith.constant 0.000000e+00 : f32
    %890 = vector.broadcast %cst_194 : f32 to vector<8x128xf32>
    %891 = vector.extract_strided_slice %805 {offsets = [2, 0], sizes = [8, 128], strides = [1, 1]} : vector<12x128xf32> to vector<8x128xf32>
    %892 = arith.subf %37, %891 : vector<8x128xf32>
    %893 = arith.mulf %892, %892 : vector<8x128xf32>
    %894 = arith.addf %890, %893 : vector<8x128xf32>
    %895 = vector.extract_strided_slice %808 {offsets = [2, 0], sizes = [8, 128], strides = [1, 1]} : vector<12x128xf32> to vector<8x128xf32>
    %896 = arith.subf %39, %895 : vector<8x128xf32>
    %897 = arith.mulf %896, %896 : vector<8x128xf32>
    %898 = arith.addf %894, %897 : vector<8x128xf32>
    %899 = vector.extract_strided_slice %811 {offsets = [2, 0], sizes = [8, 128], strides = [1, 1]} : vector<12x128xf32> to vector<8x128xf32>
    %900 = arith.subf %41, %899 : vector<8x128xf32>
    %901 = arith.mulf %900, %900 : vector<8x128xf32>
    %902 = arith.addf %898, %901 : vector<8x128xf32>
    %903 = vector.extract_strided_slice %814 {offsets = [2, 0], sizes = [8, 128], strides = [1, 1]} : vector<12x128xf32> to vector<8x128xf32>
    %904 = arith.subf %43, %903 : vector<8x128xf32>
    %905 = arith.mulf %904, %904 : vector<8x128xf32>
    %906 = arith.addf %902, %905 : vector<8x128xf32>
    %907 = math.sqrt %906 : vector<8x128xf32>
    %cst_195 = arith.constant 0.000000e+00 : f32
    %908 = vector.broadcast %cst_195 : f32 to vector<8x128xf32>
    %909 = arith.cmpf ogt, %889, %908 : vector<8x128xf32>
    %cst_196 = arith.constant 1.000000e+00 : f32
    %cst_197 = arith.constant 0.000000e+00 : f32
    %910 = vector.broadcast %cst_196 : f32 to vector<8x128xf32>
    %911 = vector.broadcast %cst_197 : f32 to vector<8x128xf32>
    %912 = arith.select %909, %910, %911 : vector<8x128xi1>, vector<8x128xf32>
    %cst_198 = arith.constant 0.000000e+00 : f32
    %913 = vector.broadcast %cst_198 : f32 to vector<8x128xf32>
    %914 = arith.select %909, %907, %913 : vector<8x128xi1>, vector<8x128xf32>
    %915 = arith.subf %889, %35 : vector<8x128xf32>
    %916 = math.absf %915 : vector<8x128xf32>
    %917 = arith.cmpf ole, %916, %47 : vector<8x128xf32>
    %918 = arith.addf %881, %914 : vector<8x128xf32>
    %919 = arith.addf %882, %912 : vector<8x128xf32>
    %cst_199 = arith.constant 0.000000e+00 : f32
    %920 = vector.broadcast %cst_199 : f32 to vector<8x128xf32>
    %921 = arith.select %917, %914, %920 : vector<8x128xi1>, vector<8x128xf32>
    %922 = arith.addf %885, %921 : vector<8x128xf32>
    %cst_200 = arith.constant 0.000000e+00 : f32
    %923 = vector.broadcast %cst_200 : f32 to vector<8x128xf32>
    %924 = arith.select %917, %912, %923 : vector<8x128xi1>, vector<8x128xf32>
    %925 = arith.addf %888, %924 : vector<8x128xf32>
    %926 = vector.extract_strided_slice %802 {offsets = [3, 0], sizes = [8, 128], strides = [1, 1]} : vector<12x128xf32> to vector<8x128xf32>
    %cst_201 = arith.constant 0.000000e+00 : f32
    %927 = vector.broadcast %cst_201 : f32 to vector<8x128xf32>
    %928 = vector.extract_strided_slice %805 {offsets = [3, 0], sizes = [8, 128], strides = [1, 1]} : vector<12x128xf32> to vector<8x128xf32>
    %929 = arith.subf %37, %928 : vector<8x128xf32>
    %930 = arith.mulf %929, %929 : vector<8x128xf32>
    %931 = arith.addf %927, %930 : vector<8x128xf32>
    %932 = vector.extract_strided_slice %808 {offsets = [3, 0], sizes = [8, 128], strides = [1, 1]} : vector<12x128xf32> to vector<8x128xf32>
    %933 = arith.subf %39, %932 : vector<8x128xf32>
    %934 = arith.mulf %933, %933 : vector<8x128xf32>
    %935 = arith.addf %931, %934 : vector<8x128xf32>
    %936 = vector.extract_strided_slice %811 {offsets = [3, 0], sizes = [8, 128], strides = [1, 1]} : vector<12x128xf32> to vector<8x128xf32>
    %937 = arith.subf %41, %936 : vector<8x128xf32>
    %938 = arith.mulf %937, %937 : vector<8x128xf32>
    %939 = arith.addf %935, %938 : vector<8x128xf32>
    %940 = vector.extract_strided_slice %814 {offsets = [3, 0], sizes = [8, 128], strides = [1, 1]} : vector<12x128xf32> to vector<8x128xf32>
    %941 = arith.subf %43, %940 : vector<8x128xf32>
    %942 = arith.mulf %941, %941 : vector<8x128xf32>
    %943 = arith.addf %939, %942 : vector<8x128xf32>
    %944 = math.sqrt %943 : vector<8x128xf32>
    %cst_202 = arith.constant 0.000000e+00 : f32
    %945 = vector.broadcast %cst_202 : f32 to vector<8x128xf32>
    %946 = arith.cmpf ogt, %926, %945 : vector<8x128xf32>
    %cst_203 = arith.constant 1.000000e+00 : f32
    %cst_204 = arith.constant 0.000000e+00 : f32
    %947 = vector.broadcast %cst_203 : f32 to vector<8x128xf32>
    %948 = vector.broadcast %cst_204 : f32 to vector<8x128xf32>
    %949 = arith.select %946, %947, %948 : vector<8x128xi1>, vector<8x128xf32>
    %cst_205 = arith.constant 0.000000e+00 : f32
    %950 = vector.broadcast %cst_205 : f32 to vector<8x128xf32>
    %951 = arith.select %946, %944, %950 : vector<8x128xi1>, vector<8x128xf32>
    %952 = arith.subf %926, %35 : vector<8x128xf32>
    %953 = math.absf %952 : vector<8x128xf32>
    %954 = arith.cmpf ole, %953, %47 : vector<8x128xf32>
    %955 = arith.addf %918, %951 : vector<8x128xf32>
    %956 = arith.addf %919, %949 : vector<8x128xf32>
    %cst_206 = arith.constant 0.000000e+00 : f32
    %957 = vector.broadcast %cst_206 : f32 to vector<8x128xf32>
    %958 = arith.select %954, %951, %957 : vector<8x128xi1>, vector<8x128xf32>
    %959 = arith.addf %922, %958 : vector<8x128xf32>
    %cst_207 = arith.constant 0.000000e+00 : f32
    %960 = vector.broadcast %cst_207 : f32 to vector<8x128xf32>
    %961 = arith.select %954, %949, %960 : vector<8x128xi1>, vector<8x128xf32>
    %962 = arith.addf %925, %961 : vector<8x128xf32>
    %963 = vector.extract_strided_slice %802 {offsets = [4, 0], sizes = [8, 128], strides = [1, 1]} : vector<12x128xf32> to vector<8x128xf32>
    %cst_208 = arith.constant 0.000000e+00 : f32
    %964 = vector.broadcast %cst_208 : f32 to vector<8x128xf32>
    %965 = vector.extract_strided_slice %805 {offsets = [4, 0], sizes = [8, 128], strides = [1, 1]} : vector<12x128xf32> to vector<8x128xf32>
    %966 = arith.subf %37, %965 : vector<8x128xf32>
    %967 = arith.mulf %966, %966 : vector<8x128xf32>
    %968 = arith.addf %964, %967 : vector<8x128xf32>
    %969 = vector.extract_strided_slice %808 {offsets = [4, 0], sizes = [8, 128], strides = [1, 1]} : vector<12x128xf32> to vector<8x128xf32>
    %970 = arith.subf %39, %969 : vector<8x128xf32>
    %971 = arith.mulf %970, %970 : vector<8x128xf32>
    %972 = arith.addf %968, %971 : vector<8x128xf32>
    %973 = vector.extract_strided_slice %811 {offsets = [4, 0], sizes = [8, 128], strides = [1, 1]} : vector<12x128xf32> to vector<8x128xf32>
    %974 = arith.subf %41, %973 : vector<8x128xf32>
    %975 = arith.mulf %974, %974 : vector<8x128xf32>
    %976 = arith.addf %972, %975 : vector<8x128xf32>
    %977 = vector.extract_strided_slice %814 {offsets = [4, 0], sizes = [8, 128], strides = [1, 1]} : vector<12x128xf32> to vector<8x128xf32>
    %978 = arith.subf %43, %977 : vector<8x128xf32>
    %979 = arith.mulf %978, %978 : vector<8x128xf32>
    %980 = arith.addf %976, %979 : vector<8x128xf32>
    %981 = math.sqrt %980 : vector<8x128xf32>
    %cst_209 = arith.constant 0.000000e+00 : f32
    %982 = vector.broadcast %cst_209 : f32 to vector<8x128xf32>
    %983 = arith.cmpf ogt, %963, %982 : vector<8x128xf32>
    %cst_210 = arith.constant 1.000000e+00 : f32
    %cst_211 = arith.constant 0.000000e+00 : f32
    %984 = vector.broadcast %cst_210 : f32 to vector<8x128xf32>
    %985 = vector.broadcast %cst_211 : f32 to vector<8x128xf32>
    %986 = arith.select %983, %984, %985 : vector<8x128xi1>, vector<8x128xf32>
    %cst_212 = arith.constant 0.000000e+00 : f32
    %987 = vector.broadcast %cst_212 : f32 to vector<8x128xf32>
    %988 = arith.select %983, %981, %987 : vector<8x128xi1>, vector<8x128xf32>
    %989 = arith.subf %963, %35 : vector<8x128xf32>
    %990 = math.absf %989 : vector<8x128xf32>
    %991 = arith.cmpf ole, %990, %47 : vector<8x128xf32>
    %992 = arith.addf %955, %988 : vector<8x128xf32>
    %993 = arith.addf %956, %986 : vector<8x128xf32>
    %cst_213 = arith.constant 0.000000e+00 : f32
    %994 = vector.broadcast %cst_213 : f32 to vector<8x128xf32>
    %995 = arith.select %991, %988, %994 : vector<8x128xi1>, vector<8x128xf32>
    %996 = arith.addf %959, %995 : vector<8x128xf32>
    %cst_214 = arith.constant 0.000000e+00 : f32
    %997 = vector.broadcast %cst_214 : f32 to vector<8x128xf32>
    %998 = arith.select %991, %986, %997 : vector<8x128xi1>, vector<8x128xf32>
    %999 = arith.addf %962, %998 : vector<8x128xf32>
    %1000 = arith.subf %993, %999 : vector<8x128xf32>
    %1001 = arith.subf %992, %996 : vector<8x128xf32>
    %cst_215 = arith.constant 1.000000e+00 : f32
    %1002 = vector.broadcast %cst_215 : f32 to vector<8x128xf32>
    %1003 = arith.maximumf %999, %1002 : vector<8x128xf32>
    %1004 = arith.divf %996, %1003 : vector<8x128xf32>
    %cst_216 = arith.constant 1.000000e+00 : f32
    %1005 = vector.broadcast %cst_216 : f32 to vector<8x128xf32>
    %1006 = arith.maximumf %1000, %1005 : vector<8x128xf32>
    %1007 = arith.divf %1001, %1006 : vector<8x128xf32>
    %1008 = arith.subf %1004, %1007 : vector<8x128xf32>
    %cst_217 = arith.constant 3.300000e-01 : f32
    %1009 = vector.broadcast %cst_217 : f32 to vector<8x128xf32>
    %1010 = arith.addf %1008, %1009 : vector<8x128xf32>
    %cst_218 = arith.constant 0.000000e+00 : f32
    %1011 = vector.broadcast %cst_218 : f32 to vector<8x128xf32>
    %1012 = arith.maximumf %1010, %1011 : vector<8x128xf32>
    %cst_219 = arith.constant 2.000000e+00 : f32
    %1013 = vector.broadcast %cst_219 : f32 to vector<8x128xf32>
    %1014 = arith.cmpf ogt, %1000, %1013 : vector<8x128xf32>
    %cst_220 = arith.constant 0.000000e+00 : f32
    %1015 = vector.broadcast %cst_220 : f32 to vector<8x128xf32>
    %1016 = arith.cmpf ogt, %35, %1015 : vector<8x128xf32>
    %1017 = arith.andi %1014, %1016 : vector<8x128xi1>
    %cst_221 = arith.constant 0.000000e+00 : f32
    %1018 = vector.broadcast %cst_221 : f32 to vector<8x128xf32>
    %1019 = arith.select %1017, %1012, %1018 : vector<8x128xi1>, vector<8x128xf32>
    %cst_222 = arith.constant dense<0.000000e+00> : vector<8xf32>
    %1020 = vector.multi_reduction <add>, %1019, %cst_222 [1] : vector<8x128xf32> to vector<8xf32>
    %1021 = vector.shape_cast %1020 : vector<8xf32> to vector<8x1xf32>
    %cst_223 = arith.constant dense<0.000000e+00> : vector<1xf32>
    %1022 = vector.multi_reduction <add>, %1021, %cst_223 [0] : vector<8x1xf32> to vector<1xf32>
    %1023 = vector.shape_cast %1022 : vector<1xf32> to vector<1x1xf32>
    %cst_224 = arith.constant 1.000000e+00 : f32
    %cst_225 = arith.constant 0.000000e+00 : f32
    %1024 = vector.broadcast %cst_224 : f32 to vector<8x128xf32>
    %1025 = vector.broadcast %cst_225 : f32 to vector<8x128xf32>
    %1026 = arith.select %1017, %1024, %1025 : vector<8x128xi1>, vector<8x128xf32>
    %cst_226 = arith.constant dense<0.000000e+00> : vector<8xf32>
    %1027 = vector.multi_reduction <add>, %1026, %cst_226 [1] : vector<8x128xf32> to vector<8xf32>
    %1028 = vector.shape_cast %1027 : vector<8xf32> to vector<8x1xf32>
    %cst_227 = arith.constant dense<0.000000e+00> : vector<1xf32>
    %1029 = vector.multi_reduction <add>, %1028, %cst_227 [0] : vector<8x1xf32> to vector<1xf32>
    %1030 = vector.shape_cast %1029 : vector<1xf32> to vector<1x1xf32>
    %1031 = tpu.iota {dimensions = array<i32: 0>} : vector<8x128xi32>
    %c4_i32 = arith.constant 4 : i32
    %1032 = vector.broadcast %c4_i32 : i32 to vector<8x128xi32>
    %1033 = arith.cmpi slt, %1031, %1032 : vector<8x128xi32>
    %1034 = vector.shape_cast %1023 : vector<1x1xf32> to vector<1x1xf32>
    %1035 = vector.broadcast %1034 : vector<1x1xf32> to vector<8x128xf32>
    %1036 = vector.shape_cast %1030 : vector<1x1xf32> to vector<1x1xf32>
    %1037 = vector.broadcast %1036 : vector<1x1xf32> to vector<8x128xf32>
    %1038 = arith.select %1033, %1035, %1037 : vector<8x128xi1>, vector<8x128xf32>
    %c0_i32_228 = arith.constant 0 : i32
    %1039 = arith.cmpi eq, %arg1, %c0_i32_228 : i32
    %1040 = arith.extui %1039 : i1 to i32
    %c0_i32_229 = arith.constant 0 : i32
    %1041 = arith.cmpi ne, %1040, %c0_i32_229 : i32
    scf.if %1041 {
      %cst_236 = arith.constant 0.000000e+00 : f32
      %1046 = vector.broadcast %cst_236 : f32 to vector<1x8x128xf32>
      %c0_237 = arith.constant 0 : index
      %c0_238 = arith.constant 0 : index
      %c0_239 = arith.constant 0 : index
      %1047 = vector.load %arg4[%c0_237, %c0_238, %c0_239] : memref<1x8x128xf32, #tpu.memory_space<vmem>>, vector<1x8x128xf32>
      tpu.vector_store %arg4[%c0_237, %c0_238, %c0_239], %1046 {strides = array<i32>} : memref<1x8x128xf32, #tpu.memory_space<vmem>>, vector<1x8x128xf32>,
    } else {
    }
    %c0_230 = arith.constant 0 : index
    %c0_231 = arith.constant 0 : index
    %c0_232 = arith.constant 0 : index
    %1042 = vector.load %arg4[%c0_230, %c0_231, %c0_232] : memref<1x8x128xf32, #tpu.memory_space<vmem>>, vector<1x8x128xf32>
    %1043 = vector.shape_cast %1038 : vector<8x128xf32> to vector<1x8x128xf32>
    %1044 = arith.addf %1042, %1043 : vector<1x8x128xf32>
    %c0_233 = arith.constant 0 : index
    %c0_234 = arith.constant 0 : index
    %c0_235 = arith.constant 0 : index
    %1045 = vector.load %arg4[%c0_233, %c0_234, %c0_235] : memref<1x8x128xf32, #tpu.memory_space<vmem>>, vector<1x8x128xf32>
    tpu.vector_store %arg4[%c0_233, %c0_234, %c0_235], %1044 {strides = array<i32>} : memref<1x8x128xf32, #tpu.memory_space<vmem>>, vector<1x8x128xf32>,
    return
  }
  func.func @transform_2(%arg0: i32, %arg1: i32) -> (i32, i32, i32) {
    %c0_i32 = arith.constant 0 : i32
    %c0_i32_0 = arith.constant 0 : i32
    %c0_i32_1 = arith.constant 0 : i32
    return %arg0, %c0_i32, %c0_i32_0 : i32, i32, i32
  }
}

</mosaic_0001>

<llo_original>
// kernel: tpu_custom_call.1
$region0: #{tpu_custom_call.1}
  #allocation0 [shape = 'u32[]', space=smem, size = 0x4, offset = 0x4, fixed_abs, tag = 'smem constant byte address 0x4 - core index']
  #allocation1 [shape = 'u32[144,128]{1,0:T(1,128)}', space=vmem, size = 0x12000, scoped, tag = 'internal scratch']
  #allocation2 [shape = 'f32[2,4,12,128]{3,2,1,0:T(8,128)}', space=vmem, size = 0x10000, scoped, tag = 'scratch operand']
  #allocation3 [shape = 'f32[2,12,128]{2,1,0:T(8,128)}', space=vmem, size = 0x4000, scoped, tag = 'scratch operand']
  #allocation4 [shape = 's32[4]{0}', space=sflag, size = 0x10, scoped, tag = 'scratch operand']
  #allocation7 [shape = 's32[]', space=sflag, size = 0x4, offset = 0, fixed_abs, tag = 'sflag constant byte address 0x0 - dummy sync flag']
  #allocation8 [shape = 's32[]', space=sflag, size = 0x4, offset = 0, fixed_abs, tag = 'sflag constant byte address 0x0 - dummy sync flag']
  #allocation9 [shape = 's32[]', space=sflag, size = 0x4, offset = 0, fixed_abs, tag = 'sflag constant byte address 0x0 - dummy sync flag']
  #allocation10 [shape = 's32[]', space=sflag, size = 0x4, offset = 0, fixed_abs, tag = 'sflag constant byte address 0x0 - dummy sync flag']
  %s0 = inlined_call_operand.vmem [shape: f32[2,4,20,128], index: 0, kind: input, shape index: {}]
  %s1 = inlined_call_operand.vmem [shape: f32[2,20,128], index: 1, kind: input, shape index: {}]
  %s2 = inlined_call_operand.hbm [shape: f32[2,8,128], index: 2, kind: output, shape index: {}]
  %s3 = sld [smem:[#allocation0]]
  $region185: #{tpu_custom_call.1} parent=0
    _
  %s5 = ssub.s32 1, %s3
  %s6 = scalar_select 0, %s5, %s3
  $region1: #{tpu_custom_call.1} parent=0
    #allocation5 [shape = 'u8[8192]{0}', space=vmem, size = 0x2000, scoped, tag = 'output window, operand 0']
    #allocation6 [shape = 's32[2]{0}', space=sflag, size = 0x8, scoped, tag = 'scoped memory for tpu_custom_call.1']
    %7 = vsyncpa [#allocation6], 0
    %s8 = scalar_lea.sflag [#allocation6], 1
    %9 = vsyncpa %s8, 0
    loop: start=0, step=1, limit=5
    $region2: #{tpu_custom_call.1} parent=1 // loop_pre_header
      _
    $region3: #{tpu_custom_call.1} parent=1 // loop_header
      %s11 = sphi 0, %s15
      %p12 = scmp.ge.s32.totalorder %s11, 5
      %s17 = sphi 0, %s27
      %s18 = sphi 0, %s23
      %s19 = sphi 0, %s17
      %s20 = sphi 0, %s18
      %s30 = sphi 0, %s32
      %s33 = sphi 0, %s30
      %s43 = sphi 0, %s33
    $region4: #{tpu_custom_call.1} parent=1 // loop_header_branch
      %14 = sbr.rel (%p12) target = $region8
    $region5: #{tpu_custom_call.1} parent=1 // loop_body
      %s16 = ssub.s32 %s11, 1
      %s21 = sadd.s32 1, %s18
      %p22 = scmp.ge.s32.totalorder %s21, 2
      %s23 = scalar_select %p22, 0, %s21
      %s24 = sadd.s32 1, %s17
      %s25 = scalar_select %p22, %s24, %s17
      %p26 = scmp.ge.s32.totalorder %s25, 2
      %s27 = scalar_select %p26, 0, %s25
      %s28 = ssub.s32 %s17, %s27
      %p29 = scmp.eq.s32.totalorder %s28, 0
      %s31 = sadd.s32 %s30, 1
      %s32 = scalar_select %p29, %s30, %s31
      %p34 = pneg %p29
      %p35 = scmp.eq.s32.totalorder %s11, 3
      %p36 = por %p34, %p35
      %p37 = scmp.ne.s32.totalorder %s30, %s33
      %p38 = scmp.eq.s32.totalorder %s11, 0
      %p39 = por %p37, %p38
      %p40 = scmp.ne.s32.totalorder %s30, %s33
      %p41 = scmp.eq.s32.totalorder %s16, 3
      %p42 = por %p40, %p41
      %p44 = scmp.ne.s32.totalorder %s33, %s43
      %p45 = scmp.eq.s32.totalorder %s16, 0
      %p46 = por %p44, %p45
      %p47 = scmp.lt.s32.totalorder %s11, 4
      // Predicated region
      $region9: #{tpu_custom_call.1} parent=5 // pred_check
        %p48 = pneg %p47
      $region10: #{tpu_custom_call.1} parent=5 // pred_check_branch
        %50 = sbr.rel (%p48) target = $region12
      $region11: #{tpu_custom_call.1} parent=5 // pred_region
        %p51 = pneg %p39
        %p52 = pneg %p36
        %s53 = sand.u32 %s30, 1
        %s54 = scalar_lea.sflag [#allocation6], %s53
        %s55 = sand.u32 %s30, 1
        %s56 = smul.addr %s55, 8
        %s57 = scalar_lea.vmem [#allocation5], %s56
        %p58 = scmp.lt.s32.totalorder %s18, 0
        %s59 = ssub.s32 0, %s18
        %s60 = scalar_select %p58, %s59, %s18
        %s61 = sand.u32 %s60, 1
        %s62 = ssub.s32 0, %s61
        %s63 = scalar_select %p58, %s62, %s61
        %p64 = scmp.ne.s32.totalorder %s63, 0
        %p65 = scmp.lt.s32.totalorder %s63, 0
        %p66 = pnand %p65, %p64
        %p67 = pneg %p66
        %s68 = sadd.s32 %s63, 2
        %s69 = scalar_select %p67, %s68, %s63
        %p70 = scmp.eq.s32.totalorder %s18, 0
        // Predicated region
        $region13: #{tpu_custom_call.1} parent=11 // pred_check
          %p71 = pneg %p70
        $region14: #{tpu_custom_call.1} parent=11 // pred_check_branch
          %73 = sbr.rel (%p71) target = $region16
        $region15: #{tpu_custom_call.1} parent=11 // pred_region
          %s74 = smul.u32 %s17, 96
          %s75 = scalar_lea.vmem %s0, %s74
          %p77 = scmp.lt.u32.totalorder 12, 8
          %p78 = pneg %p77
          // Predicated region
          $region17: #{tpu_custom_call.1} parent=15 // pred_check
            _
          $region18: #{tpu_custom_call.1} parent=15 // pred_check_branch
            %80 = sbr.rel (%p77) target = $region20
          $region19: #{tpu_custom_call.1} parent=15 // pred_region
            %s101 = sand.u32 12, 7
            %p102 = scmp.eq.s32.totalorder %s101, 0
            %p103 = pneg %p102
            // Predicated region
            $region32: #{tpu_custom_call.1} parent=19 // pred_check
              _
            $region33: #{tpu_custom_call.1} parent=19 // pred_check_branch
              %105 = sbr.rel (%p102) target = $region35
            $region34: #{tpu_custom_call.1} parent=19 // pred_region
              %s106 = sand.u32 12, 7
              %s107 = ssub.s32 12, %s106
              %s108 = scalar_lea.vmem %s75, %s107
              %s109 = ssub.s32 12, %s106
              %s110 = scalar_lea.vmem [#allocation2], %s109
              loop: start=0, step=1, limit=1
              $region36: #{tpu_custom_call.1} parent=34 // loop_pre_header
                _
              $region37: #{tpu_custom_call.1} parent=34 // loop_header
                %s112 = sphi 0, %s116
                %p113 = scmp.ge.s32.totalorder %s112, 1
                %s117 = sphi %s75, %s75
                %s118 = sphi [#allocation2], [#allocation2]
              $region38: #{tpu_custom_call.1} parent=34 // loop_header_branch
                %115 = sbr.rel (%p113) target = $region42
              $region39: #{tpu_custom_call.1} parent=34 // loop_body
                %v119 = vld [vmem:[%s117] sm:$0xff]
                %120 = vst [vmem:[%s118] sm:$0xff] %v119
                %v121 = vld [vmem:[%s117 + $0x18] sm:$0xff]
                %122 = vst [vmem:[%s118 + $0x10] sm:$0xff] %v121
                %v123 = vld [vmem:[%s117 + $0x30] sm:$0xff]
                %124 = vst [vmem:[%s118 + $0x20] sm:$0xff] %v123
                %v125 = vld [vmem:[%s117 + $0x48] sm:$0xff]
                %126 = vst [vmem:[%s118 + $0x30] sm:$0xff] %v125
              $region40: #{tpu_custom_call.1} parent=34 // loop_footer
                %s116 = sadd.s32 1, %s112
              $region41: #{tpu_custom_call.1} parent=34 // loop_footer_branch
                %111 = sbr.rel target = $region37
              $region42: #{tpu_custom_call.1} parent=34 // loop_exit
                _
              %s127 = sshllo.u32 0, %s106
              loop: start=0, step=1, limit=1
              $region43: #{tpu_custom_call.1} parent=34 // loop_pre_header
                _
              $region44: #{tpu_custom_call.1} parent=34 // loop_header
                %s129 = sphi 0, %s133
                %p130 = scmp.ge.s32.totalorder %s129, 1
                %s134 = sphi %s108, %s108
                %s135 = sphi %s110, %s110
              $region45: #{tpu_custom_call.1} parent=34 // loop_header_branch
                %132 = sbr.rel (%p130) target = $region49
              $region46: #{tpu_custom_call.1} parent=34 // loop_body
                %v136 = vld [vmem:[%s134] sm:%s127]
                %137 = vst [vmem:[%s135] sm:%s127] %v136
                %v138 = vld [vmem:[%s134 + $0x18] sm:%s127]
                %139 = vst [vmem:[%s135 + $0x10] sm:%s127] %v138
                %v140 = vld [vmem:[%s134 + $0x30] sm:%s127]
                %141 = vst [vmem:[%s135 + $0x20] sm:%s127] %v140
                %v142 = vld [vmem:[%s134 + $0x48] sm:%s127]
                %143 = vst [vmem:[%s135 + $0x30] sm:%s127] %v142
              $region47: #{tpu_custom_call.1} parent=34 // loop_footer
                %s133 = sadd.s32 1, %s129
              $region48: #{tpu_custom_call.1} parent=34 // loop_footer_branch
                %128 = sbr.rel target = $region44
              $region49: #{tpu_custom_call.1} parent=34 // loop_exit
                _
            $region35: #{tpu_custom_call.1} parent=19 // pred_fallthru
              _
          $region20: #{tpu_custom_call.1} parent=15 // pred_fallthru
            _
          // Predicated region
          $region21: #{tpu_custom_call.1} parent=15 // pred_check
            %p81 = pneg %p77
          $region22: #{tpu_custom_call.1} parent=15 // pred_check_branch
            %83 = sbr.rel (%p81) target = $region24
          $region23: #{tpu_custom_call.1} parent=15 // pred_region
            %s84 = sshllo.u32 0, 12
            loop: start=0, step=1, limit=1
            $region25: #{tpu_custom_call.1} parent=23 // loop_pre_header
              _
            $region26: #{tpu_custom_call.1} parent=23 // loop_header
              %s86 = sphi 0, %s90
              %p87 = scmp.ge.s32.totalorder %s86, 1
              %s91 = sphi %s75, %s75
              %s92 = sphi [#allocation2], [#allocation2]
            $region27: #{tpu_custom_call.1} parent=23 // loop_header_branch
              %89 = sbr.rel (%p87) target = $region31
            $region28: #{tpu_custom_call.1} parent=23 // loop_body
              %v93 = vld [vmem:[%s91] sm:%s84]
              %94 = vst [vmem:[%s92] sm:%s84] %v93
              %v95 = vld [vmem:[%s91 + $0x18] sm:%s84]
              %96 = vst [vmem:[%s92 + $0x10] sm:%s84] %v95
              %v97 = vld [vmem:[%s91 + $0x30] sm:%s84]
              %98 = vst [vmem:[%s92 + $0x20] sm:%s84] %v97
              %v99 = vld [vmem:[%s91 + $0x48] sm:%s84]
              %100 = vst [vmem:[%s92 + $0x30] sm:%s84] %v99
            $region29: #{tpu_custom_call.1} parent=23 // loop_footer
              %s90 = sadd.s32 1, %s86
            $region30: #{tpu_custom_call.1} parent=23 // loop_footer_branch
              %85 = sbr.rel target = $region26
            $region31: #{tpu_custom_call.1} parent=23 // loop_exit
              _
          $region24: #{tpu_custom_call.1} parent=15 // pred_fallthru
            _
          // Predicated region
          $region50: #{tpu_custom_call.1} parent=15 // pred_check
            _
          $region51: #{tpu_custom_call.1} parent=15 // pred_check_branch
            %146 = sbr.rel (0) target = $region53
          $region52: #{tpu_custom_call.1} parent=15 // pred_region
            %147 = vsyncadd [#allocation4], 768
          $region53: #{tpu_custom_call.1} parent=15 // pred_fallthru
            _
          %s148 = smul.u32 %s17, 24
          %s149 = scalar_lea.vmem %s1, %s148
          %s150 = scalar_lea.sflag [#allocation4], 2
          %p152 = scmp.lt.u32.totalorder 12, 8
          %p153 = pneg %p152
          // Predicated region
          $region54: #{tpu_custom_call.1} parent=15 // pred_check
            _
          $region55: #{tpu_custom_call.1} parent=15 // pred_check_branch
            %155 = sbr.rel (%p152) target = $region57
          $region56: #{tpu_custom_call.1} parent=15 // pred_region
            %s170 = sand.u32 12, 7
            %p171 = scmp.eq.s32.totalorder %s170, 0
            %p172 = pneg %p171
            // Predicated region
            $region69: #{tpu_custom_call.1} parent=56 // pred_check
              _
            $region70: #{tpu_custom_call.1} parent=56 // pred_check_branch
              %174 = sbr.rel (%p171) target = $region72
            $region71: #{tpu_custom_call.1} parent=56 // pred_region
              %s175 = sand.u32 12, 7
              %s176 = ssub.s32 12, %s175
              %s177 = scalar_lea.vmem %s149, %s176
              %s178 = ssub.s32 12, %s175
              %s179 = scalar_lea.vmem [#allocation3], %s178
              loop: start=0, step=1, limit=1
              $region73: #{tpu_custom_call.1} parent=71 // loop_pre_header
                _
              $region74: #{tpu_custom_call.1} parent=71 // loop_header
                %s181 = sphi 0, %s185
                %p182 = scmp.ge.s32.totalorder %s181, 1
                %s186 = sphi %s149, %s149
                %s187 = sphi [#allocation3], [#allocation3]
              $region75: #{tpu_custom_call.1} parent=71 // loop_header_branch
                %184 = sbr.rel (%p182) target = $region79
              $region76: #{tpu_custom_call.1} parent=71 // loop_body
                %v188 = vld [vmem:[%s186] sm:$0xff]
                %189 = vst [vmem:[%s187] sm:$0xff] %v188
              $region77: #{tpu_custom_call.1} parent=71 // loop_footer
                %s185 = sadd.s32 1, %s181
              $region78: #{tpu_custom_call.1} parent=71 // loop_footer_branch
                %180 = sbr.rel target = $region74
              $region79: #{tpu_custom_call.1} parent=71 // loop_exit
                _
              %s190 = sshllo.u32 0, %s175
              loop: start=0, step=1, limit=1
              $region80: #{tpu_custom_call.1} parent=71 // loop_pre_header
                _
              $region81: #{tpu_custom_call.1} parent=71 // loop_header
                %s192 = sphi 0, %s196
                %p193 = scmp.ge.s32.totalorder %s192, 1
                %s197 = sphi %s177, %s177
                %s198 = sphi %s179, %s179
              $region82: #{tpu_custom_call.1} parent=71 // loop_header_branch
                %195 = sbr.rel (%p193) target = $region86
              $region83: #{tpu_custom_call.1} parent=71 // loop_body
                %v199 = vld [vmem:[%s197] sm:%s190]
                %200 = vst [vmem:[%s198] sm:%s190] %v199
              $region84: #{tpu_custom_call.1} parent=71 // loop_footer
                %s196 = sadd.s32 1, %s192
              $region85: #{tpu_custom_call.1} parent=71 // loop_footer_branch
                %191 = sbr.rel target = $region81
              $region86: #{tpu_custom_call.1} parent=71 // loop_exit
                _
            $region72: #{tpu_custom_call.1} parent=56 // pred_fallthru
              _
          $region57: #{tpu_custom_call.1} parent=15 // pred_fallthru
            _
          // Predicated region
          $region58: #{tpu_custom_call.1} parent=15 // pred_check
            %p156 = pneg %p152
          $region59: #{tpu_custom_call.1} parent=15 // pred_check_branch
            %158 = sbr.rel (%p156) target = $region61
          $region60: #{tpu_custom_call.1} parent=15 // pred_region
            %s159 = sshllo.u32 0, 12
            loop: start=0, step=1, limit=1
            $region62: #{tpu_custom_call.1} parent=60 // loop_pre_header
              _
            $region63: #{tpu_custom_call.1} parent=60 // loop_header
              %s161 = sphi 0, %s165
              %p162 = scmp.ge.s32.totalorder %s161, 1
              %s166 = sphi %s149, %s149
              %s167 = sphi [#allocation3], [#allocation3]
            $region64: #{tpu_custom_call.1} parent=60 // loop_header_branch
              %164 = sbr.rel (%p162) target = $region68
            $region65: #{tpu_custom_call.1} parent=60 // loop_body
              %v168 = vld [vmem:[%s166] sm:%s159]
              %169 = vst [vmem:[%s167] sm:%s159] %v168
            $region66: #{tpu_custom_call.1} parent=60 // loop_footer
              %s165 = sadd.s32 1, %s161
            $region67: #{tpu_custom_call.1} parent=60 // loop_footer_branch
              %160 = sbr.rel target = $region63
            $region68: #{tpu_custom_call.1} parent=60 // loop_exit
              _
          $region61: #{tpu_custom_call.1} parent=15 // pred_fallthru
            _
          // Predicated region
          $region87: #{tpu_custom_call.1} parent=15 // pred_check
            _
          $region88: #{tpu_custom_call.1} parent=15 // pred_check_branch
            %203 = sbr.rel (0) target = $region90
          $region89: #{tpu_custom_call.1} parent=15 // pred_region
            %204 = vsyncadd %s150, 192
          $region90: #{tpu_custom_call.1} parent=15 // pred_fallthru
            _
        $region16: #{tpu_custom_call.1} parent=11 // pred_fallthru
          _
        %s205 = smul.u32 %s69, 64
        %s206 = scalar_lea.vmem [#allocation2], %s205
        %s207 = scalar_lea.sflag [#allocation4], %s69
        %s208 = smul.u32 4, 12
        %s209 = smul.u32 %s208, 1
        %s210 = sshll.u32 %s209, 4
        %211 = dma.done %s207, %s210
        %s212 = smul.u32 %s69, 16
        %s213 = scalar_lea.vmem [#allocation3], %s212
        %s214 = sadd.s32 %s69, 2
        %s215 = scalar_lea.sflag [#allocation4], %s214
        %s216 = smul.u32 12, 1
        %s217 = sshll.u32 %s216, 4
        %218 = dma.done %s215, %s217
        %s219 = sadd.s32 %s18, 1
        %p220 = scmp.lt.s32.totalorder %s219, 2
        // Predicated region
        $region91: #{tpu_custom_call.1} parent=11 // pred_check
          %p221 = pneg %p220
        $region92: #{tpu_custom_call.1} parent=11 // pred_check_branch
          %223 = sbr.rel (%p221) target = $region94
        $region93: #{tpu_custom_call.1} parent=11 // pred_region
          %s224 = ssub.s32 1, %s69
          %s225 = smul.u32 %s219, 8
          %s226 = smul.u32 %s17, 96
          %s227 = sadd.s32 %s225, %s226
          %s228 = scalar_lea.vmem %s0, %s227
          %s229 = smul.u32 %s224, 64
          %s230 = scalar_lea.vmem [#allocation2], %s229
          %s231 = scalar_lea.sflag [#allocation4], %s224
          %p233 = scmp.lt.u32.totalorder 12, 8
          %p234 = pneg %p233
          // Predicated region
          $region95: #{tpu_custom_call.1} parent=93 // pred_check
            _
          $region96: #{tpu_custom_call.1} parent=93 // pred_check_branch
            %236 = sbr.rel (%p233) target = $region98
          $region97: #{tpu_custom_call.1} parent=93 // pred_region
            %s257 = sand.u32 12, 7
            %p258 = scmp.eq.s32.totalorder %s257, 0
            %p259 = pneg %p258
            // Predicated region
            $region110: #{tpu_custom_call.1} parent=97 // pred_check
              _
            $region111: #{tpu_custom_call.1} parent=97 // pred_check_branch
              %261 = sbr.rel (%p258) target = $region113
            $region112: #{tpu_custom_call.1} parent=97 // pred_region
              %s262 = sand.u32 12, 7
              %s263 = ssub.s32 12, %s262
              %s264 = scalar_lea.vmem %s228, %s263
              %s265 = ssub.s32 12, %s262
              %s266 = scalar_lea.vmem %s230, %s265 [#allocation2]
              loop: start=0, step=1, limit=1
              $region114: #{tpu_custom_call.1} parent=112 // loop_pre_header
                _
              $region115: #{tpu_custom_call.1} parent=112 // loop_header
                %s268 = sphi 0, %s272
                %p269 = scmp.ge.s32.totalorder %s268, 1
                %s273 = sphi %s228, %s228
                %s274 = sphi %s230, %s230
              $region116: #{tpu_custom_call.1} parent=112 // loop_header_branch
                %271 = sbr.rel (%p269) target = $region120
              $region117: #{tpu_custom_call.1} parent=112 // loop_body
                %v275 = vld [vmem:[%s273] sm:$0xff]
                %276 = vst [vmem:[%s274] sm:$0xff] %v275
                %v277 = vld [vmem:[%s273 + $0x18] sm:$0xff]
                %278 = vst [vmem:[%s274 + $0x10] sm:$0xff] %v277
                %v279 = vld [vmem:[%s273 + $0x30] sm:$0xff]
                %280 = vst [vmem:[%s274 + $0x20] sm:$0xff] %v279
                %v281 = vld [vmem:[%s273 + $0x48] sm:$0xff]
                %282 = vst [vmem:[%s274 + $0x30] sm:$0xff] %v281
              $region118: #{tpu_custom_call.1} parent=112 // loop_footer
                %s272 = sadd.s32 1, %s268
              $region119: #{tpu_custom_call.1} parent=112 // loop_footer_branch
                %267 = sbr.rel target = $region115
              $region120: #{tpu_custom_call.1} parent=112 // loop_exit
                _
              %s283 = sshllo.u32 0, %s262
              loop: start=0, step=1, limit=1
              $region121: #{tpu_custom_call.1} parent=112 // loop_pre_header
                _
              $region122: #{tpu_custom_call.1} parent=112 // loop_header
                %s285 = sphi 0, %s289
                %p286 = scmp.ge.s32.totalorder %s285, 1
                %s290 = sphi %s264, %s264
                %s291 = sphi %s266, %s266
              $region123: #{tpu_custom_call.1} parent=112 // loop_header_branch
                %288 = sbr.rel (%p286) target = $region127
              $region124: #{tpu_custom_call.1} parent=112 // loop_body
                %v292 = vld [vmem:[%s290] sm:%s283]
                %293 = vst [vmem:[%s291] sm:%s283] %v292
                %v294 = vld [vmem:[%s290 + $0x18] sm:%s283]
                %295 = vst [vmem:[%s291 + $0x10] sm:%s283] %v294
                %v296 = vld [vmem:[%s290 + $0x30] sm:%s283]
                %297 = vst [vmem:[%s291 + $0x20] sm:%s283] %v296
                %v298 = vld [vmem:[%s290 + $0x48] sm:%s283]
                %299 = vst [vmem:[%s291 + $0x30] sm:%s283] %v298
              $region125: #{tpu_custom_call.1} parent=112 // loop_footer
                %s289 = sadd.s32 1, %s285
              $region126: #{tpu_custom_call.1} parent=112 // loop_footer_branch
                %284 = sbr.rel target = $region122
              $region127: #{tpu_custom_call.1} parent=112 // loop_exit
                _
            $region113: #{tpu_custom_call.1} parent=97 // pred_fallthru
              _
          $region98: #{tpu_custom_call.1} parent=93 // pred_fallthru
            _
          // Predicated region
          $region99: #{tpu_custom_call.1} parent=93 // pred_check
            %p237 = pneg %p233
          $region100: #{tpu_custom_call.1} parent=93 // pred_check_branch
            %239 = sbr.rel (%p237) target = $region102
          $region101: #{tpu_custom_call.1} parent=93 // pred_region
            %s240 = sshllo.u32 0, 12
            loop: start=0, step=1, limit=1
            $region103: #{tpu_custom_call.1} parent=101 // loop_pre_header
              _
            $region104: #{tpu_custom_call.1} parent=101 // loop_header
              %s242 = sphi 0, %s246
              %p243 = scmp.ge.s32.totalorder %s242, 1
              %s247 = sphi %s228, %s228
              %s248 = sphi %s230, %s230
            $region105: #{tpu_custom_call.1} parent=101 // loop_header_branch
              %245 = sbr.rel (%p243) target = $region109
            $region106: #{tpu_custom_call.1} parent=101 // loop_body
              %v249 = vld [vmem:[%s247] sm:%s240]
              %250 = vst [vmem:[%s248] sm:%s240] %v249
              %v251 = vld [vmem:[%s247 + $0x18] sm:%s240]
              %252 = vst [vmem:[%s248 + $0x10] sm:%s240] %v251
              %v253 = vld [vmem:[%s247 + $0x30] sm:%s240]
              %254 = vst [vmem:[%s248 + $0x20] sm:%s240] %v253
              %v255 = vld [vmem:[%s247 + $0x48] sm:%s240]
              %256 = vst [vmem:[%s248 + $0x30] sm:%s240] %v255
            $region107: #{tpu_custom_call.1} parent=101 // loop_footer
              %s246 = sadd.s32 1, %s242
            $region108: #{tpu_custom_call.1} parent=101 // loop_footer_branch
              %241 = sbr.rel target = $region104
            $region109: #{tpu_custom_call.1} parent=101 // loop_exit
              _
          $region102: #{tpu_custom_call.1} parent=93 // pred_fallthru
            _
          // Predicated region
          $region128: #{tpu_custom_call.1} parent=93 // pred_check
            _
          $region129: #{tpu_custom_call.1} parent=93 // pred_check_branch
            %302 = sbr.rel (0) target = $region131
          $region130: #{tpu_custom_call.1} parent=93 // pred_region
            %303 = vsyncadd %s231, 768
          $region131: #{tpu_custom_call.1} parent=93 // pred_fallthru
            _
          %s304 = smul.u32 %s17, 24
          %s305 = sadd.s32 %s225, %s304
          %s306 = scalar_lea.vmem %s1, %s305
          %s307 = smul.u32 %s224, 16
          %s308 = scalar_lea.vmem [#allocation3], %s307
          %s309 = sadd.s32 %s224, 2
          %s310 = scalar_lea.sflag [#allocation4], %s309
          %p312 = scmp.lt.u32.totalorder 12, 8
          %p313 = pneg %p312
          // Predicated region
          $region132: #{tpu_custom_call.1} parent=93 // pred_check
            _
          $region133: #{tpu_custom_call.1} parent=93 // pred_check_branch
            %315 = sbr.rel (%p312) target = $region135
          $region134: #{tpu_custom_call.1} parent=93 // pred_region
            %s330 = sand.u32 12, 7
            %p331 = scmp.eq.s32.totalorder %s330, 0
            %p332 = pneg %p331
            // Predicated region
            $region147: #{tpu_custom_call.1} parent=134 // pred_check
              _
            $region148: #{tpu_custom_call.1} parent=134 // pred_check_branch
              %334 = sbr.rel (%p331) target = $region150
            $region149: #{tpu_custom_call.1} parent=134 // pred_region
              %s335 = sand.u32 12, 7
              %s336 = ssub.s32 12, %s335
              %s337 = scalar_lea.vmem %s306, %s336
              %s338 = ssub.s32 12, %s335
              %s339 = scalar_lea.vmem %s308, %s338 [#allocation3]
              loop: start=0, step=1, limit=1
              $region151: #{tpu_custom_call.1} parent=149 // loop_pre_header
                _
              $region152: #{tpu_custom_call.1} parent=149 // loop_header
                %s341 = sphi 0, %s345
                %p342 = scmp.ge.s32.totalorder %s341, 1
                %s346 = sphi %s306, %s306
                %s347 = sphi %s308, %s308
              $region153: #{tpu_custom_call.1} parent=149 // loop_header_branch
                %344 = sbr.rel (%p342) target = $region157
              $region154: #{tpu_custom_call.1} parent=149 // loop_body
                %v348 = vld [vmem:[%s346] sm:$0xff]
                %349 = vst [vmem:[%s347] sm:$0xff] %v348
              $region155: #{tpu_custom_call.1} parent=149 // loop_footer
                %s345 = sadd.s32 1, %s341
              $region156: #{tpu_custom_call.1} parent=149 // loop_footer_branch
                %340 = sbr.rel target = $region152
              $region157: #{tpu_custom_call.1} parent=149 // loop_exit
                _
              %s350 = sshllo.u32 0, %s335
              loop: start=0, step=1, limit=1
              $region158: #{tpu_custom_call.1} parent=149 // loop_pre_header
                _
              $region159: #{tpu_custom_call.1} parent=149 // loop_header
                %s352 = sphi 0, %s356
                %p353 = scmp.ge.s32.totalorder %s352, 1
                %s357 = sphi %s337, %s337
                %s358 = sphi %s339, %s339
              $region160: #{tpu_custom_call.1} parent=149 // loop_header_branch
                %355 = sbr.rel (%p353) target = $region164
              $region161: #{tpu_custom_call.1} parent=149 // loop_body
                %v359 = vld [vmem:[%s357] sm:%s350]
                %360 = vst [vmem:[%s358] sm:%s350] %v359
              $region162: #{tpu_custom_call.1} parent=149 // loop_footer
                %s356 = sadd.s32 1, %s352
              $region163: #{tpu_custom_call.1} parent=149 // loop_footer_branch
                %351 = sbr.rel target = $region159
              $region164: #{tpu_custom_call.1} parent=149 // loop_exit
                _
            $region150: #{tpu_custom_call.1} parent=134 // pred_fallthru
              _
          $region135: #{tpu_custom_call.1} parent=93 // pred_fallthru
            _
          // Predicated region
          $region136: #{tpu_custom_call.1} parent=93 // pred_check
            %p316 = pneg %p312
          $region137: #{tpu_custom_call.1} parent=93 // pred_check_branch
            %318 = sbr.rel (%p316) target = $region139
          $region138: #{tpu_custom_call.1} parent=93 // pred_region
            %s319 = sshllo.u32 0, 12
            loop: start=0, step=1, limit=1
            $region140: #{tpu_custom_call.1} parent=138 // loop_pre_header
              _
            $region141: #{tpu_custom_call.1} parent=138 // loop_header
              %s321 = sphi 0, %s325
              %p322 = scmp.ge.s32.totalorder %s321, 1
              %s326 = sphi %s306, %s306
              %s327 = sphi %s308, %s308
            $region142: #{tpu_custom_call.1} parent=138 // loop_header_branch
              %324 = sbr.rel (%p322) target = $region146
            $region143: #{tpu_custom_call.1} parent=138 // loop_body
              %v328 = vld [vmem:[%s326] sm:%s319]
              %329 = vst [vmem:[%s327] sm:%s319] %v328
            $region144: #{tpu_custom_call.1} parent=138 // loop_footer
              %s325 = sadd.s32 1, %s321
            $region145: #{tpu_custom_call.1} parent=138 // loop_footer_branch
              %320 = sbr.rel target = $region141
            $region146: #{tpu_custom_call.1} parent=138 // loop_exit
              _
          $region139: #{tpu_custom_call.1} parent=93 // pred_fallthru
            _
          // Predicated region
          $region165: #{tpu_custom_call.1} parent=93 // pred_check
            _
          $region166: #{tpu_custom_call.1} parent=93 // pred_check_branch
            %363 = sbr.rel (0) target = $region168
          $region167: #{tpu_custom_call.1} parent=93 // pred_region
            %364 = vsyncadd %s310, 192
          $region168: #{tpu_custom_call.1} parent=93 // pred_fallthru
            _
        $region94: #{tpu_custom_call.1} parent=11 // pred_fallthru
          _
        %v365 = vld [vmem:[%s206] sm:$0xff]
        %v366 = vld [vmem:[%s206 + $0x8] sm:$0xf]
        %v367 = vld [vmem:[%s206 + $0x10] sm:$0xff]
        %v368 = vld [vmem:[%s206 + $0x18] sm:$0xf]
        %v369 = vld [vmem:[%s206 + $0x20] sm:$0xff]
        %v370 = vld [vmem:[%s206 + $0x28] sm:$0xf]
        %v371 = vld [vmem:[%s206 + $0x30] sm:$0xff]
        %v372 = vld [vmem:[%s206 + $0x38] sm:$0xf]
        %v373 = vld [vmem:[%s213] sm:$0xff]
        %v374 = vld [vmem:[%s213 + $0x8] sm:$0xf]
        %v375 = vmul.f32 %v373, 0.1
        %v376 = vmul.f32 %v374, 0.1
        %v377 = vadd.f32 %v375, 1e-05
        %v378 = vadd.f32 %v376, 1e-05
        %379 = vrot.lane.b32.xlu0 %v373, 2
        %v380 = vpop.permute.xlu0 %379
        %381 = vrot.lane.b32.xlu0 %v374, 2
        %v382 = vpop.permute.xlu0 %381
        %383 = vrot.lane.b32.xlu0 %v365, 2
        %v384 = vpop.permute.xlu0 %383
        %385 = vrot.lane.b32.xlu0 %v366, 2
        %v386 = vpop.permute.xlu0 %385
        %387 = vrot.lane.b32.xlu0 %v367, 2
        %v388 = vpop.permute.xlu0 %387
        %389 = vrot.lane.b32.xlu0 %v368, 2
        %v390 = vpop.permute.xlu0 %389
        %391 = vrot.lane.b32.xlu0 %v369, 2
        %v392 = vpop.permute.xlu0 %391
        %393 = vrot.lane.b32.xlu0 %v370, 2
        %v394 = vpop.permute.xlu0 %393
        %395 = vrot.lane.b32.xlu0 %v371, 2
        %v396 = vpop.permute.xlu0 %395
        %397 = vrot.lane.b32.xlu0 %v372, 2
        %v398 = vpop.permute.xlu0 %397
        %v400 = vrot.slane %v384, 6
        %v402 = vsub.f32 %v365, %v400
        %v403 = vsub.f32 %v366, %v400
        %v404 = vmul.f32 %v402, %v402
        %v405 = vmul.f32 %v403, %v403
        %v406 = vadd.f32 %v404, 0.0
        %v407 = vadd.f32 %v405, 0.0
        %v409 = vrot.slane %v388, 6
        %v411 = vsub.f32 %v367, %v409
        %v412 = vsub.f32 %v368, %v409
        %v413 = vmul.f32 %v411, %v411
        %v414 = vmul.f32 %v412, %v412
        %v415 = vadd.f32 %v406, %v413
        %v416 = vadd.f32 %v407, %v414
        %v418 = vrot.slane %v392, 6
        %v420 = vsub.f32 %v369, %v418
        %v421 = vsub.f32 %v370, %v418
        %v422 = vmul.f32 %v420, %v420
        %v423 = vmul.f32 %v421, %v421
        %v424 = vadd.f32 %v415, %v422
        %v425 = vadd.f32 %v416, %v423
        %v427 = vrot.slane %v396, 6
        %v429 = vsub.f32 %v371, %v427
        %v430 = vsub.f32 %v372, %v427
        %v431 = vmul.f32 %v429, %v429
        %v432 = vmul.f32 %v430, %v430
        %v433 = vadd.f32 %v424, %v431
        %v434 = vadd.f32 %v425, %v432
        %v435 = vrsqrt.pop %v433
        %v436 = vmul.f32 %v433, %v435
        %vm437 = vcmp.eq.f32.partialorder %v433, inf
        %v438 = vsel %vm437, %v433, %v436
        %vm439 = vcmp.eq.f32.partialorder %v433, 0.0
        %v440 = vand.u32 %v433, 2147483648
        %v441 = vsel %vm439, %v440, %v438
        %v442 = vrsqrt.pop %v434
        %v443 = vmul.f32 %v434, %v442
        %vm444 = vcmp.eq.f32.partialorder %v434, inf
        %v445 = vsel %vm444, %v434, %v443
        %vm446 = vcmp.eq.f32.partialorder %v434, 0.0
        %v447 = vand.u32 %v434, 2147483648
        %v448 = vsel %vm446, %v447, %v445
        %vm449 = vcmp.gt.f32.partialorder %v380, 0.0
        %v450 = vsel %vm449, 1.0, 0.0
        %vm453 = vcmask 1045504
        %v454 = vrot.slane %v441, 2
        %v455 = vrot.slane %v448, 2
        %v456 = vsel %vm453, %v454, %v455
        %v458 = vsel %vm449, %v456, 0.0
        %v461 = vrot.slane %v373, 2
        %v462 = vrot.slane %v374, 2
        %v463 = vsel %vm453, %v461, %v462
        %v465 = vsub.f32 %v380, %v463
        %v466 = vand.u32 2147483647, %v465
        %v469 = vrot.slane %v377, 2
        %v470 = vrot.slane %v378, 2
        %v471 = vsel %vm453, %v469, %v470
        %vm473 = vcmp.le.f32.partialorder %v466, %v471
        %v474 = vadd.f32 %v458, 0.0
        %v475 = vadd.f32 %v450, 1.0
        %v476 = vsel %vm473, %v458, 0.0
        %v477 = vadd.f32 %v476, 0.0
        %v478 = vsel %vm473, %v450, 0.0
        %v479 = vadd.f32 %v478, 1.0
        %vm481 = vcmask 1040384
        %v482 = vrot.slane %v384, 7
        %v483 = vrot.slane %v386, 7
        %v484 = vsel %vm481, %v482, %v483
        %v487 = vsub.f32 %v365, %v482
        %v488 = vsub.f32 %v366, %v484
        %v489 = vmul.f32 %v487, %v487
        %v490 = vmul.f32 %v488, %v488
        %v491 = vadd.f32 %v489, 0.0
        %v492 = vadd.f32 %v490, 0.0
        %v494 = vrot.slane %v388, 7
        %v495 = vrot.slane %v390, 7
        %v496 = vsel %vm481, %v494, %v495
        %v499 = vsub.f32 %v367, %v494
        %v500 = vsub.f32 %v368, %v496
        %v501 = vmul.f32 %v499, %v499
        %v502 = vmul.f32 %v500, %v500
        %v503 = vadd.f32 %v491, %v501
        %v504 = vadd.f32 %v492, %v502
        %v506 = vrot.slane %v392, 7
        %v507 = vrot.slane %v394, 7
        %v508 = vsel %vm481, %v506, %v507
        %v511 = vsub.f32 %v369, %v506
        %v512 = vsub.f32 %v370, %v508
        %v513 = vmul.f32 %v511, %v511
        %v514 = vmul.f32 %v512, %v512
        %v515 = vadd.f32 %v503, %v513
        %v516 = vadd.f32 %v504, %v514
        %v518 = vrot.slane %v396, 7
        %v519 = vrot.slane %v398, 7
        %v520 = vsel %vm481, %v518, %v519
        %v523 = vsub.f32 %v371, %v518
        %v524 = vsub.f32 %v372, %v520
        %v525 = vmul.f32 %v523, %v523
        %v526 = vmul.f32 %v524, %v524
        %v527 = vadd.f32 %v515, %v525
        %v528 = vadd.f32 %v516, %v526
        %v529 = vrsqrt.pop %v527
        %v530 = vmul.f32 %v527, %v529
        %vm531 = vcmp.eq.f32.partialorder %v527, inf
        %v532 = vsel %vm531, %v527, %v530
        %vm533 = vcmp.eq.f32.partialorder %v527, 0.0
        %v534 = vand.u32 %v527, 2147483648
        %v535 = vsel %vm533, %v534, %v532
        %v536 = vrsqrt.pop %v528
        %v537 = vmul.f32 %v528, %v536
        %vm538 = vcmp.eq.f32.partialorder %v528, inf
        %v539 = vsel %vm538, %v528, %v537
        %vm540 = vcmp.eq.f32.partialorder %v528, 0.0
        %v541 = vand.u32 %v528, 2147483648
        %v542 = vsel %vm540, %v541, %v539
        %vm543 = vcmp.gt.f32.partialorder %v382, 0.0
        %v544 = vsel %vm543, 1.0, 0.0
        %vm547 = vcmask 1046528
        %v548 = vrot.slane %v535, 1
        %v549 = vrot.slane %v542, 1
        %v550 = vsel %vm547, %v548, %v549
        %v553 = vsel %vm449, %v550, 0.0
        %v554 = vsel %vm543, %v549, 0.0
        %v555 = vrot.slane %v373, 1
        %v556 = vrot.slane %v374, 1
        %v557 = vsel %vm547, %v555, %v556
        %v560 = vsub.f32 %v380, %v557
        %v561 = vsub.f32 %v382, %v556
        %v562 = vand.u32 2147483647, %v560
        %v563 = vand.u32 2147483647, %v561
        %v564 = vrot.slane %v377, 1
        %v565 = vrot.slane %v378, 1
        %v566 = vsel %vm547, %v564, %v565
        %vm569 = vcmp.le.f32.partialorder %v562, %v566
        %vm570 = vcmp.le.f32.partialorder %v563, %v565
        %v573 = vrot.slane %v553, 1
        %v574 = vrot.slane %v554, 1
        %v575 = vsel %vm547, %v573, %v574
        %v577 = vadd.f32 %v474, %v575
        %v580 = vrot.slane %v450, 1
        %v581 = vrot.slane %v544, 1
        %v582 = vsel %vm547, %v580, %v581
        %v584 = vadd.f32 %v475, %v582
        %v585 = vsel %vm569, %v553, 0.0
        %v586 = vsel %vm570, %v554, 0.0
        %v589 = vrot.slane %v585, 1
        %v590 = vrot.slane %v586, 1
        %v591 = vsel %vm547, %v589, %v590
        %v593 = vadd.f32 %v477, %v591
        %v594 = vsel %vm569, %v450, 0.0
        %v595 = vsel %vm570, %v544, 0.0
        %v598 = vrot.slane %v594, 1
        %v599 = vrot.slane %v595, 1
        %v600 = vsel %vm547, %v598, %v599
        %v602 = vadd.f32 %v479, %v600
        %v603 = vsub.f32 %v365, %v384
        %v604 = vsub.f32 %v366, %v386
        %v605 = vmul.f32 %v603, %v603
        %v606 = vmul.f32 %v604, %v604
        %v607 = vadd.f32 %v605, 0.0
        %v608 = vadd.f32 %v606, 0.0
        %v609 = vsub.f32 %v367, %v388
        %v610 = vsub.f32 %v368, %v390
        %v611 = vmul.f32 %v609, %v609
        %v612 = vmul.f32 %v610, %v610
        %v613 = vadd.f32 %v607, %v611
        %v614 = vadd.f32 %v608, %v612
        %v615 = vsub.f32 %v369, %v392
        %v616 = vsub.f32 %v370, %v394
        %v617 = vmul.f32 %v615, %v615
        %v618 = vmul.f32 %v616, %v616
        %v619 = vadd.f32 %v613, %v617
        %v620 = vadd.f32 %v614, %v618
        %v621 = vsub.f32 %v371, %v396
        %v622 = vsub.f32 %v372, %v398
        %v623 = vmul.f32 %v621, %v621
        %v624 = vmul.f32 %v622, %v622
        %v625 = vadd.f32 %v619, %v623
        %v626 = vadd.f32 %v620, %v624
        %v627 = vrsqrt.pop %v625
        %v628 = vmul.f32 %v625, %v627
        %vm629 = vcmp.eq.f32.partialorder %v625, inf
        %v630 = vsel %vm629, %v625, %v628
        %vm631 = vcmp.eq.f32.partialorder %v625, 0.0
        %v632 = vand.u32 %v625, 2147483648
        %v633 = vsel %vm631, %v632, %v630
        %v634 = vrsqrt.pop %v626
        %v635 = vmul.f32 %v626, %v634
        %vm636 = vcmp.eq.f32.partialorder %v626, inf
        %v637 = vsel %vm636, %v626, %v635
        %vm638 = vcmp.eq.f32.partialorder %v626, 0.0
        %v639 = vand.u32 %v626, 2147483648
        %v640 = vsel %vm638, %v639, %v637
        %v641 = vsel %vm449, %v633, 0.0
        %v642 = vsel %vm543, %v640, 0.0
        %v643 = vsub.f32 %v380, %v373
        %v644 = vsub.f32 %v382, %v374
        %v645 = vand.u32 2147483647, %v643
        %v646 = vand.u32 2147483647, %v644
        %vm647 = vcmp.le.f32.partialorder %v645, %v377
        %vm648 = vcmp.le.f32.partialorder %v646, %v378
        %v651 = vrot.slane %v641, 2
        %v652 = vrot.slane %v642, 2
        %v653 = vsel %vm453, %v651, %v652
        %v655 = vadd.f32 %v577, %v653
        %v656 = vrot.slane %v450, 2
        %v657 = vrot.slane %v544, 2
        %v658 = vsel %vm453, %v656, %v657
        %v660 = vadd.f32 %v584, %v658
        %v661 = vsel %vm647, %v641, 0.0
        %v662 = vsel %vm648, %v642, 0.0
        %v665 = vrot.slane %v661, 2
        %v666 = vrot.slane %v662, 2
        %v667 = vsel %vm453, %v665, %v666
        %v669 = vadd.f32 %v593, %v667
        %v670 = vsel %vm647, %v450, 0.0
        %v671 = vsel %vm648, %v544, 0.0
        %v674 = vrot.slane %v670, 2
        %v675 = vrot.slane %v671, 2
        %v676 = vsel %vm453, %v674, %v675
        %v678 = vadd.f32 %v602, %v676
        %v679 = vrot.slane %v384, 1
        %v680 = vrot.slane %v386, 1
        %v681 = vsel %vm547, %v679, %v680
        %v684 = vsub.f32 %v365, %v681
        %v685 = vsub.f32 %v366, %v680
        %v686 = vmul.f32 %v684, %v684
        %v687 = vmul.f32 %v685, %v685
        %v688 = vadd.f32 %v686, 0.0
        %v689 = vadd.f32 %v687, 0.0
        %v690 = vrot.slane %v388, 1
        %v691 = vrot.slane %v390, 1
        %v692 = vsel %vm547, %v690, %v691
        %v695 = vsub.f32 %v367, %v692
        %v696 = vsub.f32 %v368, %v691
        %v697 = vmul.f32 %v695, %v695
        %v698 = vmul.f32 %v696, %v696
        %v699 = vadd.f32 %v688, %v697
        %v700 = vadd.f32 %v689, %v698
        %v701 = vrot.slane %v392, 1
        %v702 = vrot.slane %v394, 1
        %v703 = vsel %vm547, %v701, %v702
        %v706 = vsub.f32 %v369, %v703
        %v707 = vsub.f32 %v370, %v702
        %v708 = vmul.f32 %v706, %v706
        %v709 = vmul.f32 %v707, %v707
        %v710 = vadd.f32 %v699, %v708
        %v711 = vadd.f32 %v700, %v709
        %v712 = vrot.slane %v396, 1
        %v713 = vrot.slane %v398, 1
        %v714 = vsel %vm547, %v712, %v713
        %v717 = vsub.f32 %v371, %v714
        %v718 = vsub.f32 %v372, %v713
        %v719 = vmul.f32 %v717, %v717
        %v720 = vmul.f32 %v718, %v718
        %v721 = vadd.f32 %v710, %v719
        %v722 = vadd.f32 %v711, %v720
        %v723 = vrsqrt.pop %v721
        %v724 = vmul.f32 %v721, %v723
        %vm725 = vcmp.eq.f32.partialorder %v721, inf
        %v726 = vsel %vm725, %v721, %v724
        %vm727 = vcmp.eq.f32.partialorder %v721, 0.0
        %v728 = vand.u32 %v721, 2147483648
        %v729 = vsel %vm727, %v728, %v726
        %v730 = vrsqrt.pop %v722
        %v731 = vmul.f32 %v722, %v730
        %vm732 = vcmp.eq.f32.partialorder %v722, inf
        %v733 = vsel %vm732, %v722, %v731
        %vm734 = vcmp.eq.f32.partialorder %v722, 0.0
        %v735 = vand.u32 %v722, 2147483648
        %v736 = vsel %vm734, %v735, %v733
        %v739 = vrot.slane %v729, 7
        %v740 = vrot.slane %v736, 7
        %v741 = vsel %vm481, %v739, %v740
        %v744 = vsel %vm449, %v739, 0.0
        %v745 = vsel %vm543, %v741, 0.0
        %v746 = vrot.slane %v373, 7
        %v747 = vrot.slane %v374, 7
        %v748 = vsel %vm481, %v746, %v747
        %v751 = vsub.f32 %v380, %v746
        %v752 = vsub.f32 %v382, %v748
        %v753 = vand.u32 2147483647, %v751
        %v754 = vand.u32 2147483647, %v752
        %v755 = vrot.slane %v377, 7
        %v756 = vrot.slane %v378, 7
        %v757 = vsel %vm481, %v755, %v756
        %vm760 = vcmp.le.f32.partialorder %v753, %v755
        %vm761 = vcmp.le.f32.partialorder %v754, %v757
        %vm764 = vcmask 1044480
        %v765 = vrot.slane %v744, 3
        %v766 = vrot.slane %v745, 3
        %v767 = vsel %vm764, %v765, %v766
        %v769 = vadd.f32 %v655, %v767
        %v770 = vrot.slane %v450, 3
        %v771 = vrot.slane %v544, 3
        %v772 = vsel %vm764, %v770, %v771
        %v774 = vadd.f32 %v660, %v772
        %v775 = vsel %vm760, %v744, 0.0
        %v776 = vsel %vm761, %v745, 0.0
        %v779 = vrot.slane %v775, 3
        %v780 = vrot.slane %v776, 3
        %v781 = vsel %vm764, %v779, %v780
        %v783 = vadd.f32 %v669, %v781
        %v784 = vsel %vm760, %v450, 0.0
        %v785 = vsel %vm761, %v544, 0.0
        %v788 = vrot.slane %v784, 3
        %v789 = vrot.slane %v785, 3
        %v790 = vsel %vm764, %v788, %v789
        %v792 = vadd.f32 %v678, %v790
        %v793 = vrot.slane %v384, 2
        %v794 = vrot.slane %v386, 2
        %v795 = vsel %vm453, %v793, %v794
        %v798 = vsub.f32 %v365, %v795
        %v799 = vsub.f32 %v366, %v794
        %v800 = vmul.f32 %v798, %v798
        %v801 = vmul.f32 %v799, %v799
        %v802 = vadd.f32 %v800, 0.0
        %v803 = vadd.f32 %v801, 0.0
        %v804 = vrot.slane %v388, 2
        %v805 = vrot.slane %v390, 2
        %v806 = vsel %vm453, %v804, %v805
        %v809 = vsub.f32 %v367, %v806
        %v810 = vsub.f32 %v368, %v805
        %v811 = vmul.f32 %v809, %v809
        %v812 = vmul.f32 %v810, %v810
        %v813 = vadd.f32 %v802, %v811
        %v814 = vadd.f32 %v803, %v812
        %v815 = vrot.slane %v392, 2
        %v816 = vrot.slane %v394, 2
        %v817 = vsel %vm453, %v815, %v816
        %v820 = vsub.f32 %v369, %v817
        %v821 = vsub.f32 %v370, %v816
        %v822 = vmul.f32 %v820, %v820
        %v823 = vmul.f32 %v821, %v821
        %v824 = vadd.f32 %v813, %v822
        %v825 = vadd.f32 %v814, %v823
        %v826 = vrot.slane %v396, 2
        %v827 = vrot.slane %v398, 2
        %v828 = vsel %vm453, %v826, %v827
        %v831 = vsub.f32 %v371, %v828
        %v832 = vsub.f32 %v372, %v827
        %v833 = vmul.f32 %v831, %v831
        %v834 = vmul.f32 %v832, %v832
        %v835 = vadd.f32 %v824, %v833
        %v836 = vadd.f32 %v825, %v834
        %v837 = vrsqrt.pop %v835
        %v838 = vmul.f32 %v835, %v837
        %vm839 = vcmp.eq.f32.partialorder %v835, inf
        %v840 = vsel %vm839, %v835, %v838
        %vm841 = vcmp.eq.f32.partialorder %v835, 0.0
        %v842 = vand.u32 %v835, 2147483648
        %v843 = vsel %vm841, %v842, %v840
        %v844 = vrsqrt.pop %v836
        %v845 = vmul.f32 %v836, %v844
        %vm846 = vcmp.eq.f32.partialorder %v836, inf
        %v847 = vsel %vm846, %v836, %v845
        %vm848 = vcmp.eq.f32.partialorder %v836, 0.0
        %v849 = vand.u32 %v836, 2147483648
        %v850 = vsel %vm848, %v849, %v847
        %vm853 = vcmask 1041408
        %v854 = vrot.slane %v843, 6
        %v855 = vrot.slane %v850, 6
        %v856 = vsel %vm853, %v854, %v855
        %v859 = vsel %vm449, %v854, 0.0
        %v860 = vsel %vm543, %v856, 0.0
        %v861 = vrot.slane %v373, 6
        %v862 = vrot.slane %v374, 6
        %v863 = vsel %vm853, %v861, %v862
        %v866 = vsub.f32 %v380, %v861
        %v867 = vsub.f32 %v382, %v863
        %v868 = vand.u32 2147483647, %v866
        %v869 = vand.u32 2147483647, %v867
        %v870 = vrot.slane %v377, 6
        %v871 = vrot.slane %v378, 6
        %v872 = vsel %vm853, %v870, %v871
        %vm875 = vcmp.le.f32.partialorder %v868, %v870
        %vm876 = vcmp.le.f32.partialorder %v869, %v872
        %vm879 = vcmask 1043456
        %v880 = vrot.slane %v859, 4
        %v881 = vrot.slane %v860, 4
        %v882 = vsel %vm879, %v880, %v881
        %v884 = vadd.f32 %v769, %v882
        %v885 = vrot.slane %v450, 4
        %v886 = vrot.slane %v544, 4
        %v887 = vsel %vm879, %v885, %v886
        %v889 = vadd.f32 %v774, %v887
        %v890 = vsel %vm875, %v859, 0.0
        %v891 = vsel %vm876, %v860, 0.0
        %v894 = vrot.slane %v890, 4
        %v895 = vrot.slane %v891, 4
        %v896 = vsel %vm879, %v894, %v895
        %v898 = vadd.f32 %v783, %v896
        %v899 = vsel %vm875, %v450, 0.0
        %v900 = vsel %vm876, %v544, 0.0
        %v903 = vrot.slane %v899, 4
        %v904 = vrot.slane %v900, 4
        %v905 = vsel %vm879, %v903, %v904
        %v907 = vadd.f32 %v792, %v905
        %908 = vrot.lane.b32.xlu0 %v373, 1
        %v909 = vpop.permute.xlu0 %908
        %910 = vrot.lane.b32.xlu0 %v374, 1
        %v911 = vpop.permute.xlu0 %910
        %912 = vrot.lane.b32.xlu0 %v365, 1
        %v913 = vpop.permute.xlu0 %912
        %914 = vrot.lane.b32.xlu0 %v366, 1
        %v915 = vpop.permute.xlu0 %914
        %916 = vrot.lane.b32.xlu0 %v367, 1
        %v917 = vpop.permute.xlu0 %916
        %918 = vrot.lane.b32.xlu0 %v368, 1
        %v919 = vpop.permute.xlu0 %918
        %920 = vrot.lane.b32.xlu0 %v369, 1
        %v921 = vpop.permute.xlu0 %920
        %922 = vrot.lane.b32.xlu0 %v370, 1
        %v923 = vpop.permute.xlu0 %922
        %924 = vrot.lane.b32.xlu0 %v371, 1
        %v925 = vpop.permute.xlu0 %924
        %926 = vrot.lane.b32.xlu0 %v372, 1
        %v927 = vpop.permute.xlu0 %926
        %v929 = vrot.slane %v913, 6
        %v931 = vsub.f32 %v365, %v929
        %v932 = vsub.f32 %v366, %v929
        %v933 = vmul.f32 %v931, %v931
        %v934 = vmul.f32 %v932, %v932
        %v935 = vadd.f32 %v933, 0.0
        %v936 = vadd.f32 %v934, 0.0
        %v938 = vrot.slane %v917, 6
        %v940 = vsub.f32 %v367, %v938
        %v941 = vsub.f32 %v368, %v938
        %v942 = vmul.f32 %v940, %v940
        %v943 = vmul.f32 %v941, %v941
        %v944 = vadd.f32 %v935, %v942
        %v945 = vadd.f32 %v936, %v943
        %v947 = vrot.slane %v921, 6
        %v949 = vsub.f32 %v369, %v947
        %v950 = vsub.f32 %v370, %v947
        %v951 = vmul.f32 %v949, %v949
        %v952 = vmul.f32 %v950, %v950
        %v953 = vadd.f32 %v944, %v951
        %v954 = vadd.f32 %v945, %v952
        %v956 = vrot.slane %v925, 6
        %v958 = vsub.f32 %v371, %v956
        %v959 = vsub.f32 %v372, %v956
        %v960 = vmul.f32 %v958, %v958
        %v961 = vmul.f32 %v959, %v959
        %v962 = vadd.f32 %v953, %v960
        %v963 = vadd.f32 %v954, %v961
        %v964 = vrsqrt.pop %v962
        %v965 = vmul.f32 %v962, %v964
        %vm966 = vcmp.eq.f32.partialorder %v962, inf
        %v967 = vsel %vm966, %v962, %v965
        %vm968 = vcmp.eq.f32.partialorder %v962, 0.0
        %v969 = vand.u32 %v962, 2147483648
        %v970 = vsel %vm968, %v969, %v967
        %v971 = vrsqrt.pop %v963
        %v972 = vmul.f32 %v963, %v971
        %vm973 = vcmp.eq.f32.partialorder %v963, inf
        %v974 = vsel %vm973, %v963, %v972
        %vm975 = vcmp.eq.f32.partialorder %v963, 0.0
        %v976 = vand.u32 %v963, 2147483648
        %v977 = vsel %vm975, %v976, %v974
        %vm978 = vcmp.gt.f32.partialorder %v909, 0.0
        %v979 = vsel %vm978, 1.0, 0.0
        %v982 = vrot.slane %v970, 2
        %v983 = vrot.slane %v977, 2
        %v984 = vsel %vm453, %v982, %v983
        %v986 = vsel %vm978, %v984, 0.0
        %v987 = vsub.f32 %v909, %v463
        %v988 = vand.u32 2147483647, %v987
        %vm989 = vcmp.le.f32.partialorder %v988, %v471
        %v990 = vadd.f32 %v884, %v986
        %v991 = vadd.f32 %v889, %v979
        %v992 = vsel %vm989, %v986, 0.0
        %v993 = vadd.f32 %v898, %v992
        %v994 = vsel %vm989, %v979, 0.0
        %v995 = vadd.f32 %v907, %v994
        %v997 = vrot.slane %v913, 7
        %v998 = vrot.slane %v915, 7
        %v999 = vsel %vm481, %v997, %v998
        %v1002 = vsub.f32 %v365, %v997
        %v1003 = vsub.f32 %v366, %v999
        %v1004 = vmul.f32 %v1002, %v1002
        %v1005 = vmul.f32 %v1003, %v1003
        %v1006 = vadd.f32 %v1004, 0.0
        %v1007 = vadd.f32 %v1005, 0.0
        %v1009 = vrot.slane %v917, 7
        %v1010 = vrot.slane %v919, 7
        %v1011 = vsel %vm481, %v1009, %v1010
        %v1014 = vsub.f32 %v367, %v1009
        %v1015 = vsub.f32 %v368, %v1011
        %v1016 = vmul.f32 %v1014, %v1014
        %v1017 = vmul.f32 %v1015, %v1015
        %v1018 = vadd.f32 %v1006, %v1016
        %v1019 = vadd.f32 %v1007, %v1017
        %v1021 = vrot.slane %v921, 7
        %v1022 = vrot.slane %v923, 7
        %v1023 = vsel %vm481, %v1021, %v1022
        %v1026 = vsub.f32 %v369, %v1021
        %v1027 = vsub.f32 %v370, %v1023
        %v1028 = vmul.f32 %v1026, %v1026
        %v1029 = vmul.f32 %v1027, %v1027
        %v1030 = vadd.f32 %v1018, %v1028
        %v1031 = vadd.f32 %v1019, %v1029
        %v1033 = vrot.slane %v925, 7
        %v1034 = vrot.slane %v927, 7
        %v1035 = vsel %vm481, %v1033, %v1034
        %v1038 = vsub.f32 %v371, %v1033
        %v1039 = vsub.f32 %v372, %v1035
        %v1040 = vmul.f32 %v1038, %v1038
        %v1041 = vmul.f32 %v1039, %v1039
        %v1042 = vadd.f32 %v1030, %v1040
        %v1043 = vadd.f32 %v1031, %v1041
        %v1044 = vrsqrt.pop %v1042
        %v1045 = vmul.f32 %v1042, %v1044
        %vm1046 = vcmp.eq.f32.partialorder %v1042, inf
        %v1047 = vsel %vm1046, %v1042, %v1045
        %vm1048 = vcmp.eq.f32.partialorder %v1042, 0.0
        %v1049 = vand.u32 %v1042, 2147483648
        %v1050 = vsel %vm1048, %v1049, %v1047
        %v1051 = vrsqrt.pop %v1043
        %v1052 = vmul.f32 %v1043, %v1051
        %vm1053 = vcmp.eq.f32.partialorder %v1043, inf
        %v1054 = vsel %vm1053, %v1043, %v1052
        %vm1055 = vcmp.eq.f32.partialorder %v1043, 0.0
        %v1056 = vand.u32 %v1043, 2147483648
        %v1057 = vsel %vm1055, %v1056, %v1054
        %vm1058 = vcmp.gt.f32.partialorder %v911, 0.0
        %v1059 = vsel %vm1058, 1.0, 0.0
        %v1062 = vrot.slane %v1050, 1
        %v1063 = vrot.slane %v1057, 1
        %v1064 = vsel %vm547, %v1062, %v1063
        %v1067 = vsel %vm978, %v1064, 0.0
        %v1068 = vsel %vm1058, %v1063, 0.0
        %v1069 = vsub.f32 %v909, %v557
        %v1070 = vsub.f32 %v911, %v556
        %v1071 = vand.u32 2147483647, %v1069
        %v1072 = vand.u32 2147483647, %v1070
        %vm1073 = vcmp.le.f32.partialorder %v1071, %v566
        %vm1074 = vcmp.le.f32.partialorder %v1072, %v565
        %v1077 = vrot.slane %v1067, 1
        %v1078 = vrot.slane %v1068, 1
        %v1079 = vsel %vm547, %v1077, %v1078
        %v1081 = vadd.f32 %v990, %v1079
        %v1084 = vrot.slane %v979, 1
        %v1085 = vrot.slane %v1059, 1
        %v1086 = vsel %vm547, %v1084, %v1085
        %v1088 = vadd.f32 %v991, %v1086
        %v1089 = vsel %vm1073, %v1067, 0.0
        %v1090 = vsel %vm1074, %v1068, 0.0
        %v1093 = vrot.slane %v1089, 1
        %v1094 = vrot.slane %v1090, 1
        %v1095 = vsel %vm547, %v1093, %v1094
        %v1097 = vadd.f32 %v993, %v1095
        %v1098 = vsel %vm1073, %v979, 0.0
        %v1099 = vsel %vm1074, %v1059, 0.0
        %v1102 = vrot.slane %v1098, 1
        %v1103 = vrot.slane %v1099, 1
        %v1104 = vsel %vm547, %v1102, %v1103
        %v1106 = vadd.f32 %v995, %v1104
        %v1107 = vsub.f32 %v365, %v913
        %v1108 = vsub.f32 %v366, %v915
        %v1109 = vmul.f32 %v1107, %v1107
        %v1110 = vmul.f32 %v1108, %v1108
        %v1111 = vadd.f32 %v1109, 0.0
        %v1112 = vadd.f32 %v1110, 0.0
        %v1113 = vsub.f32 %v367, %v917
        %v1114 = vsub.f32 %v368, %v919
        %v1115 = vmul.f32 %v1113, %v1113
        %v1116 = vmul.f32 %v1114, %v1114
        %v1117 = vadd.f32 %v1111, %v1115
        %v1118 = vadd.f32 %v1112, %v1116
        %v1119 = vsub.f32 %v369, %v921
        %v1120 = vsub.f32 %v370, %v923
        %v1121 = vmul.f32 %v1119, %v1119
        %v1122 = vmul.f32 %v1120, %v1120
        %v1123 = vadd.f32 %v1117, %v1121
        %v1124 = vadd.f32 %v1118, %v1122
        %v1125 = vsub.f32 %v371, %v925
        %v1126 = vsub.f32 %v372, %v927
        %v1127 = vmul.f32 %v1125, %v1125
        %v1128 = vmul.f32 %v1126, %v1126
        %v1129 = vadd.f32 %v1123, %v1127
        %v1130 = vadd.f32 %v1124, %v1128
        %v1131 = vrsqrt.pop %v1129
        %v1132 = vmul.f32 %v1129, %v1131
        %vm1133 = vcmp.eq.f32.partialorder %v1129, inf
        %v1134 = vsel %vm1133, %v1129, %v1132
        %vm1135 = vcmp.eq.f32.partialorder %v1129, 0.0
        %v1136 = vand.u32 %v1129, 2147483648
        %v1137 = vsel %vm1135, %v1136, %v1134
        %v1138 = vrsqrt.pop %v1130
        %v1139 = vmul.f32 %v1130, %v1138
        %vm1140 = vcmp.eq.f32.partialorder %v1130, inf
        %v1141 = vsel %vm1140, %v1130, %v1139
        %vm1142 = vcmp.eq.f32.partialorder %v1130, 0.0
        %v1143 = vand.u32 %v1130, 2147483648
        %v1144 = vsel %vm1142, %v1143, %v1141
        %v1145 = vsel %vm978, %v1137, 0.0
        %v1146 = vsel %vm1058, %v1144, 0.0
        %v1147 = vsub.f32 %v909, %v373
        %v1148 = vsub.f32 %v911, %v374
        %v1149 = vand.u32 2147483647, %v1147
        %v1150 = vand.u32 2147483647, %v1148
        %vm1151 = vcmp.le.f32.partialorder %v1149, %v377
        %vm1152 = vcmp.le.f32.partialorder %v1150, %v378
        %v1155 = vrot.slane %v1145, 2
        %v1156 = vrot.slane %v1146, 2
        %v1157 = vsel %vm453, %v1155, %v1156
        %v1159 = vadd.f32 %v1081, %v1157
        %v1160 = vrot.slane %v979, 2
        %v1161 = vrot.slane %v1059, 2
        %v1162 = vsel %vm453, %v1160, %v1161
        %v1164 = vadd.f32 %v1088, %v1162
        %v1165 = vsel %vm1151, %v1145, 0.0
        %v1166 = vsel %vm1152, %v1146, 0.0
        %v1169 = vrot.slane %v1165, 2
        %v1170 = vrot.slane %v1166, 2
        %v1171 = vsel %vm453, %v1169, %v1170
        %v1173 = vadd.f32 %v1097, %v1171
        %v1174 = vsel %vm1151, %v979, 0.0
        %v1175 = vsel %vm1152, %v1059, 0.0
        %v1178 = vrot.slane %v1174, 2
        %v1179 = vrot.slane %v1175, 2
        %v1180 = vsel %vm453, %v1178, %v1179
        %v1182 = vadd.f32 %v1106, %v1180
        %v1183 = vrot.slane %v913, 1
        %v1184 = vrot.slane %v915, 1
        %v1185 = vsel %vm547, %v1183, %v1184
        %v1188 = vsub.f32 %v365, %v1185
        %v1189 = vsub.f32 %v366, %v1184
        %v1190 = vmul.f32 %v1188, %v1188
        %v1191 = vmul.f32 %v1189, %v1189
        %v1192 = vadd.f32 %v1190, 0.0
        %v1193 = vadd.f32 %v1191, 0.0
        %v1194 = vrot.slane %v917, 1
        %v1195 = vrot.slane %v919, 1
        %v1196 = vsel %vm547, %v1194, %v1195
        %v1199 = vsub.f32 %v367, %v1196
        %v1200 = vsub.f32 %v368, %v1195
        %v1201 = vmul.f32 %v1199, %v1199
        %v1202 = vmul.f32 %v1200, %v1200
        %v1203 = vadd.f32 %v1192, %v1201
        %v1204 = vadd.f32 %v1193, %v1202
        %v1205 = vrot.slane %v921, 1
        %v1206 = vrot.slane %v923, 1
        %v1207 = vsel %vm547, %v1205, %v1206
        %v1210 = vsub.f32 %v369, %v1207
        %v1211 = vsub.f32 %v370, %v1206
        %v1212 = vmul.f32 %v1210, %v1210
        %v1213 = vmul.f32 %v1211, %v1211
        %v1214 = vadd.f32 %v1203, %v1212
        %v1215 = vadd.f32 %v1204, %v1213
        %v1216 = vrot.slane %v925, 1
        %v1217 = vrot.slane %v927, 1
        %v1218 = vsel %vm547, %v1216, %v1217
        %v1221 = vsub.f32 %v371, %v1218
        %v1222 = vsub.f32 %v372, %v1217
        %v1223 = vmul.f32 %v1221, %v1221
        %v1224 = vmul.f32 %v1222, %v1222
        %v1225 = vadd.f32 %v1214, %v1223
        %v1226 = vadd.f32 %v1215, %v1224
        %v1227 = vrsqrt.pop %v1225
        %v1228 = vmul.f32 %v1225, %v1227
        %vm1229 = vcmp.eq.f32.partialorder %v1225, inf
        %v1230 = vsel %vm1229, %v1225, %v1228
        %vm1231 = vcmp.eq.f32.partialorder %v1225, 0.0
        %v1232 = vand.u32 %v1225, 2147483648
        %v1233 = vsel %vm1231, %v1232, %v1230
        %v1234 = vrsqrt.pop %v1226
        %v1235 = vmul.f32 %v1226, %v1234
        %vm1236 = vcmp.eq.f32.partialorder %v1226, inf
        %v1237 = vsel %vm1236, %v1226, %v1235
        %vm1238 = vcmp.eq.f32.partialorder %v1226, 0.0
        %v1239 = vand.u32 %v1226, 2147483648
        %v1240 = vsel %vm1238, %v1239, %v1237
        %v1243 = vrot.slane %v1233, 7
        %v1244 = vrot.slane %v1240, 7
        %v1245 = vsel %vm481, %v1243, %v1244
        %v1248 = vsel %vm978, %v1243, 0.0
        %v1249 = vsel %vm1058, %v1245, 0.0
        %v1250 = vsub.f32 %v909, %v746
        %v1251 = vsub.f32 %v911, %v748
        %v1252 = vand.u32 2147483647, %v1250
        %v1253 = vand.u32 2147483647, %v1251
        %vm1254 = vcmp.le.f32.partialorder %v1252, %v755
        %vm1255 = vcmp.le.f32.partialorder %v1253, %v757
        %v1258 = vrot.slane %v1248, 3
        %v1259 = vrot.slane %v1249, 3
        %v1260 = vsel %vm764, %v1258, %v1259
        %v1262 = vadd.f32 %v1159, %v1260
        %v1263 = vrot.slane %v979, 3
        %v1264 = vrot.slane %v1059, 3
        %v1265 = vsel %vm764, %v1263, %v1264
        %v1267 = vadd.f32 %v1164, %v1265
        %v1268 = vsel %vm1254, %v1248, 0.0
        %v1269 = vsel %vm1255, %v1249, 0.0
        %v1272 = vrot.slane %v1268, 3
        %v1273 = vrot.slane %v1269, 3
        %v1274 = vsel %vm764, %v1272, %v1273
        %v1276 = vadd.f32 %v1173, %v1274
        %v1277 = vsel %vm1254, %v979, 0.0
        %v1278 = vsel %vm1255, %v1059, 0.0
        %v1281 = vrot.slane %v1277, 3
        %v1282 = vrot.slane %v1278, 3
        %v1283 = vsel %vm764, %v1281, %v1282
        %v1285 = vadd.f32 %v1182, %v1283
        %v1286 = vrot.slane %v913, 2
        %v1287 = vrot.slane %v915, 2
        %v1288 = vsel %vm453, %v1286, %v1287
        %v1291 = vsub.f32 %v365, %v1288
        %v1292 = vsub.f32 %v366, %v1287
        %v1293 = vmul.f32 %v1291, %v1291
        %v1294 = vmul.f32 %v1292, %v1292
        %v1295 = vadd.f32 %v1293, 0.0
        %v1296 = vadd.f32 %v1294, 0.0
        %v1297 = vrot.slane %v917, 2
        %v1298 = vrot.slane %v919, 2
        %v1299 = vsel %vm453, %v1297, %v1298
        %v1302 = vsub.f32 %v367, %v1299
        %v1303 = vsub.f32 %v368, %v1298
        %v1304 = vmul.f32 %v1302, %v1302
        %v1305 = vmul.f32 %v1303, %v1303
        %v1306 = vadd.f32 %v1295, %v1304
        %v1307 = vadd.f32 %v1296, %v1305
        %v1308 = vrot.slane %v921, 2
        %v1309 = vrot.slane %v923, 2
        %v1310 = vsel %vm453, %v1308, %v1309
        %v1313 = vsub.f32 %v369, %v1310
        %v1314 = vsub.f32 %v370, %v1309
        %v1315 = vmul.f32 %v1313, %v1313
        %v1316 = vmul.f32 %v1314, %v1314
        %v1317 = vadd.f32 %v1306, %v1315
        %v1318 = vadd.f32 %v1307, %v1316
        %v1319 = vrot.slane %v925, 2
        %v1320 = vrot.slane %v927, 2
        %v1321 = vsel %vm453, %v1319, %v1320
        %v1324 = vsub.f32 %v371, %v1321
        %v1325 = vsub.f32 %v372, %v1320
        %v1326 = vmul.f32 %v1324, %v1324
        %v1327 = vmul.f32 %v1325, %v1325
        %v1328 = vadd.f32 %v1317, %v1326
        %v1329 = vadd.f32 %v1318, %v1327
        %v1330 = vrsqrt.pop %v1328
        %v1331 = vmul.f32 %v1328, %v1330
        %vm1332 = vcmp.eq.f32.partialorder %v1328, inf
        %v1333 = vsel %vm1332, %v1328, %v1331
        %vm1334 = vcmp.eq.f32.partialorder %v1328, 0.0
        %v1335 = vand.u32 %v1328, 2147483648
        %v1336 = vsel %vm1334, %v1335, %v1333
        %v1337 = vrsqrt.pop %v1329
        %v1338 = vmul.f32 %v1329, %v1337
        %vm1339 = vcmp.eq.f32.partialorder %v1329, inf
        %v1340 = vsel %vm1339, %v1329, %v1338
        %vm1341 = vcmp.eq.f32.partialorder %v1329, 0.0
        %v1342 = vand.u32 %v1329, 2147483648
        %v1343 = vsel %vm1341, %v1342, %v1340
        %v1346 = vrot.slane %v1336, 6
        %v1347 = vrot.slane %v1343, 6
        %v1348 = vsel %vm853, %v1346, %v1347
        %v1351 = vsel %vm978, %v1346, 0.0
        %v1352 = vsel %vm1058, %v1348, 0.0
        %v1353 = vsub.f32 %v909, %v861
        %v1354 = vsub.f32 %v911, %v863
        %v1355 = vand.u32 2147483647, %v1353
        %v1356 = vand.u32 2147483647, %v1354
        %vm1357 = vcmp.le.f32.partialorder %v1355, %v870
        %vm1358 = vcmp.le.f32.partialorder %v1356, %v872
        %v1361 = vrot.slane %v1351, 4
        %v1362 = vrot.slane %v1352, 4
        %v1363 = vsel %vm879, %v1361, %v1362
        %v1365 = vadd.f32 %v1262, %v1363
        %v1366 = vrot.slane %v979, 4
        %v1367 = vrot.slane %v1059, 4
        %v1368 = vsel %vm879, %v1366, %v1367
        %v1370 = vadd.f32 %v1267, %v1368
        %v1371 = vsel %vm1357, %v1351, 0.0
        %v1372 = vsel %vm1358, %v1352, 0.0
        %v1375 = vrot.slane %v1371, 4
        %v1376 = vrot.slane %v1372, 4
        %v1377 = vsel %vm879, %v1375, %v1376
        %v1379 = vadd.f32 %v1276, %v1377
        %v1380 = vsel %vm1357, %v979, 0.0
        %v1381 = vsel %vm1358, %v1059, 0.0
        %v1384 = vrot.slane %v1380, 4
        %v1385 = vrot.slane %v1381, 4
        %v1386 = vsel %vm879, %v1384, %v1385
        %v1388 = vadd.f32 %v1285, %v1386
        %v1390 = vrot.slane %v365, 6
        %v1392 = vsub.f32 %v365, %v1390
        %v1393 = vsub.f32 %v366, %v1390
        %v1394 = vmul.f32 %v1392, %v1392
        %v1395 = vmul.f32 %v1393, %v1393
        %v1396 = vadd.f32 %v1394, 0.0
        %v1397 = vadd.f32 %v1395, 0.0
        %v1399 = vrot.slane %v367, 6
        %v1401 = vsub.f32 %v367, %v1399
        %v1402 = vsub.f32 %v368, %v1399
        %v1403 = vmul.f32 %v1401, %v1401
        %v1404 = vmul.f32 %v1402, %v1402
        %v1405 = vadd.f32 %v1396, %v1403
        %v1406 = vadd.f32 %v1397, %v1404
        %v1408 = vrot.slane %v369, 6
        %v1410 = vsub.f32 %v369, %v1408
        %v1411 = vsub.f32 %v370, %v1408
        %v1412 = vmul.f32 %v1410, %v1410
        %v1413 = vmul.f32 %v1411, %v1411
        %v1414 = vadd.f32 %v1405, %v1412
        %v1415 = vadd.f32 %v1406, %v1413
        %v1417 = vrot.slane %v371, 6
        %v1419 = vsub.f32 %v371, %v1417
        %v1420 = vsub.f32 %v372, %v1417
        %v1421 = vmul.f32 %v1419, %v1419
        %v1422 = vmul.f32 %v1420, %v1420
        %v1423 = vadd.f32 %v1414, %v1421
        %v1424 = vadd.f32 %v1415, %v1422
        %v1425 = vrsqrt.pop %v1423
        %v1426 = vmul.f32 %v1423, %v1425
        %vm1427 = vcmp.eq.f32.partialorder %v1423, inf
        %v1428 = vsel %vm1427, %v1423, %v1426
        %vm1429 = vcmp.eq.f32.partialorder %v1423, 0.0
        %v1430 = vand.u32 %v1423, 2147483648
        %v1431 = vsel %vm1429, %v1430, %v1428
        %v1432 = vrsqrt.pop %v1424
        %v1433 = vmul.f32 %v1424, %v1432
        %vm1434 = vcmp.eq.f32.partialorder %v1424, inf
        %v1435 = vsel %vm1434, %v1424, %v1433
        %vm1436 = vcmp.eq.f32.partialorder %v1424, 0.0
        %v1437 = vand.u32 %v1424, 2147483648
        %v1438 = vsel %vm1436, %v1437, %v1435
        %vm1439 = vcmp.gt.f32.partialorder %v373, 0.0
        %v1440 = vsel %vm1439, 1.0, 0.0
        %v1443 = vrot.slane %v1431, 2
        %v1444 = vrot.slane %v1438, 2
        %v1445 = vsel %vm453, %v1443, %v1444
        %v1447 = vsel %vm1439, %v1445, 0.0
        %v1448 = vsub.f32 %v373, %v463
        %v1449 = vand.u32 2147483647, %v1448
        %vm1450 = vcmp.le.f32.partialorder %v1449, %v471
        %v1451 = vadd.f32 %v1365, %v1447
        %v1452 = vadd.f32 %v1370, %v1440
        %v1453 = vsel %vm1450, %v1447, 0.0
        %v1454 = vadd.f32 %v1379, %v1453
        %v1455 = vsel %vm1450, %v1440, 0.0
        %v1456 = vadd.f32 %v1388, %v1455
        %v1458 = vrot.slane %v365, 7
        %v1459 = vrot.slane %v366, 7
        %v1460 = vsel %vm481, %v1458, %v1459
        %v1463 = vsub.f32 %v365, %v1458
        %v1464 = vsub.f32 %v366, %v1460
        %v1465 = vmul.f32 %v1463, %v1463
        %v1466 = vmul.f32 %v1464, %v1464
        %v1467 = vadd.f32 %v1465, 0.0
        %v1468 = vadd.f32 %v1466, 0.0
        %v1470 = vrot.slane %v367, 7
        %v1471 = vrot.slane %v368, 7
        %v1472 = vsel %vm481, %v1470, %v1471
        %v1475 = vsub.f32 %v367, %v1470
        %v1476 = vsub.f32 %v368, %v1472
        %v1477 = vmul.f32 %v1475, %v1475
        %v1478 = vmul.f32 %v1476, %v1476
        %v1479 = vadd.f32 %v1467, %v1477
        %v1480 = vadd.f32 %v1468, %v1478
        %v1482 = vrot.slane %v369, 7
        %v1483 = vrot.slane %v370, 7
        %v1484 = vsel %vm481, %v1482, %v1483
        %v1487 = vsub.f32 %v369, %v1482
        %v1488 = vsub.f32 %v370, %v1484
        %v1489 = vmul.f32 %v1487, %v1487
        %v1490 = vmul.f32 %v1488, %v1488
        %v1491 = vadd.f32 %v1479, %v1489
        %v1492 = vadd.f32 %v1480, %v1490
        %v1494 = vrot.slane %v371, 7
        %v1495 = vrot.slane %v372, 7
        %v1496 = vsel %vm481, %v1494, %v1495
        %v1499 = vsub.f32 %v371, %v1494
        %v1500 = vsub.f32 %v372, %v1496
        %v1501 = vmul.f32 %v1499, %v1499
        %v1502 = vmul.f32 %v1500, %v1500
        %v1503 = vadd.f32 %v1491, %v1501
        %v1504 = vadd.f32 %v1492, %v1502
        %v1505 = vrsqrt.pop %v1503
        %v1506 = vmul.f32 %v1503, %v1505
        %vm1507 = vcmp.eq.f32.partialorder %v1503, inf
        %v1508 = vsel %vm1507, %v1503, %v1506
        %vm1509 = vcmp.eq.f32.partialorder %v1503, 0.0
        %v1510 = vand.u32 %v1503, 2147483648
        %v1511 = vsel %vm1509, %v1510, %v1508
        %v1512 = vrsqrt.pop %v1504
        %v1513 = vmul.f32 %v1504, %v1512
        %vm1514 = vcmp.eq.f32.partialorder %v1504, inf
        %v1515 = vsel %vm1514, %v1504, %v1513
        %vm1516 = vcmp.eq.f32.partialorder %v1504, 0.0
        %v1517 = vand.u32 %v1504, 2147483648
        %v1518 = vsel %vm1516, %v1517, %v1515
        %vm1519 = vcmp.gt.f32.partialorder %v374, 0.0
        %v1520 = vsel %vm1519, 1.0, 0.0
        %v1523 = vrot.slane %v1511, 1
        %v1524 = vrot.slane %v1518, 1
        %v1525 = vsel %vm547, %v1523, %v1524
        %v1528 = vsel %vm1439, %v1525, 0.0
        %v1529 = vsel %vm1519, %v1524, 0.0
        %v1530 = vsub.f32 %v373, %v557
        %v1531 = vsub.f32 %v374, %v556
        %v1532 = vand.u32 2147483647, %v1530
        %v1533 = vand.u32 2147483647, %v1531
        %vm1534 = vcmp.le.f32.partialorder %v1532, %v566
        %vm1535 = vcmp.le.f32.partialorder %v1533, %v565
        %v1538 = vrot.slane %v1528, 1
        %v1539 = vrot.slane %v1529, 1
        %v1540 = vsel %vm547, %v1538, %v1539
        %v1542 = vadd.f32 %v1451, %v1540
        %v1545 = vrot.slane %v1440, 1
        %v1546 = vrot.slane %v1520, 1
        %v1547 = vsel %vm547, %v1545, %v1546
        %v1549 = vadd.f32 %v1452, %v1547
        %v1550 = vsel %vm1534, %v1528, 0.0
        %v1551 = vsel %vm1535, %v1529, 0.0
        %v1554 = vrot.slane %v1550, 1
        %v1555 = vrot.slane %v1551, 1
        %v1556 = vsel %vm547, %v1554, %v1555
        %v1558 = vadd.f32 %v1454, %v1556
        %v1559 = vsel %vm1534, %v1440, 0.0
        %v1560 = vsel %vm1535, %v1520, 0.0
        %v1563 = vrot.slane %v1559, 1
        %v1564 = vrot.slane %v1560, 1
        %v1565 = vsel %vm547, %v1563, %v1564
        %v1567 = vadd.f32 %v1456, %v1565
        %v1568 = vrot.slane %v365, 1
        %v1569 = vrot.slane %v366, 1
        %v1570 = vsel %vm547, %v1568, %v1569
        %v1573 = vsub.f32 %v365, %v1570
        %v1574 = vsub.f32 %v366, %v1569
        %v1575 = vmul.f32 %v1573, %v1573
        %v1576 = vmul.f32 %v1574, %v1574
        %v1577 = vadd.f32 %v1575, 0.0
        %v1578 = vadd.f32 %v1576, 0.0
        %v1579 = vrot.slane %v367, 1
        %v1580 = vrot.slane %v368, 1
        %v1581 = vsel %vm547, %v1579, %v1580
        %v1584 = vsub.f32 %v367, %v1581
        %v1585 = vsub.f32 %v368, %v1580
        %v1586 = vmul.f32 %v1584, %v1584
        %v1587 = vmul.f32 %v1585, %v1585
        %v1588 = vadd.f32 %v1577, %v1586
        %v1589 = vadd.f32 %v1578, %v1587
        %v1590 = vrot.slane %v369, 1
        %v1591 = vrot.slane %v370, 1
        %v1592 = vsel %vm547, %v1590, %v1591
        %v1595 = vsub.f32 %v369, %v1592
        %v1596 = vsub.f32 %v370, %v1591
        %v1597 = vmul.f32 %v1595, %v1595
        %v1598 = vmul.f32 %v1596, %v1596
        %v1599 = vadd.f32 %v1588, %v1597
        %v1600 = vadd.f32 %v1589, %v1598
        %v1601 = vrot.slane %v371, 1
        %v1602 = vrot.slane %v372, 1
        %v1603 = vsel %vm547, %v1601, %v1602
        %v1606 = vsub.f32 %v371, %v1603
        %v1607 = vsub.f32 %v372, %v1602
        %v1608 = vmul.f32 %v1606, %v1606
        %v1609 = vmul.f32 %v1607, %v1607
        %v1610 = vadd.f32 %v1599, %v1608
        %v1611 = vadd.f32 %v1600, %v1609
        %v1612 = vrsqrt.pop %v1610
        %v1613 = vmul.f32 %v1610, %v1612
        %vm1614 = vcmp.eq.f32.partialorder %v1610, inf
        %v1615 = vsel %vm1614, %v1610, %v1613
        %vm1616 = vcmp.eq.f32.partialorder %v1610, 0.0
        %v1617 = vand.u32 %v1610, 2147483648
        %v1618 = vsel %vm1616, %v1617, %v1615
        %v1619 = vrsqrt.pop %v1611
        %v1620 = vmul.f32 %v1611, %v1619
        %vm1621 = vcmp.eq.f32.partialorder %v1611, inf
        %v1622 = vsel %vm1621, %v1611, %v1620
        %vm1623 = vcmp.eq.f32.partialorder %v1611, 0.0
        %v1624 = vand.u32 %v1611, 2147483648
        %v1625 = vsel %vm1623, %v1624, %v1622
        %v1628 = vrot.slane %v1618, 7
        %v1629 = vrot.slane %v1625, 7
        %v1630 = vsel %vm481, %v1628, %v1629
        %v1633 = vsel %vm1439, %v1628, 0.0
        %v1634 = vsel %vm1519, %v1630, 0.0
        %v1635 = vsub.f32 %v373, %v746
        %v1636 = vsub.f32 %v374, %v748
        %v1637 = vand.u32 2147483647, %v1635
        %v1638 = vand.u32 2147483647, %v1636
        %vm1639 = vcmp.le.f32.partialorder %v1637, %v755
        %vm1640 = vcmp.le.f32.partialorder %v1638, %v757
        %v1643 = vrot.slane %v1633, 3
        %v1644 = vrot.slane %v1634, 3
        %v1645 = vsel %vm764, %v1643, %v1644
        %v1647 = vadd.f32 %v1542, %v1645
        %v1648 = vrot.slane %v1440, 3
        %v1649 = vrot.slane %v1520, 3
        %v1650 = vsel %vm764, %v1648, %v1649
        %v1652 = vadd.f32 %v1549, %v1650
        %v1653 = vsel %vm1639, %v1633, 0.0
        %v1654 = vsel %vm1640, %v1634, 0.0
        %v1657 = vrot.slane %v1653, 3
        %v1658 = vrot.slane %v1654, 3
        %v1659 = vsel %vm764, %v1657, %v1658
        %v1661 = vadd.f32 %v1558, %v1659
        %v1662 = vsel %vm1639, %v1440, 0.0
        %v1663 = vsel %vm1640, %v1520, 0.0
        %v1666 = vrot.slane %v1662, 3
        %v1667 = vrot.slane %v1663, 3
        %v1668 = vsel %vm764, %v1666, %v1667
        %v1670 = vadd.f32 %v1567, %v1668
        %v1671 = vrot.slane %v365, 2
        %v1672 = vrot.slane %v366, 2
        %v1673 = vsel %vm453, %v1671, %v1672
        %v1676 = vsub.f32 %v365, %v1673
        %v1677 = vsub.f32 %v366, %v1672
        %v1678 = vmul.f32 %v1676, %v1676
        %v1679 = vmul.f32 %v1677, %v1677
        %v1680 = vadd.f32 %v1678, 0.0
        %v1681 = vadd.f32 %v1679, 0.0
        %v1682 = vrot.slane %v367, 2
        %v1683 = vrot.slane %v368, 2
        %v1684 = vsel %vm453, %v1682, %v1683
        %v1687 = vsub.f32 %v367, %v1684
        %v1688 = vsub.f32 %v368, %v1683
        %v1689 = vmul.f32 %v1687, %v1687
        %v1690 = vmul.f32 %v1688, %v1688
        %v1691 = vadd.f32 %v1680, %v1689
        %v1692 = vadd.f32 %v1681, %v1690
        %v1693 = vrot.slane %v369, 2
        %v1694 = vrot.slane %v370, 2
        %v1695 = vsel %vm453, %v1693, %v1694
        %v1698 = vsub.f32 %v369, %v1695
        %v1699 = vsub.f32 %v370, %v1694
        %v1700 = vmul.f32 %v1698, %v1698
        %v1701 = vmul.f32 %v1699, %v1699
        %v1702 = vadd.f32 %v1691, %v1700
        %v1703 = vadd.f32 %v1692, %v1701
        %v1704 = vrot.slane %v371, 2
        %v1705 = vrot.slane %v372, 2
        %v1706 = vsel %vm453, %v1704, %v1705
        %v1709 = vsub.f32 %v371, %v1706
        %v1710 = vsub.f32 %v372, %v1705
        %v1711 = vmul.f32 %v1709, %v1709
        %v1712 = vmul.f32 %v1710, %v1710
        %v1713 = vadd.f32 %v1702, %v1711
        %v1714 = vadd.f32 %v1703, %v1712
        %v1715 = vrsqrt.pop %v1713
        %v1716 = vmul.f32 %v1713, %v1715
        %vm1717 = vcmp.eq.f32.partialorder %v1713, inf
        %v1718 = vsel %vm1717, %v1713, %v1716
        %vm1719 = vcmp.eq.f32.partialorder %v1713, 0.0
        %v1720 = vand.u32 %v1713, 2147483648
        %v1721 = vsel %vm1719, %v1720, %v1718
        %v1722 = vrsqrt.pop %v1714
        %v1723 = vmul.f32 %v1714, %v1722
        %vm1724 = vcmp.eq.f32.partialorder %v1714, inf
        %v1725 = vsel %vm1724, %v1714, %v1723
        %vm1726 = vcmp.eq.f32.partialorder %v1714, 0.0
        %v1727 = vand.u32 %v1714, 2147483648
        %v1728 = vsel %vm1726, %v1727, %v1725
        %v1731 = vrot.slane %v1721, 6
        %v1732 = vrot.slane %v1728, 6
        %v1733 = vsel %vm853, %v1731, %v1732
        %v1736 = vsel %vm1439, %v1731, 0.0
        %v1737 = vsel %vm1519, %v1733, 0.0
        %v1738 = vsub.f32 %v373, %v861
        %v1739 = vsub.f32 %v374, %v863
        %v1740 = vand.u32 2147483647, %v1738
        %v1741 = vand.u32 2147483647, %v1739
        %vm1742 = vcmp.le.f32.partialorder %v1740, %v870
        %vm1743 = vcmp.le.f32.partialorder %v1741, %v872
        %v1746 = vrot.slane %v1736, 4
        %v1747 = vrot.slane %v1737, 4
        %v1748 = vsel %vm879, %v1746, %v1747
        %v1750 = vadd.f32 %v1647, %v1748
        %v1751 = vrot.slane %v1440, 4
        %v1752 = vrot.slane %v1520, 4
        %v1753 = vsel %vm879, %v1751, %v1752
        %v1755 = vadd.f32 %v1652, %v1753
        %v1756 = vsel %vm1742, %v1736, 0.0
        %v1757 = vsel %vm1743, %v1737, 0.0
        %v1760 = vrot.slane %v1756, 4
        %v1761 = vrot.slane %v1757, 4
        %v1762 = vsel %vm879, %v1760, %v1761
        %v1764 = vadd.f32 %v1661, %v1762
        %v1765 = vsel %vm1742, %v1440, 0.0
        %v1766 = vsel %vm1743, %v1520, 0.0
        %v1769 = vrot.slane %v1765, 4
        %v1770 = vrot.slane %v1766, 4
        %v1771 = vsel %vm879, %v1769, %v1770
        %v1773 = vadd.f32 %v1670, %v1771
        %1774 = vrot.lane.b32.xlu0 %v373, 127
        %v1775 = vpop.permute.xlu0 %1774
        %1776 = vrot.lane.b32.xlu0 %v374, 127
        %v1777 = vpop.permute.xlu0 %1776
        %1778 = vrot.lane.b32.xlu0 %v365, 127
        %v1779 = vpop.permute.xlu0 %1778
        %1780 = vrot.lane.b32.xlu0 %v366, 127
        %v1781 = vpop.permute.xlu0 %1780
        %1782 = vrot.lane.b32.xlu0 %v367, 127
        %v1783 = vpop.permute.xlu0 %1782
        %1784 = vrot.lane.b32.xlu0 %v368, 127
        %v1785 = vpop.permute.xlu0 %1784
        %1786 = vrot.lane.b32.xlu0 %v369, 127
        %v1787 = vpop.permute.xlu0 %1786
        %1788 = vrot.lane.b32.xlu0 %v370, 127
        %v1789 = vpop.permute.xlu0 %1788
        %1790 = vrot.lane.b32.xlu0 %v371, 127
        %v1791 = vpop.permute.xlu0 %1790
        %1792 = vrot.lane.b32.xlu0 %v372, 127
        %v1793 = vpop.permute.xlu0 %1792
        %v1795 = vrot.slane %v1779, 6
        %v1797 = vsub.f32 %v365, %v1795
        %v1798 = vsub.f32 %v366, %v1795
        %v1799 = vmul.f32 %v1797, %v1797
        %v1800 = vmul.f32 %v1798, %v1798
        %v1801 = vadd.f32 %v1799, 0.0
        %v1802 = vadd.f32 %v1800, 0.0
        %v1804 = vrot.slane %v1783, 6
        %v1806 = vsub.f32 %v367, %v1804
        %v1807 = vsub.f32 %v368, %v1804
        %v1808 = vmul.f32 %v1806, %v1806
        %v1809 = vmul.f32 %v1807, %v1807
        %v1810 = vadd.f32 %v1801, %v1808
        %v1811 = vadd.f32 %v1802, %v1809
        %v1813 = vrot.slane %v1787, 6
        %v1815 = vsub.f32 %v369, %v1813
        %v1816 = vsub.f32 %v370, %v1813
        %v1817 = vmul.f32 %v1815, %v1815
        %v1818 = vmul.f32 %v1816, %v1816
        %v1819 = vadd.f32 %v1810, %v1817
        %v1820 = vadd.f32 %v1811, %v1818
        %v1822 = vrot.slane %v1791, 6
        %v1824 = vsub.f32 %v371, %v1822
        %v1825 = vsub.f32 %v372, %v1822
        %v1826 = vmul.f32 %v1824, %v1824
        %v1827 = vmul.f32 %v1825, %v1825
        %v1828 = vadd.f32 %v1819, %v1826
        %v1829 = vadd.f32 %v1820, %v1827
        %v1830 = vrsqrt.pop %v1828
        %v1831 = vmul.f32 %v1828, %v1830
        %vm1832 = vcmp.eq.f32.partialorder %v1828, inf
        %v1833 = vsel %vm1832, %v1828, %v1831
        %vm1834 = vcmp.eq.f32.partialorder %v1828, 0.0
        %v1835 = vand.u32 %v1828, 2147483648
        %v1836 = vsel %vm1834, %v1835, %v1833
        %v1837 = vrsqrt.pop %v1829
        %v1838 = vmul.f32 %v1829, %v1837
        %vm1839 = vcmp.eq.f32.partialorder %v1829, inf
        %v1840 = vsel %vm1839, %v1829, %v1838
        %vm1841 = vcmp.eq.f32.partialorder %v1829, 0.0
        %v1842 = vand.u32 %v1829, 2147483648
        %v1843 = vsel %vm1841, %v1842, %v1840
        %vm1844 = vcmp.gt.f32.partialorder %v1775, 0.0
        %v1845 = vsel %vm1844, 1.0, 0.0
        %v1848 = vrot.slane %v1836, 2
        %v1849 = vrot.slane %v1843, 2
        %v1850 = vsel %vm453, %v1848, %v1849
        %v1852 = vsel %vm1844, %v1850, 0.0
        %v1853 = vsub.f32 %v1775, %v463
        %v1854 = vand.u32 2147483647, %v1853
        %vm1855 = vcmp.le.f32.partialorder %v1854, %v471
        %v1856 = vadd.f32 %v1750, %v1852
        %v1857 = vadd.f32 %v1755, %v1845
        %v1858 = vsel %vm1855, %v1852, 0.0
        %v1859 = vadd.f32 %v1764, %v1858
        %v1860 = vsel %vm1855, %v1845, 0.0
        %v1861 = vadd.f32 %v1773, %v1860
        %v1863 = vrot.slane %v1779, 7
        %v1864 = vrot.slane %v1781, 7
        %v1865 = vsel %vm481, %v1863, %v1864
        %v1868 = vsub.f32 %v365, %v1863
        %v1869 = vsub.f32 %v366, %v1865
        %v1870 = vmul.f32 %v1868, %v1868
        %v1871 = vmul.f32 %v1869, %v1869
        %v1872 = vadd.f32 %v1870, 0.0
        %v1873 = vadd.f32 %v1871, 0.0
        %v1875 = vrot.slane %v1783, 7
        %v1876 = vrot.slane %v1785, 7
        %v1877 = vsel %vm481, %v1875, %v1876
        %v1880 = vsub.f32 %v367, %v1875
        %v1881 = vsub.f32 %v368, %v1877
        %v1882 = vmul.f32 %v1880, %v1880
        %v1883 = vmul.f32 %v1881, %v1881
        %v1884 = vadd.f32 %v1872, %v1882
        %v1885 = vadd.f32 %v1873, %v1883
        %v1887 = vrot.slane %v1787, 7
        %v1888 = vrot.slane %v1789, 7
        %v1889 = vsel %vm481, %v1887, %v1888
        %v1892 = vsub.f32 %v369, %v1887
        %v1893 = vsub.f32 %v370, %v1889
        %v1894 = vmul.f32 %v1892, %v1892
        %v1895 = vmul.f32 %v1893, %v1893
        %v1896 = vadd.f32 %v1884, %v1894
        %v1897 = vadd.f32 %v1885, %v1895
        %v1899 = vrot.slane %v1791, 7
        %v1900 = vrot.slane %v1793, 7
        %v1901 = vsel %vm481, %v1899, %v1900
        %v1904 = vsub.f32 %v371, %v1899
        %v1905 = vsub.f32 %v372, %v1901
        %v1906 = vmul.f32 %v1904, %v1904
        %v1907 = vmul.f32 %v1905, %v1905
        %v1908 = vadd.f32 %v1896, %v1906
        %v1909 = vadd.f32 %v1897, %v1907
        %v1910 = vrsqrt.pop %v1908
        %v1911 = vmul.f32 %v1908, %v1910
        %vm1912 = vcmp.eq.f32.partialorder %v1908, inf
        %v1913 = vsel %vm1912, %v1908, %v1911
        %vm1914 = vcmp.eq.f32.partialorder %v1908, 0.0
        %v1915 = vand.u32 %v1908, 2147483648
        %v1916 = vsel %vm1914, %v1915, %v1913
        %v1917 = vrsqrt.pop %v1909
        %v1918 = vmul.f32 %v1909, %v1917
        %vm1919 = vcmp.eq.f32.partialorder %v1909, inf
        %v1920 = vsel %vm1919, %v1909, %v1918
        %vm1921 = vcmp.eq.f32.partialorder %v1909, 0.0
        %v1922 = vand.u32 %v1909, 2147483648
        %v1923 = vsel %vm1921, %v1922, %v1920
        %vm1924 = vcmp.gt.f32.partialorder %v1777, 0.0
        %v1925 = vsel %vm1924, 1.0, 0.0
        %v1928 = vrot.slane %v1916, 1
        %v1929 = vrot.slane %v1923, 1
        %v1930 = vsel %vm547, %v1928, %v1929
        %v1933 = vsel %vm1844, %v1930, 0.0
        %v1934 = vsel %vm1924, %v1929, 0.0
        %v1935 = vsub.f32 %v1775, %v557
        %v1936 = vsub.f32 %v1777, %v556
        %v1937 = vand.u32 2147483647, %v1935
        %v1938 = vand.u32 2147483647, %v1936
        %vm1939 = vcmp.le.f32.partialorder %v1937, %v566
        %vm1940 = vcmp.le.f32.partialorder %v1938, %v565
        %v1943 = vrot.slane %v1933, 1
        %v1944 = vrot.slane %v1934, 1
        %v1945 = vsel %vm547, %v1943, %v1944
        %v1947 = vadd.f32 %v1856, %v1945
        %v1950 = vrot.slane %v1845, 1
        %v1951 = vrot.slane %v1925, 1
        %v1952 = vsel %vm547, %v1950, %v1951
        %v1954 = vadd.f32 %v1857, %v1952
        %v1955 = vsel %vm1939, %v1933, 0.0
        %v1956 = vsel %vm1940, %v1934, 0.0
        %v1959 = vrot.slane %v1955, 1
        %v1960 = vrot.slane %v1956, 1
        %v1961 = vsel %vm547, %v1959, %v1960
        %v1963 = vadd.f32 %v1859, %v1961
        %v1964 = vsel %vm1939, %v1845, 0.0
        %v1965 = vsel %vm1940, %v1925, 0.0
        %v1968 = vrot.slane %v1964, 1
        %v1969 = vrot.slane %v1965, 1
        %v1970 = vsel %vm547, %v1968, %v1969
        %v1972 = vadd.f32 %v1861, %v1970
        %v1973 = vsub.f32 %v365, %v1779
        %v1974 = vsub.f32 %v366, %v1781
        %v1975 = vmul.f32 %v1973, %v1973
        %v1976 = vmul.f32 %v1974, %v1974
        %v1977 = vadd.f32 %v1975, 0.0
        %v1978 = vadd.f32 %v1976, 0.0
        %v1979 = vsub.f32 %v367, %v1783
        %v1980 = vsub.f32 %v368, %v1785
        %v1981 = vmul.f32 %v1979, %v1979
        %v1982 = vmul.f32 %v1980, %v1980
        %v1983 = vadd.f32 %v1977, %v1981
        %v1984 = vadd.f32 %v1978, %v1982
        %v1985 = vsub.f32 %v369, %v1787
        %v1986 = vsub.f32 %v370, %v1789
        %v1987 = vmul.f32 %v1985, %v1985
        %v1988 = vmul.f32 %v1986, %v1986
        %v1989 = vadd.f32 %v1983, %v1987
        %v1990 = vadd.f32 %v1984, %v1988
        %v1991 = vsub.f32 %v371, %v1791
        %v1992 = vsub.f32 %v372, %v1793
        %v1993 = vmul.f32 %v1991, %v1991
        %v1994 = vmul.f32 %v1992, %v1992
        %v1995 = vadd.f32 %v1989, %v1993
        %v1996 = vadd.f32 %v1990, %v1994
        %v1997 = vrsqrt.pop %v1995
        %v1998 = vmul.f32 %v1995, %v1997
        %vm1999 = vcmp.eq.f32.partialorder %v1995, inf
        %v2000 = vsel %vm1999, %v1995, %v1998
        %vm2001 = vcmp.eq.f32.partialorder %v1995, 0.0
        %v2002 = vand.u32 %v1995, 2147483648
        %v2003 = vsel %vm2001, %v2002, %v2000
        %v2004 = vrsqrt.pop %v1996
        %v2005 = vmul.f32 %v1996, %v2004
        %vm2006 = vcmp.eq.f32.partialorder %v1996, inf
        %v2007 = vsel %vm2006, %v1996, %v2005
        %vm2008 = vcmp.eq.f32.partialorder %v1996, 0.0
        %v2009 = vand.u32 %v1996, 2147483648
        %v2010 = vsel %vm2008, %v2009, %v2007
        %v2011 = vsel %vm1844, %v2003, 0.0
        %v2012 = vsel %vm1924, %v2010, 0.0
        %v2013 = vsub.f32 %v1775, %v373
        %v2014 = vsub.f32 %v1777, %v374
        %v2015 = vand.u32 2147483647, %v2013
        %v2016 = vand.u32 2147483647, %v2014
        %vm2017 = vcmp.le.f32.partialorder %v2015, %v377
        %vm2018 = vcmp.le.f32.partialorder %v2016, %v378
        %v2021 = vrot.slane %v2011, 2
        %v2022 = vrot.slane %v2012, 2
        %v2023 = vsel %vm453, %v2021, %v2022
        %v2025 = vadd.f32 %v1947, %v2023
        %v2026 = vrot.slane %v1845, 2
        %v2027 = vrot.slane %v1925, 2
        %v2028 = vsel %vm453, %v2026, %v2027
        %v2030 = vadd.f32 %v1954, %v2028
        %v2031 = vsel %vm2017, %v2011, 0.0
        %v2032 = vsel %vm2018, %v2012, 0.0
        %v2035 = vrot.slane %v2031, 2
        %v2036 = vrot.slane %v2032, 2
        %v2037 = vsel %vm453, %v2035, %v2036
        %v2039 = vadd.f32 %v1963, %v2037
        %v2040 = vsel %vm2017, %v1845, 0.0
        %v2041 = vsel %vm2018, %v1925, 0.0
        %v2044 = vrot.slane %v2040, 2
        %v2045 = vrot.slane %v2041, 2
        %v2046 = vsel %vm453, %v2044, %v2045
        %v2048 = vadd.f32 %v1972, %v2046
        %v2049 = vrot.slane %v1779, 1
        %v2050 = vrot.slane %v1781, 1
        %v2051 = vsel %vm547, %v2049, %v2050
        %v2054 = vsub.f32 %v365, %v2051
        %v2055 = vsub.f32 %v366, %v2050
        %v2056 = vmul.f32 %v2054, %v2054
        %v2057 = vmul.f32 %v2055, %v2055
        %v2058 = vadd.f32 %v2056, 0.0
        %v2059 = vadd.f32 %v2057, 0.0
        %v2060 = vrot.slane %v1783, 1
        %v2061 = vrot.slane %v1785, 1
        %v2062 = vsel %vm547, %v2060, %v2061
        %v2065 = vsub.f32 %v367, %v2062
        %v2066 = vsub.f32 %v368, %v2061
        %v2067 = vmul.f32 %v2065, %v2065
        %v2068 = vmul.f32 %v2066, %v2066
        %v2069 = vadd.f32 %v2058, %v2067
        %v2070 = vadd.f32 %v2059, %v2068
        %v2071 = vrot.slane %v1787, 1
        %v2072 = vrot.slane %v1789, 1
        %v2073 = vsel %vm547, %v2071, %v2072
        %v2076 = vsub.f32 %v369, %v2073
        %v2077 = vsub.f32 %v370, %v2072
        %v2078 = vmul.f32 %v2076, %v2076
        %v2079 = vmul.f32 %v2077, %v2077
        %v2080 = vadd.f32 %v2069, %v2078
        %v2081 = vadd.f32 %v2070, %v2079
        %v2082 = vrot.slane %v1791, 1
        %v2083 = vrot.slane %v1793, 1
        %v2084 = vsel %vm547, %v2082, %v2083
        %v2087 = vsub.f32 %v371, %v2084
        %v2088 = vsub.f32 %v372, %v2083
        %v2089 = vmul.f32 %v2087, %v2087
        %v2090 = vmul.f32 %v2088, %v2088
        %v2091 = vadd.f32 %v2080, %v2089
        %v2092 = vadd.f32 %v2081, %v2090
        %v2093 = vrsqrt.pop %v2091
        %v2094 = vmul.f32 %v2091, %v2093
        %vm2095 = vcmp.eq.f32.partialorder %v2091, inf
        %v2096 = vsel %vm2095, %v2091, %v2094
        %vm2097 = vcmp.eq.f32.partialorder %v2091, 0.0
        %v2098 = vand.u32 %v2091, 2147483648
        %v2099 = vsel %vm2097, %v2098, %v2096
        %v2100 = vrsqrt.pop %v2092
        %v2101 = vmul.f32 %v2092, %v2100
        %vm2102 = vcmp.eq.f32.partialorder %v2092, inf
        %v2103 = vsel %vm2102, %v2092, %v2101
        %vm2104 = vcmp.eq.f32.partialorder %v2092, 0.0
        %v2105 = vand.u32 %v2092, 2147483648
        %v2106 = vsel %vm2104, %v2105, %v2103
        %v2109 = vrot.slane %v2099, 7
        %v2110 = vrot.slane %v2106, 7
        %v2111 = vsel %vm481, %v2109, %v2110
        %v2114 = vsel %vm1844, %v2109, 0.0
        %v2115 = vsel %vm1924, %v2111, 0.0
        %v2116 = vsub.f32 %v1775, %v746
        %v2117 = vsub.f32 %v1777, %v748
        %v2118 = vand.u32 2147483647, %v2116
        %v2119 = vand.u32 2147483647, %v2117
        %vm2120 = vcmp.le.f32.partialorder %v2118, %v755
        %vm2121 = vcmp.le.f32.partialorder %v2119, %v757
        %v2124 = vrot.slane %v2114, 3
        %v2125 = vrot.slane %v2115, 3
        %v2126 = vsel %vm764, %v2124, %v2125
        %v2128 = vadd.f32 %v2025, %v2126
        %v2129 = vrot.slane %v1845, 3
        %v2130 = vrot.slane %v1925, 3
        %v2131 = vsel %vm764, %v2129, %v2130
        %v2133 = vadd.f32 %v2030, %v2131
        %v2134 = vsel %vm2120, %v2114, 0.0
        %v2135 = vsel %vm2121, %v2115, 0.0
        %v2138 = vrot.slane %v2134, 3
        %v2139 = vrot.slane %v2135, 3
        %v2140 = vsel %vm764, %v2138, %v2139
        %v2142 = vadd.f32 %v2039, %v2140
        %v2143 = vsel %vm2120, %v1845, 0.0
        %v2144 = vsel %vm2121, %v1925, 0.0
        %v2147 = vrot.slane %v2143, 3
        %v2148 = vrot.slane %v2144, 3
        %v2149 = vsel %vm764, %v2147, %v2148
        %v2151 = vadd.f32 %v2048, %v2149
        %v2152 = vrot.slane %v1779, 2
        %v2153 = vrot.slane %v1781, 2
        %v2154 = vsel %vm453, %v2152, %v2153
        %v2157 = vsub.f32 %v365, %v2154
        %v2158 = vsub.f32 %v366, %v2153
        %v2159 = vmul.f32 %v2157, %v2157
        %v2160 = vmul.f32 %v2158, %v2158
        %v2161 = vadd.f32 %v2159, 0.0
        %v2162 = vadd.f32 %v2160, 0.0
        %v2163 = vrot.slane %v1783, 2
        %v2164 = vrot.slane %v1785, 2
        %v2165 = vsel %vm453, %v2163, %v2164
        %v2168 = vsub.f32 %v367, %v2165
        %v2169 = vsub.f32 %v368, %v2164
        %v2170 = vmul.f32 %v2168, %v2168
        %v2171 = vmul.f32 %v2169, %v2169
        %v2172 = vadd.f32 %v2161, %v2170
        %v2173 = vadd.f32 %v2162, %v2171
        %v2174 = vrot.slane %v1787, 2
        %v2175 = vrot.slane %v1789, 2
        %v2176 = vsel %vm453, %v2174, %v2175
        %v2179 = vsub.f32 %v369, %v2176
        %v2180 = vsub.f32 %v370, %v2175
        %v2181 = vmul.f32 %v2179, %v2179
        %v2182 = vmul.f32 %v2180, %v2180
        %v2183 = vadd.f32 %v2172, %v2181
        %v2184 = vadd.f32 %v2173, %v2182
        %v2185 = vrot.slane %v1791, 2
        %v2186 = vrot.slane %v1793, 2
        %v2187 = vsel %vm453, %v2185, %v2186
        %v2190 = vsub.f32 %v371, %v2187
        %v2191 = vsub.f32 %v372, %v2186
        %v2192 = vmul.f32 %v2190, %v2190
        %v2193 = vmul.f32 %v2191, %v2191
        %v2194 = vadd.f32 %v2183, %v2192
        %v2195 = vadd.f32 %v2184, %v2193
        %v2196 = vrsqrt.pop %v2194
        %v2197 = vmul.f32 %v2194, %v2196
        %vm2198 = vcmp.eq.f32.partialorder %v2194, inf
        %v2199 = vsel %vm2198, %v2194, %v2197
        %vm2200 = vcmp.eq.f32.partialorder %v2194, 0.0
        %v2201 = vand.u32 %v2194, 2147483648
        %v2202 = vsel %vm2200, %v2201, %v2199
        %v2203 = vrsqrt.pop %v2195
        %v2204 = vmul.f32 %v2195, %v2203
        %vm2205 = vcmp.eq.f32.partialorder %v2195, inf
        %v2206 = vsel %vm2205, %v2195, %v2204
        %vm2207 = vcmp.eq.f32.partialorder %v2195, 0.0
        %v2208 = vand.u32 %v2195, 2147483648
        %v2209 = vsel %vm2207, %v2208, %v2206
        %v2212 = vrot.slane %v2202, 6
        %v2213 = vrot.slane %v2209, 6
        %v2214 = vsel %vm853, %v2212, %v2213
        %v2217 = vsel %vm1844, %v2212, 0.0
        %v2218 = vsel %vm1924, %v2214, 0.0
        %v2219 = vsub.f32 %v1775, %v861
        %v2220 = vsub.f32 %v1777, %v863
        %v2221 = vand.u32 2147483647, %v2219
        %v2222 = vand.u32 2147483647, %v2220
        %vm2223 = vcmp.le.f32.partialorder %v2221, %v870
        %vm2224 = vcmp.le.f32.partialorder %v2222, %v872
        %v2227 = vrot.slane %v2217, 4
        %v2228 = vrot.slane %v2218, 4
        %v2229 = vsel %vm879, %v2227, %v2228
        %v2231 = vadd.f32 %v2128, %v2229
        %v2232 = vrot.slane %v1845, 4
        %v2233 = vrot.slane %v1925, 4
        %v2234 = vsel %vm879, %v2232, %v2233
        %v2236 = vadd.f32 %v2133, %v2234
        %v2237 = vsel %vm2223, %v2217, 0.0
        %v2238 = vsel %vm2224, %v2218, 0.0
        %v2241 = vrot.slane %v2237, 4
        %v2242 = vrot.slane %v2238, 4
        %v2243 = vsel %vm879, %v2241, %v2242
        %v2245 = vadd.f32 %v2142, %v2243
        %v2246 = vsel %vm2223, %v1845, 0.0
        %v2247 = vsel %vm2224, %v1925, 0.0
        %v2250 = vrot.slane %v2246, 4
        %v2251 = vrot.slane %v2247, 4
        %v2252 = vsel %vm879, %v2250, %v2251
        %v2254 = vadd.f32 %v2151, %v2252
        %2255 = vrot.lane.b32.xlu0 %v373, 126
        %v2256 = vpop.permute.xlu0 %2255
        %2257 = vrot.lane.b32.xlu0 %v374, 126
        %v2258 = vpop.permute.xlu0 %2257
        %2259 = vrot.lane.b32.xlu0 %v365, 126
        %v2260 = vpop.permute.xlu0 %2259
        %2261 = vrot.lane.b32.xlu0 %v366, 126
        %v2262 = vpop.permute.xlu0 %2261
        %2263 = vrot.lane.b32.xlu0 %v367, 126
        %v2264 = vpop.permute.xlu0 %2263
        %2265 = vrot.lane.b32.xlu0 %v368, 126
        %v2266 = vpop.permute.xlu0 %2265
        %2267 = vrot.lane.b32.xlu0 %v369, 126
        %v2268 = vpop.permute.xlu0 %2267
        %2269 = vrot.lane.b32.xlu0 %v370, 126
        %v2270 = vpop.permute.xlu0 %2269
        %2271 = vrot.lane.b32.xlu0 %v371, 126
        %v2272 = vpop.permute.xlu0 %2271
        %2273 = vrot.lane.b32.xlu0 %v372, 126
        %v2274 = vpop.permute.xlu0 %2273
        %v2276 = vrot.slane %v2260, 6
        %v2278 = vsub.f32 %v365, %v2276
        %v2279 = vsub.f32 %v366, %v2276
        %v2280 = vmul.f32 %v2278, %v2278
        %v2281 = vmul.f32 %v2279, %v2279
        %v2282 = vadd.f32 %v2280, 0.0
        %v2283 = vadd.f32 %v2281, 0.0
        %v2285 = vrot.slane %v2264, 6
        %v2287 = vsub.f32 %v367, %v2285
        %v2288 = vsub.f32 %v368, %v2285
        %v2289 = vmul.f32 %v2287, %v2287
        %v2290 = vmul.f32 %v2288, %v2288
        %v2291 = vadd.f32 %v2282, %v2289
        %v2292 = vadd.f32 %v2283, %v2290
        %v2294 = vrot.slane %v2268, 6
        %v2296 = vsub.f32 %v369, %v2294
        %v2297 = vsub.f32 %v370, %v2294
        %v2298 = vmul.f32 %v2296, %v2296
        %v2299 = vmul.f32 %v2297, %v2297
        %v2300 = vadd.f32 %v2291, %v2298
        %v2301 = vadd.f32 %v2292, %v2299
        %v2303 = vrot.slane %v2272, 6
        %v2305 = vsub.f32 %v371, %v2303
        %v2306 = vsub.f32 %v372, %v2303
        %v2307 = vmul.f32 %v2305, %v2305
        %v2308 = vmul.f32 %v2306, %v2306
        %v2309 = vadd.f32 %v2300, %v2307
        %v2310 = vadd.f32 %v2301, %v2308
        %v2311 = vrsqrt.pop %v2309
        %v2312 = vmul.f32 %v2309, %v2311
        %vm2313 = vcmp.eq.f32.partialorder %v2309, inf
        %v2314 = vsel %vm2313, %v2309, %v2312
        %vm2315 = vcmp.eq.f32.partialorder %v2309, 0.0
        %v2316 = vand.u32 %v2309, 2147483648
        %v2317 = vsel %vm2315, %v2316, %v2314
        %v2318 = vrsqrt.pop %v2310
        %v2319 = vmul.f32 %v2310, %v2318
        %vm2320 = vcmp.eq.f32.partialorder %v2310, inf
        %v2321 = vsel %vm2320, %v2310, %v2319
        %vm2322 = vcmp.eq.f32.partialorder %v2310, 0.0
        %v2323 = vand.u32 %v2310, 2147483648
        %v2324 = vsel %vm2322, %v2323, %v2321
        %vm2325 = vcmp.gt.f32.partialorder %v2256, 0.0
        %v2326 = vsel %vm2325, 1.0, 0.0
        %v2329 = vrot.slane %v2317, 2
        %v2330 = vrot.slane %v2324, 2
        %v2331 = vsel %vm453, %v2329, %v2330
        %v2333 = vsel %vm2325, %v2331, 0.0
        %v2334 = vsub.f32 %v2256, %v463
        %v2335 = vand.u32 2147483647, %v2334
        %vm2336 = vcmp.le.f32.partialorder %v2335, %v471
        %v2337 = vadd.f32 %v2231, %v2333
        %v2338 = vadd.f32 %v2236, %v2326
        %v2339 = vsel %vm2336, %v2333, 0.0
        %v2340 = vadd.f32 %v2245, %v2339
        %v2341 = vsel %vm2336, %v2326, 0.0
        %v2342 = vadd.f32 %v2254, %v2341
        %v2344 = vrot.slane %v2260, 7
        %v2345 = vrot.slane %v2262, 7
        %v2346 = vsel %vm481, %v2344, %v2345
        %v2349 = vsub.f32 %v365, %v2344
        %v2350 = vsub.f32 %v366, %v2346
        %v2351 = vmul.f32 %v2349, %v2349
        %v2352 = vmul.f32 %v2350, %v2350
        %v2353 = vadd.f32 %v2351, 0.0
        %v2354 = vadd.f32 %v2352, 0.0
        %v2356 = vrot.slane %v2264, 7
        %v2357 = vrot.slane %v2266, 7
        %v2358 = vsel %vm481, %v2356, %v2357
        %v2361 = vsub.f32 %v367, %v2356
        %v2362 = vsub.f32 %v368, %v2358
        %v2363 = vmul.f32 %v2361, %v2361
        %v2364 = vmul.f32 %v2362, %v2362
        %v2365 = vadd.f32 %v2353, %v2363
        %v2366 = vadd.f32 %v2354, %v2364
        %v2368 = vrot.slane %v2268, 7
        %v2369 = vrot.slane %v2270, 7
        %v2370 = vsel %vm481, %v2368, %v2369
        %v2373 = vsub.f32 %v369, %v2368
        %v2374 = vsub.f32 %v370, %v2370
        %v2375 = vmul.f32 %v2373, %v2373
        %v2376 = vmul.f32 %v2374, %v2374
        %v2377 = vadd.f32 %v2365, %v2375
        %v2378 = vadd.f32 %v2366, %v2376
        %v2380 = vrot.slane %v2272, 7
        %v2381 = vrot.slane %v2274, 7
        %v2382 = vsel %vm481, %v2380, %v2381
        %v2385 = vsub.f32 %v371, %v2380
        %v2386 = vsub.f32 %v372, %v2382
        %v2387 = vmul.f32 %v2385, %v2385
        %v2388 = vmul.f32 %v2386, %v2386
        %v2389 = vadd.f32 %v2377, %v2387
        %v2390 = vadd.f32 %v2378, %v2388
        %v2391 = vrsqrt.pop %v2389
        %v2392 = vmul.f32 %v2389, %v2391
        %vm2393 = vcmp.eq.f32.partialorder %v2389, inf
        %v2394 = vsel %vm2393, %v2389, %v2392
        %vm2395 = vcmp.eq.f32.partialorder %v2389, 0.0
        %v2396 = vand.u32 %v2389, 2147483648
        %v2397 = vsel %vm2395, %v2396, %v2394
        %v2398 = vrsqrt.pop %v2390
        %v2399 = vmul.f32 %v2390, %v2398
        %vm2400 = vcmp.eq.f32.partialorder %v2390, inf
        %v2401 = vsel %vm2400, %v2390, %v2399
        %vm2402 = vcmp.eq.f32.partialorder %v2390, 0.0
        %v2403 = vand.u32 %v2390, 2147483648
        %v2404 = vsel %vm2402, %v2403, %v2401
        %vm2405 = vcmp.gt.f32.partialorder %v2258, 0.0
        %v2406 = vsel %vm2405, 1.0, 0.0
        %v2409 = vrot.slane %v2397, 1
        %v2410 = vrot.slane %v2404, 1
        %v2411 = vsel %vm547, %v2409, %v2410
        %v2414 = vsel %vm2325, %v2411, 0.0
        %v2415 = vsel %vm2405, %v2410, 0.0
        %v2416 = vsub.f32 %v2256, %v557
        %v2417 = vsub.f32 %v2258, %v556
        %v2418 = vand.u32 2147483647, %v2416
        %v2419 = vand.u32 2147483647, %v2417
        %vm2420 = vcmp.le.f32.partialorder %v2418, %v566
        %vm2421 = vcmp.le.f32.partialorder %v2419, %v565
        %v2424 = vrot.slane %v2414, 1
        %v2425 = vrot.slane %v2415, 1
        %v2426 = vsel %vm547, %v2424, %v2425
        %v2428 = vadd.f32 %v2337, %v2426
        %v2431 = vrot.slane %v2326, 1
        %v2432 = vrot.slane %v2406, 1
        %v2433 = vsel %vm547, %v2431, %v2432
        %v2435 = vadd.f32 %v2338, %v2433
        %v2436 = vsel %vm2420, %v2414, 0.0
        %v2437 = vsel %vm2421, %v2415, 0.0
        %v2440 = vrot.slane %v2436, 1
        %v2441 = vrot.slane %v2437, 1
        %v2442 = vsel %vm547, %v2440, %v2441
        %v2444 = vadd.f32 %v2340, %v2442
        %v2445 = vsel %vm2420, %v2326, 0.0
        %v2446 = vsel %vm2421, %v2406, 0.0
        %v2449 = vrot.slane %v2445, 1
        %v2450 = vrot.slane %v2446, 1
        %v2451 = vsel %vm547, %v2449, %v2450
        %v2453 = vadd.f32 %v2342, %v2451
        %v2454 = vsub.f32 %v365, %v2260
        %v2455 = vsub.f32 %v366, %v2262
        %v2456 = vmul.f32 %v2454, %v2454
        %v2457 = vmul.f32 %v2455, %v2455
        %v2458 = vadd.f32 %v2456, 0.0
        %v2459 = vadd.f32 %v2457, 0.0
        %v2460 = vsub.f32 %v367, %v2264
        %v2461 = vsub.f32 %v368, %v2266
        %v2462 = vmul.f32 %v2460, %v2460
        %v2463 = vmul.f32 %v2461, %v2461
        %v2464 = vadd.f32 %v2458, %v2462
        %v2465 = vadd.f32 %v2459, %v2463
        %v2466 = vsub.f32 %v369, %v2268
        %v2467 = vsub.f32 %v370, %v2270
        %v2468 = vmul.f32 %v2466, %v2466
        %v2469 = vmul.f32 %v2467, %v2467
        %v2470 = vadd.f32 %v2464, %v2468
        %v2471 = vadd.f32 %v2465, %v2469
        %v2472 = vsub.f32 %v371, %v2272
        %v2473 = vsub.f32 %v372, %v2274
        %v2474 = vmul.f32 %v2472, %v2472
        %v2475 = vmul.f32 %v2473, %v2473
        %v2476 = vadd.f32 %v2470, %v2474
        %v2477 = vadd.f32 %v2471, %v2475
        %v2478 = vrsqrt.pop %v2476
        %v2479 = vmul.f32 %v2476, %v2478
        %vm2480 = vcmp.eq.f32.partialorder %v2476, inf
        %v2481 = vsel %vm2480, %v2476, %v2479
        %vm2482 = vcmp.eq.f32.partialorder %v2476, 0.0
        %v2483 = vand.u32 %v2476, 2147483648
        %v2484 = vsel %vm2482, %v2483, %v2481
        %v2485 = vrsqrt.pop %v2477
        %v2486 = vmul.f32 %v2477, %v2485
        %vm2487 = vcmp.eq.f32.partialorder %v2477, inf
        %v2488 = vsel %vm2487, %v2477, %v2486
        %vm2489 = vcmp.eq.f32.partialorder %v2477, 0.0
        %v2490 = vand.u32 %v2477, 2147483648
        %v2491 = vsel %vm2489, %v2490, %v2488
        %v2492 = vsel %vm2325, %v2484, 0.0
        %v2493 = vsel %vm2405, %v2491, 0.0
        %v2494 = vsub.f32 %v2256, %v373
        %v2495 = vsub.f32 %v2258, %v374
        %v2496 = vand.u32 2147483647, %v2494
        %v2497 = vand.u32 2147483647, %v2495
        %vm2498 = vcmp.le.f32.partialorder %v2496, %v377
        %vm2499 = vcmp.le.f32.partialorder %v2497, %v378
        %v2502 = vrot.slane %v2492, 2
        %v2503 = vrot.slane %v2493, 2
        %v2504 = vsel %vm453, %v2502, %v2503
        %v2506 = vadd.f32 %v2428, %v2504
        %v2507 = vrot.slane %v2326, 2
        %v2508 = vrot.slane %v2406, 2
        %v2509 = vsel %vm453, %v2507, %v2508
        %v2511 = vadd.f32 %v2435, %v2509
        %v2512 = vsel %vm2498, %v2492, 0.0
        %v2513 = vsel %vm2499, %v2493, 0.0
        %v2516 = vrot.slane %v2512, 2
        %v2517 = vrot.slane %v2513, 2
        %v2518 = vsel %vm453, %v2516, %v2517
        %v2520 = vadd.f32 %v2444, %v2518
        %v2521 = vsel %vm2498, %v2326, 0.0
        %v2522 = vsel %vm2499, %v2406, 0.0
        %v2525 = vrot.slane %v2521, 2
        %v2526 = vrot.slane %v2522, 2
        %v2527 = vsel %vm453, %v2525, %v2526
        %v2529 = vadd.f32 %v2453, %v2527
        %v2530 = vrot.slane %v2260, 1
        %v2531 = vrot.slane %v2262, 1
        %v2532 = vsel %vm547, %v2530, %v2531
        %v2535 = vsub.f32 %v365, %v2532
        %v2536 = vsub.f32 %v366, %v2531
        %v2537 = vmul.f32 %v2535, %v2535
        %v2538 = vmul.f32 %v2536, %v2536
        %v2539 = vadd.f32 %v2537, 0.0
        %v2540 = vadd.f32 %v2538, 0.0
        %v2541 = vrot.slane %v2264, 1
        %v2542 = vrot.slane %v2266, 1
        %v2543 = vsel %vm547, %v2541, %v2542
        %v2546 = vsub.f32 %v367, %v2543
        %v2547 = vsub.f32 %v368, %v2542
        %v2548 = vmul.f32 %v2546, %v2546
        %v2549 = vmul.f32 %v2547, %v2547
        %v2550 = vadd.f32 %v2539, %v2548
        %v2551 = vadd.f32 %v2540, %v2549
        %v2552 = vrot.slane %v2268, 1
        %v2553 = vrot.slane %v2270, 1
        %v2554 = vsel %vm547, %v2552, %v2553
        %v2557 = vsub.f32 %v369, %v2554
        %v2558 = vsub.f32 %v370, %v2553
        %v2559 = vmul.f32 %v2557, %v2557
        %v2560 = vmul.f32 %v2558, %v2558
        %v2561 = vadd.f32 %v2550, %v2559
        %v2562 = vadd.f32 %v2551, %v2560
        %v2563 = vrot.slane %v2272, 1
        %v2564 = vrot.slane %v2274, 1
        %v2565 = vsel %vm547, %v2563, %v2564
        %v2568 = vsub.f32 %v371, %v2565
        %v2569 = vsub.f32 %v372, %v2564
        %v2570 = vmul.f32 %v2568, %v2568
        %v2571 = vmul.f32 %v2569, %v2569
        %v2572 = vadd.f32 %v2561, %v2570
        %v2573 = vadd.f32 %v2562, %v2571
        %v2574 = vrsqrt.pop %v2572
        %v2575 = vmul.f32 %v2572, %v2574
        %vm2576 = vcmp.eq.f32.partialorder %v2572, inf
        %v2577 = vsel %vm2576, %v2572, %v2575
        %vm2578 = vcmp.eq.f32.partialorder %v2572, 0.0
        %v2579 = vand.u32 %v2572, 2147483648
        %v2580 = vsel %vm2578, %v2579, %v2577
        %v2581 = vrsqrt.pop %v2573
        %v2582 = vmul.f32 %v2573, %v2581
        %vm2583 = vcmp.eq.f32.partialorder %v2573, inf
        %v2584 = vsel %vm2583, %v2573, %v2582
        %vm2585 = vcmp.eq.f32.partialorder %v2573, 0.0
        %v2586 = vand.u32 %v2573, 2147483648
        %v2587 = vsel %vm2585, %v2586, %v2584
        %v2590 = vrot.slane %v2580, 7
        %v2591 = vrot.slane %v2587, 7
        %v2592 = vsel %vm481, %v2590, %v2591
        %v2595 = vsel %vm2325, %v2590, 0.0
        %v2596 = vsel %vm2405, %v2592, 0.0
        %v2597 = vsub.f32 %v2256, %v746
        %v2598 = vsub.f32 %v2258, %v748
        %v2599 = vand.u32 2147483647, %v2597
        %v2600 = vand.u32 2147483647, %v2598
        %vm2601 = vcmp.le.f32.partialorder %v2599, %v755
        %vm2602 = vcmp.le.f32.partialorder %v2600, %v757
        %v2605 = vrot.slane %v2595, 3
        %v2606 = vrot.slane %v2596, 3
        %v2607 = vsel %vm764, %v2605, %v2606
        %v2609 = vadd.f32 %v2506, %v2607
        %v2610 = vrot.slane %v2326, 3
        %v2611 = vrot.slane %v2406, 3
        %v2612 = vsel %vm764, %v2610, %v2611
        %v2614 = vadd.f32 %v2511, %v2612
        %v2615 = vsel %vm2601, %v2595, 0.0
        %v2616 = vsel %vm2602, %v2596, 0.0
        %v2619 = vrot.slane %v2615, 3
        %v2620 = vrot.slane %v2616, 3
        %v2621 = vsel %vm764, %v2619, %v2620
        %v2623 = vadd.f32 %v2520, %v2621
        %v2624 = vsel %vm2601, %v2326, 0.0
        %v2625 = vsel %vm2602, %v2406, 0.0
        %v2628 = vrot.slane %v2624, 3
        %v2629 = vrot.slane %v2625, 3
        %v2630 = vsel %vm764, %v2628, %v2629
        %v2632 = vadd.f32 %v2529, %v2630
        %v2633 = vrot.slane %v2260, 2
        %v2634 = vrot.slane %v2262, 2
        %v2635 = vsel %vm453, %v2633, %v2634
        %v2638 = vsub.f32 %v365, %v2635
        %v2639 = vsub.f32 %v366, %v2634
        %v2640 = vmul.f32 %v2638, %v2638
        %v2641 = vmul.f32 %v2639, %v2639
        %v2642 = vadd.f32 %v2640, 0.0
        %v2643 = vadd.f32 %v2641, 0.0
        %v2644 = vrot.slane %v2264, 2
        %v2645 = vrot.slane %v2266, 2
        %v2646 = vsel %vm453, %v2644, %v2645
        %v2649 = vsub.f32 %v367, %v2646
        %v2650 = vsub.f32 %v368, %v2645
        %v2651 = vmul.f32 %v2649, %v2649
        %v2652 = vmul.f32 %v2650, %v2650
        %v2653 = vadd.f32 %v2642, %v2651
        %v2654 = vadd.f32 %v2643, %v2652
        %v2655 = vrot.slane %v2268, 2
        %v2656 = vrot.slane %v2270, 2
        %v2657 = vsel %vm453, %v2655, %v2656
        %v2660 = vsub.f32 %v369, %v2657
        %v2661 = vsub.f32 %v370, %v2656
        %v2662 = vmul.f32 %v2660, %v2660
        %v2663 = vmul.f32 %v2661, %v2661
        %v2664 = vadd.f32 %v2653, %v2662
        %v2665 = vadd.f32 %v2654, %v2663
        %v2666 = vrot.slane %v2272, 2
        %v2667 = vrot.slane %v2274, 2
        %v2668 = vsel %vm453, %v2666, %v2667
        %v2671 = vsub.f32 %v371, %v2668
        %v2672 = vsub.f32 %v372, %v2667
        %v2673 = vmul.f32 %v2671, %v2671
        %v2674 = vmul.f32 %v2672, %v2672
        %v2675 = vadd.f32 %v2664, %v2673
        %v2676 = vadd.f32 %v2665, %v2674
        %v2677 = vrsqrt.pop %v2675
        %v2678 = vmul.f32 %v2675, %v2677
        %vm2679 = vcmp.eq.f32.partialorder %v2675, inf
        %v2680 = vsel %vm2679, %v2675, %v2678
        %vm2681 = vcmp.eq.f32.partialorder %v2675, 0.0
        %v2682 = vand.u32 %v2675, 2147483648
        %v2683 = vsel %vm2681, %v2682, %v2680
        %v2684 = vrsqrt.pop %v2676
        %v2685 = vmul.f32 %v2676, %v2684
        %vm2686 = vcmp.eq.f32.partialorder %v2676, inf
        %v2687 = vsel %vm2686, %v2676, %v2685
        %vm2688 = vcmp.eq.f32.partialorder %v2676, 0.0
        %v2689 = vand.u32 %v2676, 2147483648
        %v2690 = vsel %vm2688, %v2689, %v2687
        %v2693 = vrot.slane %v2683, 6
        %v2694 = vrot.slane %v2690, 6
        %v2695 = vsel %vm853, %v2693, %v2694
        %v2698 = vsel %vm2325, %v2693, 0.0
        %v2699 = vsel %vm2405, %v2695, 0.0
        %v2700 = vsub.f32 %v2256, %v861
        %v2701 = vsub.f32 %v2258, %v863
        %v2702 = vand.u32 2147483647, %v2700
        %v2703 = vand.u32 2147483647, %v2701
        %vm2704 = vcmp.le.f32.partialorder %v2702, %v870
        %vm2705 = vcmp.le.f32.partialorder %v2703, %v872
        %v2708 = vrot.slane %v2698, 4
        %v2709 = vrot.slane %v2699, 4
        %v2710 = vsel %vm879, %v2708, %v2709
        %v2712 = vadd.f32 %v2609, %v2710
        %v2713 = vrot.slane %v2326, 4
        %v2714 = vrot.slane %v2406, 4
        %v2715 = vsel %vm879, %v2713, %v2714
        %v2717 = vadd.f32 %v2614, %v2715
        %v2718 = vsel %vm2704, %v2698, 0.0
        %v2719 = vsel %vm2705, %v2699, 0.0
        %v2722 = vrot.slane %v2718, 4
        %v2723 = vrot.slane %v2719, 4
        %v2724 = vsel %vm879, %v2722, %v2723
        %v2726 = vadd.f32 %v2623, %v2724
        %v2727 = vsel %vm2704, %v2326, 0.0
        %v2728 = vsel %vm2705, %v2406, 0.0
        %v2731 = vrot.slane %v2727, 4
        %v2732 = vrot.slane %v2728, 4
        %v2733 = vsel %vm879, %v2731, %v2732
        %v2735 = vadd.f32 %v2632, %v2733
        %v2736 = vsub.f32 %v2717, %v2735
        %v2737 = vsub.f32 %v2712, %v2726
        %v2738 = vmax.f32 %v2735, 1.0
        %v2739 = vrcp.pop %v2738
        %v2740 = vmul.f32 %v2726, %v2739
        %v2741 = vmax.f32 %v2736, 1.0
        %v2742 = vrcp.pop %v2741
        %v2743 = vmul.f32 %v2737, %v2742
        %v2744 = vsub.f32 %v2740, %v2743
        %v2745 = vadd.f32 %v2744, 0.33
        %v2746 = vmax.f32 %v2745, 0.0
        %vm2747 = vcmp.gt.f32.partialorder %v2736, 2.0
        %v2748 = vsel %vm1439, 1, 0
        %v2749 = vsel %vm1519, 1, 0
        %v2750 = vrot.slane %v2748, 2
        %v2751 = vrot.slane %v2749, 2
        %v2752 = vsel %vm453, %v2750, %v2751
        %vm2753 = vcmp.ne.s32.totalorder %v2752, 0
        %vm2754 = vmand %vm2747, %vm2753
        %v2755 = vsel %vm2754, %v2746, 0.0
        %2756 = vadd.xlane.f32.xlu0 %v2755
        %v2757 = vpop.xlane.xlu0 %2756
        %v2758 = vrot.slane %v2757, 4
        %v2759 = vadd.f32 %v2757, %v2758
        %v2760 = vrot.slane %v2759, 2
        %v2761 = vadd.f32 %v2759, %v2760
        %v2762 = vrot.slane %v2761, 1
        %v2763 = vadd.f32 %v2761, %v2762
        %v2764 = vsel %vm2754, 1.0, 0.0
        %2765 = vadd.xlane.f32.xlu0 %v2764
        %v2766 = vpop.xlane.xlu0 %2765
        %v2767 = vrot.slane %v2766, 4
        %v2768 = vadd.f32 %v2766, %v2767
        %v2769 = vrot.slane %v2768, 2
        %v2770 = vadd.f32 %v2768, %v2769
        %v2771 = vrot.slane %v2770, 1
        %v2772 = vadd.f32 %v2770, %v2771
        %v2773 = vlaneseq
        %v2774 = vshrl.u32 %v2773, 7
        %vm2775 = vcmp.lt.s32.totalorder %v2774, 4
        %v2776 = vsel %vm2775, %v2763, %v2772
        // Predicated region
        $region169: #{tpu_custom_call.1} parent=11 // pred_check
          %p2777 = pneg %p70
        $region170: #{tpu_custom_call.1} parent=11 // pred_check_branch
          %2779 = sbr.rel (%p2777) target = $region172
        $region171: #{tpu_custom_call.1} parent=11 // pred_region
          %2780 = vst [vmem:[%s57] sm:$0xff] 0.0
        $region172: #{tpu_custom_call.1} parent=11 // pred_fallthru
          _
        %v2781 = vld [vmem:[%s57] sm:$0xff]
        %v2782 = vadd.f32 %v2781, %v2776
        %2783 = vst [vmem:[%s57] sm:$0xff] %v2782
        %s2784 = sand.u32 %s30, 1
        %s2785 = scalar_lea.sflag [#allocation6], %s2784
        %s2786 = sand.u32 %s30, 1
        %s2787 = smul.addr %s2786, 8
        %s2788 = scalar_lea.vmem [#allocation5], %s2787
        // Predicated region
        $region173: #{tpu_custom_call.1} parent=11 // pred_check
          %p2789 = pneg %p36
        $region174: #{tpu_custom_call.1} parent=11 // pred_check_branch
          %2791 = sbr.rel (%p2789) target = $region176
        $region175: #{tpu_custom_call.1} parent=11 // pred_region
          %s2793 = ssub.s32 128, 128
          %2794 = vsyncadd %s2785, %s2793
          %s2795 = smul.addr %s17, 128
          %s2796 = scalar_lea.hbm %s2, %s2795
          %s2798 = sshll.u32 %s2788, 4
          %s2799 = int_to_ptr.vmem [resolvable:$true] %s2798
          %2801 = dma.vmem_to_hbm [thread:$0]  %s2799, 128, %s2796, %s2785
        $region176: #{tpu_custom_call.1} parent=11 // pred_fallthru
          _
      $region12: #{tpu_custom_call.1} parent=5 // pred_fallthru
        _
      %p2802 = scmp.le.s32.totalorder 1, %s11
      // Predicated region
      $region177: #{tpu_custom_call.1} parent=5 // pred_check
        %p2803 = pneg %p2802
      $region178: #{tpu_custom_call.1} parent=5 // pred_check_branch
        %2805 = sbr.rel (%p2803) target = $region180
      $region179: #{tpu_custom_call.1} parent=5 // pred_region
        %s2806 = ssub.s32 %s11, 1
        // Predicated region
        $region181: #{tpu_custom_call.1} parent=179 // pred_check
          %p2807 = pneg %p42
        $region182: #{tpu_custom_call.1} parent=179 // pred_check_branch
          %2809 = sbr.rel (%p2807) target = $region184
        $region183: #{tpu_custom_call.1} parent=179 // pred_region
          %s2810 = sand.u32 %s33, 1
          %s2811 = scalar_lea.sflag [#allocation6], %s2810
          %s2812 = sand.u32 %s33, 1
          %s2813 = smul.addr %s2812, 8
          %s2814 = scalar_lea.vmem [#allocation5], %s2813
          %2815 = dma.done %s2811, 128
        $region184: #{tpu_custom_call.1} parent=179 // pred_fallthru
          _
      $region180: #{tpu_custom_call.1} parent=5 // pred_fallthru
        _
    $region6: #{tpu_custom_call.1} parent=1 // loop_footer
      %s15 = sadd.s32 1, %s11
    $region7: #{tpu_custom_call.1} parent=1 // loop_footer_branch
      %10 = sbr.rel target = $region3
    $region8: #{tpu_custom_call.1} parent=1 // loop_exit
      _
    %2816 = vsyncpa [#allocation6], 1
    %s2817 = scalar_lea.sflag [#allocation6], 1
    %2818 = vsyncpa %s2817, 1
  %2819 = vsyncmov [#allocation4]
  %s2820 = vpop.sfrf %2819
  %p2821 = scmp.eq.s32.totalorder %s2820, 0
  %p2822 = pneg %p2821
  %2824 = shalt.err (%p2822)
  %s2825 = scalar_lea.sflag [#allocation4], 1
  %2826 = vsyncmov %s2825
  %s2827 = vpop.sfrf %2826
  %p2828 = scmp.eq.s32.totalorder %s2827, 0
  %p2829 = pneg %p2828
  %2831 = shalt.err (%p2829)
  %s2832 = scalar_lea.sflag [#allocation4], 2
  %2833 = vsyncmov %s2832
  %s2834 = vpop.sfrf %2833
  %p2835 = scmp.eq.s32.totalorder %s2834, 0
  %p2836 = pneg %p2835
  %2838 = shalt.err (%p2836)
  %s2839 = scalar_lea.sflag [#allocation4], 3
  %2840 = vsyncmov %s2839
  %s2841 = vpop.sfrf %2840
  %p2842 = scmp.eq.s32.totalorder %s2841, 0
  %p2843 = pneg %p2842
  %2845 = shalt.err (%p2843)

</llo_original>
